<compile_context>
chip_gen: v5e
topology: v5e:2x2
jax: 0.10.0
libtpu: 0.0.40
codegen_flags: <defaults>
</compile_context>

<pallas_src>
import functools

import jax
import jax.numpy as jnp
from jax.experimental import pallas as pl
from jax.experimental.pallas import tpu as pltpu

# Budget against v7x's 64 MiB physical VMEM (keep headroom for double
# buffering); also fine on v5e/v6e (128 MiB physical).
VMEM_LIMIT = 48 * 1024 * 1024
N_TILE = 128
BIG = 1e30


def _vmem():
    return pl.BlockSpec(memory_space=pltpu.MemorySpace.VMEM)


def _smem():
    return pl.BlockSpec(memory_space=pltpu.MemorySpace.SMEM)


def _hw_tile(HW):
    for t in (512, 384, 256, 128):
        if HW % t == 0:
            return t
    return HW


# ----------------------------------------------------------------------------
# Kernel 1: PCPR point splatting (streaming z-buffer over N tiles).
# ----------------------------------------------------------------------------
def _pcpr_splat_kernel(pts_ref, feats_ref, def_ref, w2c_ref, k_ref, nf_ref,
                       feat_ref, depth_ref, ind_ref, *, W, H):
    hw_blk = pl.program_id(0)
    n_blk = pl.program_id(1)
    n_tile = pts_ref.shape[0]
    hw_tile = depth_ref.shape[1]

    # Initialize the resident accumulators (output blocks) on the first N tile.
    @pl.when(n_blk == 0)
    def _init():
        depth_ref[...] = jnp.full(depth_ref.shape, BIG, jnp.float32)
        ind_ref[...] = jnp.full(ind_ref.shape, -1, jnp.int32)
        feat_ref[...] = jnp.zeros(feat_ref.shape, jnp.float32)

    pts = pts_ref[...]                                   # (Nt, 4): x, y, z, act
    p0 = pts[:, 0:1]
    p1 = pts[:, 1:2]
    p2 = pts[:, 2:3]
    act = pts[:, 3:4] > 0.5

    # world -> camera: first three rows of the 4x4 w2c matrix, scalar FMAs.
    c0 = w2c_ref[0] * p0 + w2c_ref[1] * p1 + w2c_ref[2] * p2 + w2c_ref[3]
    c1 = w2c_ref[4] * p0 + w2c_ref[5] * p1 + w2c_ref[6] * p2 + w2c_ref[7]
    c2 = w2c_ref[8] * p0 + w2c_ref[9] * p1 + w2c_ref[10] * p2 + w2c_ref[11]

    # camera -> image plane (3x3 intrinsics).
    px = k_ref[0] * c0 + k_ref[1] * c1 + k_ref[2] * c2
    py = k_ref[3] * c0 + k_ref[4] * c1 + k_ref[5] * c2
    pz = k_ref[6] * c0 + k_ref[7] * c1 + k_ref[8] * c2

    near = nf_ref[0]
    far = nf_ref[1]

    # Single guarded reciprocal reused for u and v; clamp before int cast so
    # degenerate points never hit float->int conversion of inf/NaN.
    z_ok = pz > jnp.float32(1e-8)
    inv_z = 1.0 / jnp.where(z_ok, pz, 1.0)
    u = jnp.clip(px * inv_z, -3e4, 3e4)
    v = jnp.clip(py * inv_z, -3e4, 3e4)
    ui = jnp.floor(u).astype(jnp.int32)
    vi = jnp.floor(v).astype(jnp.int32)
    pix = vi * W + ui                                    # (Nt, 1)

    valid = (act & z_ok & (pz > near) & (pz < far)
             & (ui >= 0) & (ui < W) & (vi >= 0) & (vi < H))

    # Per-tile argmin over the point (sublane) axis; pixels stay on lanes.
    pix_base = hw_blk * hw_tile
    pix_ids = jax.lax.broadcasted_iota(jnp.int32, (n_tile, hw_tile), 1) + pix_base
    match = (pix_ids == pix) & valid                     # (Nt, HWt)

    depth_mat = jnp.where(match, pz, BIG)
    tile_min = jnp.min(depth_mat, axis=0, keepdims=True)         # (1, HWt)

    point_iota = jax.lax.broadcasted_iota(jnp.int32, (n_tile, hw_tile), 0)
    is_min = match & (depth_mat <= tile_min)
    local_best = jnp.min(jnp.where(is_min, point_iota, n_tile),
                         axis=0, keepdims=True)                  # (1, HWt)
    onehot = (point_iota == local_best).astype(jnp.float32)      # (Nt, HWt)

    # Gather selected features (kept f32 to preserve feature precision).
    feat_tile = jnp.dot(feats_ref[...], onehot,
                        preferred_element_type=jnp.float32)      # (C, HWt)

    # Merge this tile into the running accumulators (earlier tiles win ties,
    # matching the global smallest-index-at-min-depth rule).
    better = tile_min < depth_ref[...]
    depth_ref[...] = jnp.where(better, tile_min, depth_ref[...])
    ind_ref[...] = jnp.where(better, local_best + n_blk * n_tile, ind_ref[...])
    feat_ref[...] = jnp.where(better, feat_tile, feat_ref[...])

    @pl.when(n_blk == pl.num_programs(1) - 1)
    def _finalize():
        has = depth_ref[...] < jnp.float32(1e29)
        feat_ref[...] = jnp.where(has, feat_ref[...], def_ref[...])
        depth_ref[...] = jnp.where(has, depth_ref[...], 0.0)
        # ind_ref stays -1 where no point hit the pixel.


def pcpr_splat(pts_act, feats_cn, default_c1, w2c_flat, k_flat, nf_flat, H, W):
    N_pad = pts_act.shape[0]
    C = feats_cn.shape[0]
    HW = H * W
    hw_tile = _hw_tile(HW)
    grid = (HW // hw_tile, N_pad // N_TILE)
    kern = functools.partial(_pcpr_splat_kernel, W=W, H=H)
    return pl.pallas_call(
        kern,
        out_shape=(jax.ShapeDtypeStruct((C, HW), jnp.float32),
                   jax.ShapeDtypeStruct((1, HW), jnp.float32),
                   jax.ShapeDtypeStruct((1, HW), jnp.int32)),
        grid=grid,
        in_specs=[
            pl.BlockSpec((N_TILE, 4), lambda h, n: (n, 0)),
            pl.BlockSpec((C, N_TILE), lambda h, n: (0, n)),
            pl.BlockSpec((C, 1), lambda h, n: (0, 0)),
            _smem(),   # w2c (16,)
            _smem(),   # K (9,)
            _smem(),   # near/far (2,)
        ],
        out_specs=(
            pl.BlockSpec((C, hw_tile), lambda h, n: (0, h)),
            pl.BlockSpec((1, hw_tile), lambda h, n: (0, h)),
            pl.BlockSpec((1, hw_tile), lambda h, n: (0, h)),
        ),
        compiler_params=pltpu.CompilerParams(
            dimension_semantics=("parallel", "arbitrary"),
            vmem_limit_bytes=VMEM_LIMIT),
    )(pts_act, feats_cn, default_c1, w2c_flat, k_flat, nf_flat)


# ----------------------------------------------------------------------------
# Kernel 2: ray directions / points in world (pure VPU, SMEM camera scalars).
# ----------------------------------------------------------------------------
def _raydir_kernel(kinv_ref, e_ref, coord_ref, depth_ref, dir_ref, piw_ref):
    c0 = coord_ref[0:1, :]
    c1 = coord_ref[1:2, :]
    c2 = coord_ref[2:3, :]
    depth = depth_ref[...]

    d0 = kinv_ref[0] * c0 + kinv_ref[1] * c1 + kinv_ref[2] * c2
    d1 = kinv_ref[3] * c0 + kinv_ref[4] * c1 + kinv_ref[5] * c2
    d2 = kinv_ref[6] * c0 + kinv_ref[7] * c1 + kinv_ref[8] * c2

    # Homogeneous w-component of the direction is 1 -> fold E[:,3] in directly.
    w0 = e_ref[0] * d0 + e_ref[1] * d1 + e_ref[2] * d2 + e_ref[3]
    w1 = e_ref[4] * d0 + e_ref[5] * d1 + e_ref[6] * d2 + e_ref[7]
    w2 = e_ref[8] * d0 + e_ref[9] * d1 + e_ref[10] * d2 + e_ref[11]
    w3 = e_ref[12] * d0 + e_ref[13] * d1 + e_ref[14] * d2 + e_ref[15]

    inv_w3 = 1.0 / w3
    v0 = w0 * inv_w3
    v1 = w1 * inv_w3
    v2 = w2 * inv_w3
    inv_norm = jax.lax.rsqrt(v0 * v0 + v1 * v1 + v2 * v2 + jnp.float32(1e-24))
    zero = depth == 0.0
    dir_ref[0:1, :] = jnp.where(zero, 0.0, v0 * inv_norm)
    dir_ref[1:2, :] = jnp.where(zero, 0.0, v1 * inv_norm)
    dir_ref[2:3, :] = jnp.where(zero, 0.0, v2 * inv_norm)

    pc0 = d0 * depth
    pc1 = d1 * depth
    pc2 = d2 * depth
    q0 = e_ref[0] * pc0 + e_ref[1] * pc1 + e_ref[2] * pc2 + e_ref[3]
    q1 = e_ref[4] * pc0 + e_ref[5] * pc1 + e_ref[6] * pc2 + e_ref[7]
    q2 = e_ref[8] * pc0 + e_ref[9] * pc1 + e_ref[10] * pc2 + e_ref[11]
    q3 = e_ref[12] * pc0 + e_ref[13] * pc1 + e_ref[14] * pc2 + e_ref[15]
    inv_q3 = 1.0 / q3
    piw_ref[0:1, :] = q0 * inv_q3
    piw_ref[1:2, :] = q1 * inv_q3
    piw_ref[2:3, :] = q2 * inv_q3


def ray_dirs(kinv_flat, e_flat, coord_3hw, depth_1hw):
    HW = coord_3hw.shape[1]
    hw_tile = _hw_tile(HW)
    grid = (HW // hw_tile,)
    return pl.pallas_call(
        _raydir_kernel,
        out_shape=(jax.ShapeDtypeStruct((3, HW), jnp.float32),
                   jax.ShapeDtypeStruct((3, HW), jnp.float32)),
        grid=grid,
        in_specs=[
            _smem(),   # Kinv (9,)
            _smem(),   # E (16,)
            pl.BlockSpec((3, hw_tile), lambda h: (0, h)),
            pl.BlockSpec((1, hw_tile), lambda h: (0, h)),
        ],
        out_specs=(pl.BlockSpec((3, hw_tile), lambda h: (0, h)),
                   pl.BlockSpec((3, hw_tile), lambda h: (0, h))),
        compiler_params=pltpu.CompilerParams(
            dimension_semantics=("parallel",),
            vmem_limit_bytes=VMEM_LIMIT),
    )(kinv_flat, e_flat, coord_3hw, depth_1hw)


# ----------------------------------------------------------------------------
# Kernel 3: fused 2-layer 3x3 conv (in-kernel im2col via lane rolls + masks).
# ----------------------------------------------------------------------------
def _unet_kernel(feat_ref, dir_ref, w1_ref, b1_ref, w2_ref, b2_ref, out_ref,
                 *, H, W):
    HW = H * W
    col = jax.lax.broadcasted_iota(jnp.int32, (1, HW), 1) % W
    row = jax.lax.broadcasted_iota(jnp.int32, (1, HW), 1) // W

    taps = []
    for ky in range(3):
        for kx in range(3):
            dy, dx = ky - 1, kx - 1
            shift = (-(dy * W + dx)) % HW
            ok = ((row + dy >= 0) & (row + dy < H)
                  & (col + dx >= 0) & (col + dx < W))
            taps.append((shift, ok))

    def im2col(a):                                       # a: (C, HW)
        blocks = []
        for shift, ok in taps:
            sh = pltpu.roll(a, shift, axis=1) if shift else a
            blocks.append(jnp.where(ok, sh, jnp.zeros_like(sh)))
        return jnp.concatenate(blocks, axis=0)           # (9*C, HW)

    # Channel concat of splat features + ray dirs happens in VMEM.
    x = jnp.concatenate([feat_ref[...], dir_ref[...]], axis=0)   # (Cin, HW)

    p1 = im2col(x).astype(jnp.bfloat16)
    h = jnp.dot(w1_ref[...], p1, preferred_element_type=jnp.float32)
    h = jnp.maximum(h + b1_ref[...], 0.0)                        # (hidden, HW)

    p2 = im2col(h).astype(jnp.bfloat16)
    o = jnp.dot(w2_ref[...], p2, preferred_element_type=jnp.float32)
    out_ref[...] = o + b2_ref[...]                               # (4, HW)


def unet2(feat_chw, dir_chw, w1m, b1, w2m, b2, H, W):
    # TODO(synk): single VMEM tile for the whole image; larger images need a
    # halo-tiled HW grid.
    HW = H * W
    cout = w2m.shape[0]
    return pl.pallas_call(
        functools.partial(_unet_kernel, H=H, W=W),
        out_shape=jax.ShapeDtypeStruct((cout, HW), jnp.float32),
        in_specs=[_vmem()] * 6,
        out_specs=_vmem(),
        compiler_params=pltpu.CompilerParams(vmem_limit_bytes=VMEM_LIMIT),
    )(feat_chw, dir_chw, w1m, b1, w2m, b2)


# ----------------------------------------------------------------------------
# Kernel 4: front-to-back alpha compositing over layers.
# ----------------------------------------------------------------------------
def _composite_kernel(rgba_ref, out_ref):
    data = rgba_ref[...]                                  # (L, 4, HW)
    L = data.shape[0]
    HW = data.shape[2]
    trans = jnp.ones((1, HW), jnp.float32)
    rgb_acc = jnp.zeros((3, HW), jnp.float32)
    a_acc = jnp.zeros((1, HW), jnp.float32)
    for l in range(L):   # TODO(synk): switch to lax.fori_loop for large L.
        a = jnp.clip(data[l, 3:4, :], 0.0, 1.0)
        w = a * trans
        rgb_acc = rgb_acc + data[l, 0:3, :] * w
        a_acc = a_acc + w
        trans = trans * (1.0 - a)
    out_ref[0:3, :] = rgb_acc
    out_ref[3:4, :] = a_acc


def composite(rgba_l4hw):
    _, _, HW = rgba_l4hw.shape
    return pl.pallas_call(
        _composite_kernel,
        out_shape=jax.ShapeDtypeStruct((4, HW), jnp.float32),
        in_specs=[_vmem()],
        out_specs=_vmem(),
        compiler_params=pltpu.CompilerParams(vmem_limit_bytes=VMEM_LIMIT),
    )(rgba_l4hw)


# ----------------------------------------------------------------------------
# PCPRender (JAX / Pallas version).
# ----------------------------------------------------------------------------
class PCPRRenderPallas:
    def __init__(self, feature_dim, tar_width, tar_height, layer_num,
                 depth_thr, dataset=None, hidden=16, key=None):
        if key is None:
            key = jax.random.PRNGKey(0)
        self.feature_dim = feature_dim
        self.tar_width = tar_width
        self.tar_height = tar_height
        self.layer_num = layer_num
        self.depth_thr = depth_thr
        self.dataset = dataset
        self.absorb = jnp.array(1.0, jnp.float32)

        add_rgb_input = 3 if dataset is not None else 0
        cin = feature_dim + 3 + add_rgb_input

        k1, k2, k3, k4 = jax.random.split(key, 4)
        w1 = 0.1 * jax.random.normal(k1, (3, 3, cin, hidden), jnp.float32)
        w2 = 0.1 * jax.random.normal(k3, (3, 3, hidden, 4), jnp.float32)
        # Channel-major (Cout, 9*Cin) weights, bf16 for the MXU.
        self.w1m = jnp.asarray(w1.reshape(9 * cin, hidden).T, jnp.bfloat16)
        self.w2m = jnp.asarray(w2.reshape(9 * hidden, 4).T, jnp.bfloat16)
        self.b1 = (0.1 * jax.random.normal(k2, (hidden,), jnp.float32)
                   ).reshape(hidden, 1)
        self.b2 = (0.1 * jax.random.normal(k4, (4,), jnp.float32)).reshape(4, 1)

        xh, yw = jnp.meshgrid(jnp.arange(tar_height), jnp.arange(tar_width),
                              indexing="ij")
        coord = jnp.stack([yw, xh, jnp.ones_like(xh)], axis=0)
        self.coord = coord.astype(jnp.float32).reshape(3, tar_height * tar_width)

    def __call__(self, point_features, default_features, point_clouds,
                 cam_intrinsic, cam_extrinsic, near_far_max_splatting_size,
                 num_points, inds=None):
        H, W = self.tar_height, self.tar_width
        HW = H * W
        C = self.feature_dim
        N = point_clouds.shape[0]
        N_pad = ((N + N_TILE - 1) // N_TILE) * N_TILE

        K = cam_intrinsic[0].astype(jnp.float32)
        E = cam_extrinsic[0].astype(jnp.float32)
        Kinv = jnp.linalg.inv(K)
        w2c = jnp.linalg.inv(E)
        k_flat = K.reshape(-1)
        kinv_flat = Kinv.reshape(-1)
        e_flat = E.reshape(-1)
        w2c_flat = w2c.reshape(-1)
        nf_flat = near_far_max_splatting_size[0, :2].astype(jnp.float32)

        pts_pad = jnp.zeros((N_pad, 3), jnp.float32).at[:N].set(
            point_clouds.astype(jnp.float32))
        feats_cn = jnp.zeros((C, N_pad), jnp.float32).at[:, :N].set(
            point_features.astype(jnp.float32))
        def_c1 = default_features.reshape(C, 1).astype(jnp.float32)
        active = jnp.concatenate(
            [jnp.ones((N,), jnp.float32), jnp.zeros((N_pad - N,), jnp.float32)])

        rgbas, deps = [], []
        ind_o = None
        piw0 = None
        x = None

        for layer in range(self.layer_num):
            pts_act = jnp.concatenate([pts_pad, active[:, None]], axis=1)
            feat_chw, depth_1hw, ind_1hw = pcpr_splat(
                pts_act, feats_cn, def_c1, w2c_flat, k_flat, nf_flat, H, W)

            dir_chw, piw_chw = ray_dirs(kinv_flat, e_flat, self.coord,
                                        depth_1hw)

            if layer == 0:
                ind_o = jnp.where(ind_1hw < 0, N, ind_1hw).reshape(1, H, W)
                piw0 = piw_chw                                   # (3, HW)

            x = unet2(feat_chw, dir_chw, self.w1m, self.b1, self.w2m, self.b2,
                      H, W)                                      # (4, HW)

            dep_l = depth_1hw.reshape(1, 1, H, W)
            if layer != 0:
                ddeps = (dep_l - deps[layer - 1])[0, 0]          # (H, W)
                sec = ddeps > self.depth_thr
                dep_l = jnp.where(sec[None, None], 0.0, dep_l)
                x = x.at[3].set(jnp.where(sec.reshape(-1), 0.0, x[3]))

            deps.append(dep_l)
            rgbas.append(x)

            # Remove points consumed by this layer (mask instead of gather).
            idx = jnp.where(ind_1hw.reshape(-1) < 0, N_pad, ind_1hw.reshape(-1))
            removed = jnp.zeros((N_pad + 1,), jnp.bool_).at[idx].set(True)[:N_pad]
            active = active * (1.0 - removed.astype(jnp.float32))

        if self.layer_num == 1:
            return x.reshape(1, 4, H, W), deps[0], ind_o, piw0, None

        rgba_stack = jnp.stack(rgbas, axis=0)                    # (L, 4, HW)
        res = composite(rgba_stack).reshape(1, 4, H, W)
        return res, deps[0], ind_o, piw0, None


# ----------------------------------------------------------------------------
if __name__ == "__main__":
    key = jax.random.PRNGKey(0)
    feature_dim, H, W = 8, 16, 16
    layer_num, depth_thr = 2, 1.0
    N = 64

    k_pts, k_feat, k_def, k_net = jax.random.split(key, 4)

    # Pinhole camera looking down +z, identity extrinsic (camera-to-world).
    f, cx, cy = 16.0, 8.0, 8.0
    cam_intrinsic = jnp.array([[[f, 0.0, cx],
                                [0.0, f, cy],
                                [0.0, 0.0, 1.0]]], jnp.float32)
    cam_extrinsic = jnp.eye(4, dtype=jnp.float32)[None]

    # Points placed inside the view frustum.
    ku, kv, kz = jax.random.split(k_pts, 3)
    u = jax.random.uniform(ku, (N,), minval=0.5, maxval=W - 0.5)
    v = jax.random.uniform(kv, (N,), minval=0.5, maxval=H - 0.5)
    z = jax.random.uniform(kz, (N,), minval=2.0, maxval=6.0)
    point_clouds = jnp.stack([(u - cx) * z / f, (v - cy) * z / f, z], axis=1)

    point_features = jax.random.normal(k_feat, (feature_dim, N), jnp.float32)
    default_features = 0.1 * jax.random.normal(k_def, (feature_dim,),
                                               jnp.float32)
    near_far_max_splatting_size = jnp.array([[1.0, 10.0, 1.0]], jnp.float32)
    num_points = jnp.array([N], jnp.int32)

    model = PCPRRenderPallas(feature_dim, W, H, layer_num, depth_thr, key=k_net)
    res, dep0, ind_o, piw0, _ = model(point_features, default_features,
                                      point_clouds, cam_intrinsic,
                                      cam_extrinsic,
                                      near_far_max_splatting_size, num_points)
    jax.block_until_ready((res, dep0, ind_o, piw0))

    assert res.shape == (1, 4, H, W)
    assert dep0.shape == (1, 1, H, W)
    assert ind_o.shape == (1, H, W)
    assert piw0.shape == (3, H * W)
    assert bool(jnp.all(jnp.isfinite(res)))
    assert bool(jnp.all(jnp.isfinite(dep0)))
    assert bool(jnp.all(jnp.isfinite(piw0)))
    print("KERNEL_OK")
</pallas_src>

<mosaic_0001>
module attributes {stable_mosaic.version = 11 : i64} {
  func.func @_pcpr_splat_kernel(%arg0: i32, %arg1: i32, %arg2: memref<128x4xf32, #tpu.memory_space<vmem>>, %arg3: memref<8x128xf32, #tpu.memory_space<vmem>>, %arg4: memref<8x1xf32, #tpu.memory_space<vmem>>, %arg5: memref<16xf32, #tpu.memory_space<smem>>, %arg6: memref<9xf32, #tpu.memory_space<smem>>, %arg7: memref<2xf32, #tpu.memory_space<smem>>, %arg8: memref<8x256xf32, #tpu.memory_space<vmem>>, %arg9: memref<1x256xf32, #tpu.memory_space<vmem>>, %arg10: memref<1x256xi32, #tpu.memory_space<vmem>>) attributes {dimension_semantics = [#tpu.dimension_semantics<parallel>, #tpu.dimension_semantics<arbitrary>], iteration_bounds = array<i64: 1, 1>, scalar_prefetch = 0 : i64, scratch_operands = 0 : i64, tpu.core_type = #tpu.core_type<tc>, window_params = [{transform_indices = @transform_0, window_bounds = array<i64: 128, 4>}, {transform_indices = @transform_1, window_bounds = array<i64: 8, 128>}, {pipeline_mode = #tpu.pipeline_mode<synchronous>, transform_indices = @transform_2, window_bounds = array<i64: 8, 1>}, {transform_indices = @transform_3, window_bounds = array<i64: 16>}, {transform_indices = @transform_4, window_bounds = array<i64: 9>}, {transform_indices = @transform_5, window_bounds = array<i64: 2>}, {transform_indices = @transform_6, window_bounds = array<i64: 8, 256>}, {transform_indices = @transform_7, window_bounds = array<i64: 1, 256>}, {transform_indices = @transform_8, window_bounds = array<i64: 1, 256>}]} {
    %c0_i32 = arith.constant 0 : i32
    %0 = arith.cmpi eq, %arg1, %c0_i32 : i32
    %1 = arith.extui %0 : i1 to i32
    %c0_i32_0 = arith.constant 0 : i32
    %2 = arith.cmpi ne, %1, %c0_i32_0 : i32
    scf.if %2 {
      %cst_48 = arith.constant 1.000000e+30 : f32
      %176 = vector.broadcast %cst_48 : f32 to vector<1x256xf32>
      %c0_49 = arith.constant 0 : index
      %c0_50 = arith.constant 0 : index
      %177 = vector.load %arg9[%c0_49, %c0_50] : memref<1x256xf32, #tpu.memory_space<vmem>>, vector<1x256xf32>
      tpu.vector_store %arg9[%c0_49, %c0_50], %176 {strides = array<i32>} : memref<1x256xf32, #tpu.memory_space<vmem>>, vector<1x256xf32>,
      %c-1_i32 = arith.constant -1 : i32
      %178 = vector.broadcast %c-1_i32 : i32 to vector<1x256xi32>
      %c0_51 = arith.constant 0 : index
      %c0_52 = arith.constant 0 : index
      %179 = vector.load %arg10[%c0_51, %c0_52] : memref<1x256xi32, #tpu.memory_space<vmem>>, vector<1x256xi32>
      tpu.vector_store %arg10[%c0_51, %c0_52], %178 {strides = array<i32>} : memref<1x256xi32, #tpu.memory_space<vmem>>, vector<1x256xi32>,
      %cst_53 = arith.constant 0.000000e+00 : f32
      %180 = vector.broadcast %cst_53 : f32 to vector<8x256xf32>
      %c0_54 = arith.constant 0 : index
      %c0_55 = arith.constant 0 : index
      %181 = vector.load %arg8[%c0_54, %c0_55] : memref<8x256xf32, #tpu.memory_space<vmem>>, vector<8x256xf32>
      tpu.vector_store %arg8[%c0_54, %c0_55], %180 {strides = array<i32>} : memref<8x256xf32, #tpu.memory_space<vmem>>, vector<8x256xf32>,
    } else {
    }
    %c0 = arith.constant 0 : index
    %c0_1 = arith.constant 0 : index
    %3 = vector.load %arg2[%c0, %c0_1] : memref<128x4xf32, #tpu.memory_space<vmem>>, vector<128x4xf32>
    %4 = vector.extract_strided_slice %3 {offsets = [0, 0], sizes = [128, 1], strides = [1, 1]} : vector<128x4xf32> to vector<128x1xf32>
    %5 = vector.extract_strided_slice %3 {offsets = [0, 1], sizes = [128, 1], strides = [1, 1]} : vector<128x4xf32> to vector<128x1xf32>
    %6 = vector.extract_strided_slice %3 {offsets = [0, 2], sizes = [128, 1], strides = [1, 1]} : vector<128x4xf32> to vector<128x1xf32>
    %7 = vector.extract_strided_slice %3 {offsets = [0, 3], sizes = [128, 1], strides = [1, 1]} : vector<128x4xf32> to vector<128x1xf32>
    %cst = arith.constant 5.000000e-01 : f32
    %8 = vector.broadcast %cst : f32 to vector<128x1xf32>
    %9 = arith.cmpf ogt, %7, %8 : vector<128x1xf32>
    %c0_2 = arith.constant 0 : index
    %10 = memref.load %arg5[%c0_2] : memref<16xf32, #tpu.memory_space<smem>>
    %11 = vector.broadcast %10 : f32 to vector<128x1xf32>
    %12 = arith.mulf %11, %4 : vector<128x1xf32>
    %c1 = arith.constant 1 : index
    %13 = memref.load %arg5[%c1] : memref<16xf32, #tpu.memory_space<smem>>
    %14 = vector.broadcast %13 : f32 to vector<128x1xf32>
    %15 = arith.mulf %14, %5 : vector<128x1xf32>
    %16 = arith.addf %12, %15 : vector<128x1xf32>
    %c2 = arith.constant 2 : index
    %17 = memref.load %arg5[%c2] : memref<16xf32, #tpu.memory_space<smem>>
    %18 = vector.broadcast %17 : f32 to vector<128x1xf32>
    %19 = arith.mulf %18, %6 : vector<128x1xf32>
    %20 = arith.addf %16, %19 : vector<128x1xf32>
    %c3 = arith.constant 3 : index
    %21 = memref.load %arg5[%c3] : memref<16xf32, #tpu.memory_space<smem>>
    %22 = vector.broadcast %21 : f32 to vector<128x1xf32>
    %23 = arith.addf %20, %22 : vector<128x1xf32>
    %c4 = arith.constant 4 : index
    %24 = memref.load %arg5[%c4] : memref<16xf32, #tpu.memory_space<smem>>
    %25 = vector.broadcast %24 : f32 to vector<128x1xf32>
    %26 = arith.mulf %25, %4 : vector<128x1xf32>
    %c5 = arith.constant 5 : index
    %27 = memref.load %arg5[%c5] : memref<16xf32, #tpu.memory_space<smem>>
    %28 = vector.broadcast %27 : f32 to vector<128x1xf32>
    %29 = arith.mulf %28, %5 : vector<128x1xf32>
    %30 = arith.addf %26, %29 : vector<128x1xf32>
    %c6 = arith.constant 6 : index
    %31 = memref.load %arg5[%c6] : memref<16xf32, #tpu.memory_space<smem>>
    %32 = vector.broadcast %31 : f32 to vector<128x1xf32>
    %33 = arith.mulf %32, %6 : vector<128x1xf32>
    %34 = arith.addf %30, %33 : vector<128x1xf32>
    %c7 = arith.constant 7 : index
    %35 = memref.load %arg5[%c7] : memref<16xf32, #tpu.memory_space<smem>>
    %36 = vector.broadcast %35 : f32 to vector<128x1xf32>
    %37 = arith.addf %34, %36 : vector<128x1xf32>
    %c8 = arith.constant 8 : index
    %38 = memref.load %arg5[%c8] : memref<16xf32, #tpu.memory_space<smem>>
    %39 = vector.broadcast %38 : f32 to vector<128x1xf32>
    %40 = arith.mulf %39, %4 : vector<128x1xf32>
    %c9 = arith.constant 9 : index
    %41 = memref.load %arg5[%c9] : memref<16xf32, #tpu.memory_space<smem>>
    %42 = vector.broadcast %41 : f32 to vector<128x1xf32>
    %43 = arith.mulf %42, %5 : vector<128x1xf32>
    %44 = arith.addf %40, %43 : vector<128x1xf32>
    %c10 = arith.constant 10 : index
    %45 = memref.load %arg5[%c10] : memref<16xf32, #tpu.memory_space<smem>>
    %46 = vector.broadcast %45 : f32 to vector<128x1xf32>
    %47 = arith.mulf %46, %6 : vector<128x1xf32>
    %48 = arith.addf %44, %47 : vector<128x1xf32>
    %c11 = arith.constant 11 : index
    %49 = memref.load %arg5[%c11] : memref<16xf32, #tpu.memory_space<smem>>
    %50 = vector.broadcast %49 : f32 to vector<128x1xf32>
    %51 = arith.addf %48, %50 : vector<128x1xf32>
    %c0_3 = arith.constant 0 : index
    %52 = memref.load %arg6[%c0_3] : memref<9xf32, #tpu.memory_space<smem>>
    %53 = vector.broadcast %52 : f32 to vector<128x1xf32>
    %54 = arith.mulf %53, %23 : vector<128x1xf32>
    %c1_4 = arith.constant 1 : index
    %55 = memref.load %arg6[%c1_4] : memref<9xf32, #tpu.memory_space<smem>>
    %56 = vector.broadcast %55 : f32 to vector<128x1xf32>
    %57 = arith.mulf %56, %37 : vector<128x1xf32>
    %58 = arith.addf %54, %57 : vector<128x1xf32>
    %c2_5 = arith.constant 2 : index
    %59 = memref.load %arg6[%c2_5] : memref<9xf32, #tpu.memory_space<smem>>
    %60 = vector.broadcast %59 : f32 to vector<128x1xf32>
    %61 = arith.mulf %60, %51 : vector<128x1xf32>
    %62 = arith.addf %58, %61 : vector<128x1xf32>
    %c3_6 = arith.constant 3 : index
    %63 = memref.load %arg6[%c3_6] : memref<9xf32, #tpu.memory_space<smem>>
    %64 = vector.broadcast %63 : f32 to vector<128x1xf32>
    %65 = arith.mulf %64, %23 : vector<128x1xf32>
    %c4_7 = arith.constant 4 : index
    %66 = memref.load %arg6[%c4_7] : memref<9xf32, #tpu.memory_space<smem>>
    %67 = vector.broadcast %66 : f32 to vector<128x1xf32>
    %68 = arith.mulf %67, %37 : vector<128x1xf32>
    %69 = arith.addf %65, %68 : vector<128x1xf32>
    %c5_8 = arith.constant 5 : index
    %70 = memref.load %arg6[%c5_8] : memref<9xf32, #tpu.memory_space<smem>>
    %71 = vector.broadcast %70 : f32 to vector<128x1xf32>
    %72 = arith.mulf %71, %51 : vector<128x1xf32>
    %73 = arith.addf %69, %72 : vector<128x1xf32>
    %c6_9 = arith.constant 6 : index
    %74 = memref.load %arg6[%c6_9] : memref<9xf32, #tpu.memory_space<smem>>
    %75 = vector.broadcast %74 : f32 to vector<128x1xf32>
    %76 = arith.mulf %75, %23 : vector<128x1xf32>
    %c7_10 = arith.constant 7 : index
    %77 = memref.load %arg6[%c7_10] : memref<9xf32, #tpu.memory_space<smem>>
    %78 = vector.broadcast %77 : f32 to vector<128x1xf32>
    %79 = arith.mulf %78, %37 : vector<128x1xf32>
    %80 = arith.addf %76, %79 : vector<128x1xf32>
    %c8_11 = arith.constant 8 : index
    %81 = memref.load %arg6[%c8_11] : memref<9xf32, #tpu.memory_space<smem>>
    %82 = vector.broadcast %81 : f32 to vector<128x1xf32>
    %83 = arith.mulf %82, %51 : vector<128x1xf32>
    %84 = arith.addf %80, %83 : vector<128x1xf32>
    %c0_12 = arith.constant 0 : index
    %85 = memref.load %arg7[%c0_12] : memref<2xf32, #tpu.memory_space<smem>>
    %c1_13 = arith.constant 1 : index
    %86 = memref.load %arg7[%c1_13] : memref<2xf32, #tpu.memory_space<smem>>
    %cst_14 = arith.constant 9.99999993E-9 : f32
    %87 = vector.broadcast %cst_14 : f32 to vector<128x1xf32>
    %88 = arith.cmpf ogt, %84, %87 : vector<128x1xf32>
    %cst_15 = arith.constant 1.000000e+00 : f32
    %89 = vector.broadcast %cst_15 : f32 to vector<128x1xf32>
    %90 = arith.select %88, %84, %89 : vector<128x1xi1>, vector<128x1xf32>
    %cst_16 = arith.constant 1.000000e+00 : f32
    %91 = vector.broadcast %cst_16 : f32 to vector<128x1xf32>
    %92 = arith.divf %91, %90 : vector<128x1xf32>
    %93 = arith.mulf %62, %92 : vector<128x1xf32>
    %cst_17 = arith.constant -3.000000e+04 : f32
    %cst_18 = arith.constant 3.000000e+04 : f32
    %94 = vector.broadcast %cst_17 : f32 to vector<128x1xf32>
    %95 = arith.maximumf %94, %93 : vector<128x1xf32>
    %96 = vector.broadcast %cst_18 : f32 to vector<128x1xf32>
    %97 = arith.minimumf %96, %95 : vector<128x1xf32>
    %98 = arith.mulf %73, %92 : vector<128x1xf32>
    %cst_19 = arith.constant -3.000000e+04 : f32
    %cst_20 = arith.constant 3.000000e+04 : f32
    %99 = vector.broadcast %cst_19 : f32 to vector<128x1xf32>
    %100 = arith.maximumf %99, %98 : vector<128x1xf32>
    %101 = vector.broadcast %cst_20 : f32 to vector<128x1xf32>
    %102 = arith.minimumf %101, %100 : vector<128x1xf32>
    %103 = math.floor %97 : vector<128x1xf32>
    %104 = arith.fptosi %103 : vector<128x1xf32> to vector<128x1xi32>
    %105 = math.floor %102 : vector<128x1xf32>
    %106 = arith.fptosi %105 : vector<128x1xf32> to vector<128x1xi32>
    %c16_i32 = arith.constant 16 : i32
    %107 = vector.broadcast %c16_i32 : i32 to vector<128x1xi32>
    %108 = arith.muli %106, %107 : vector<128x1xi32>
    %109 = arith.addi %108, %104 : vector<128x1xi32>
    %110 = arith.andi %9, %88 : vector<128x1xi1>
    %111 = vector.broadcast %85 : f32 to vector<128x1xf32>
    %112 = arith.cmpf ogt, %84, %111 : vector<128x1xf32>
    %113 = arith.andi %110, %112 : vector<128x1xi1>
    %114 = vector.broadcast %86 : f32 to vector<128x1xf32>
    %115 = arith.cmpf olt, %84, %114 : vector<128x1xf32>
    %116 = arith.andi %113, %115 : vector<128x1xi1>
    %c0_i32_21 = arith.constant 0 : i32
    %117 = vector.broadcast %c0_i32_21 : i32 to vector<128x1xi32>
    %118 = arith.cmpi sge, %104, %117 : vector<128x1xi32>
    %119 = arith.andi %116, %118 : vector<128x1xi1>
    %c16_i32_22 = arith.constant 16 : i32
    %120 = vector.broadcast %c16_i32_22 : i32 to vector<128x1xi32>
    %121 = arith.cmpi slt, %104, %120 : vector<128x1xi32>
    %122 = arith.andi %119, %121 : vector<128x1xi1>
    %c0_i32_23 = arith.constant 0 : i32
    %123 = vector.broadcast %c0_i32_23 : i32 to vector<128x1xi32>
    %124 = arith.cmpi sge, %106, %123 : vector<128x1xi32>
    %125 = arith.andi %122, %124 : vector<128x1xi1>
    %c16_i32_24 = arith.constant 16 : i32
    %126 = vector.broadcast %c16_i32_24 : i32 to vector<128x1xi32>
    %127 = arith.cmpi slt, %106, %126 : vector<128x1xi32>
    %128 = arith.andi %125, %127 : vector<128x1xi1>
    %c256_i32 = arith.constant 256 : i32
    %129 = arith.muli %arg0, %c256_i32 : i32
    %130 = tpu.iota {dimensions = array<i32: 1>} : vector<128x256xi32>
    %131 = vector.broadcast %129 : i32 to vector<128x256xi32>
    %132 = arith.addi %130, %131 : vector<128x256xi32>
    %133 = vector.broadcast %109 : vector<128x1xi32> to vector<128x256xi32>
    %134 = arith.cmpi eq, %132, %133 : vector<128x256xi32>
    %135 = vector.broadcast %128 : vector<128x1xi1> to vector<128x256xi1>
    %136 = arith.andi %134, %135 : vector<128x256xi1>
    %cst_25 = arith.constant 1.000000e+30 : f32
    %137 = vector.shape_cast %84 : vector<128x1xf32> to vector<128x1xf32>
    %138 = vector.broadcast %137 : vector<128x1xf32> to vector<128x256xf32>
    %139 = vector.broadcast %cst_25 : f32 to vector<128x256xf32>
    %140 = arith.select %136, %138, %139 : vector<128x256xi1>, vector<128x256xf32>
    %cst_26 = arith.constant dense<0x7F800000> : vector<256xf32>
    %141 = vector.multi_reduction <minimumf>, %140, %cst_26 [0] : vector<128x256xf32> to vector<256xf32>
    %142 = vector.shape_cast %141 : vector<256xf32> to vector<1x256xf32>
    %143 = tpu.iota {dimensions = array<i32: 0>} : vector<128x256xi32>
    %144 = vector.broadcast %142 : vector<1x256xf32> to vector<128x256xf32>
    %145 = arith.cmpf ole, %140, %144 : vector<128x256xf32>
    %146 = arith.andi %136, %145 : vector<128x256xi1>
    %c128_i32 = arith.constant 128 : i32
    %147 = vector.broadcast %c128_i32 : i32 to vector<128x256xi32>
    %148 = arith.select %146, %143, %147 : vector<128x256xi1>, vector<128x256xi32>
    %cst_27 = arith.constant dense<2147483647> : vector<256xi32>
    %149 = vector.multi_reduction <minsi>, %148, %cst_27 [0] : vector<128x256xi32> to vector<256xi32>
    %150 = vector.shape_cast %149 : vector<256xi32> to vector<1x256xi32>
    %151 = vector.broadcast %150 : vector<1x256xi32> to vector<128x256xi32>
    %152 = arith.cmpi eq, %143, %151 : vector<128x256xi32>
    %153 = arith.extui %152 : vector<128x256xi1> to vector<128x256xi32>
    %154 = arith.sitofp %153 : vector<128x256xi32> to vector<128x256xf32>
    %c0_28 = arith.constant 0 : index
    %c0_29 = arith.constant 0 : index
    %155 = vector.load %arg3[%c0_28, %c0_29] : memref<8x128xf32, #tpu.memory_space<vmem>>, vector<8x128xf32>
    %cst_30 = arith.constant dense<0.000000e+00> : vector<8x256xf32>
    %156 = tpu.matmul %155, %154, %cst_30 {dimension_numbers = #tpu.dot_dimension_numbers<[1], [0], [0], [1], [0, 0, 1, 1], [], []>} : vector<8x128xf32>, vector<128x256xf32>, vector<8x256xf32> -> vector<8x256xf32>
    %c0_31 = arith.constant 0 : index
    %c0_32 = arith.constant 0 : index
    %157 = vector.load %arg9[%c0_31, %c0_32] : memref<1x256xf32, #tpu.memory_space<vmem>>, vector<1x256xf32>
    %158 = arith.cmpf olt, %142, %157 : vector<1x256xf32>
    %c0_33 = arith.constant 0 : index
    %c0_34 = arith.constant 0 : index
    %159 = vector.load %arg9[%c0_33, %c0_34] : memref<1x256xf32, #tpu.memory_space<vmem>>, vector<1x256xf32>
    %160 = arith.select %158, %142, %159 : vector<1x256xi1>, vector<1x256xf32>
    %c0_35 = arith.constant 0 : index
    %c0_36 = arith.constant 0 : index
    %161 = vector.load %arg9[%c0_35, %c0_36] : memref<1x256xf32, #tpu.memory_space<vmem>>, vector<1x256xf32>
    tpu.vector_store %arg9[%c0_35, %c0_36], %160 {strides = array<i32>} : memref<1x256xf32, #tpu.memory_space<vmem>>, vector<1x256xf32>,
    %c128_i32_37 = arith.constant 128 : i32
    %162 = arith.muli %arg1, %c128_i32_37 : i32
    %163 = vector.broadcast %162 : i32 to vector<1x256xi32>
    %164 = arith.addi %150, %163 : vector<1x256xi32>
    %c0_38 = arith.constant 0 : index
    %c0_39 = arith.constant 0 : index
    %165 = vector.load %arg10[%c0_38, %c0_39] : memref<1x256xi32, #tpu.memory_space<vmem>>, vector<1x256xi32>
    %166 = arith.select %158, %164, %165 : vector<1x256xi1>, vector<1x256xi32>
    %c0_40 = arith.constant 0 : index
    %c0_41 = arith.constant 0 : index
    %167 = vector.load %arg10[%c0_40, %c0_41] : memref<1x256xi32, #tpu.memory_space<vmem>>, vector<1x256xi32>
    tpu.vector_store %arg10[%c0_40, %c0_41], %166 {strides = array<i32>} : memref<1x256xi32, #tpu.memory_space<vmem>>, vector<1x256xi32>,
    %c0_42 = arith.constant 0 : index
    %c0_43 = arith.constant 0 : index
    %168 = vector.load %arg8[%c0_42, %c0_43] : memref<8x256xf32, #tpu.memory_space<vmem>>, vector<8x256xf32>
    %169 = vector.shape_cast %158 : vector<1x256xi1> to vector<1x256xi1>
    %170 = vector.broadcast %169 : vector<1x256xi1> to vector<8x256xi1>
    %171 = arith.select %170, %156, %168 : vector<8x256xi1>, vector<8x256xf32>
    %c0_44 = arith.constant 0 : index
    %c0_45 = arith.constant 0 : index
    %172 = vector.load %arg8[%c0_44, %c0_45] : memref<8x256xf32, #tpu.memory_space<vmem>>, vector<8x256xf32>
    tpu.vector_store %arg8[%c0_44, %c0_45], %171 {strides = array<i32>} : memref<8x256xf32, #tpu.memory_space<vmem>>, vector<8x256xf32>,
    %c0_i32_46 = arith.constant 0 : i32
    %173 = arith.cmpi eq, %arg1, %c0_i32_46 : i32
    %174 = arith.extui %173 : i1 to i32
    %c0_i32_47 = arith.constant 0 : i32
    %175 = arith.cmpi ne, %174, %c0_i32_47 : i32
    scf.if %175 {
      %c0_48 = arith.constant 0 : index
      %c0_49 = arith.constant 0 : index
      %176 = vector.load %arg9[%c0_48, %c0_49] : memref<1x256xf32, #tpu.memory_space<vmem>>, vector<1x256xf32>
      %cst_50 = arith.constant 1.000000e+29 : f32
      %177 = vector.broadcast %cst_50 : f32 to vector<1x256xf32>
      %178 = arith.cmpf olt, %176, %177 : vector<1x256xf32>
      %c0_51 = arith.constant 0 : index
      %c0_52 = arith.constant 0 : index
      %179 = vector.load %arg8[%c0_51, %c0_52] : memref<8x256xf32, #tpu.memory_space<vmem>>, vector<8x256xf32>
      %c0_53 = arith.constant 0 : index
      %c0_54 = arith.constant 0 : index
      %180 = vector.load %arg4[%c0_53, %c0_54] : memref<8x1xf32, #tpu.memory_space<vmem>>, vector<8x1xf32>
      %181 = vector.shape_cast %178 : vector<1x256xi1> to vector<1x256xi1>
      %182 = vector.broadcast %181 : vector<1x256xi1> to vector<8x256xi1>
      %183 = vector.shape_cast %180 : vector<8x1xf32> to vector<8x1xf32>
      %184 = vector.broadcast %183 : vector<8x1xf32> to vector<8x256xf32>
      %185 = arith.select %182, %179, %184 : vector<8x256xi1>, vector<8x256xf32>
      %c0_55 = arith.constant 0 : index
      %c0_56 = arith.constant 0 : index
      %186 = vector.load %arg8[%c0_55, %c0_56] : memref<8x256xf32, #tpu.memory_space<vmem>>, vector<8x256xf32>
      tpu.vector_store %arg8[%c0_55, %c0_56], %185 {strides = array<i32>} : memref<8x256xf32, #tpu.memory_space<vmem>>, vector<8x256xf32>,
      %c0_57 = arith.constant 0 : index
      %c0_58 = arith.constant 0 : index
      %187 = vector.load %arg9[%c0_57, %c0_58] : memref<1x256xf32, #tpu.memory_space<vmem>>, vector<1x256xf32>
      %cst_59 = arith.constant 0.000000e+00 : f32
      %188 = vector.broadcast %cst_59 : f32 to vector<1x256xf32>
      %189 = arith.select %178, %187, %188 : vector<1x256xi1>, vector<1x256xf32>
      %c0_60 = arith.constant 0 : index
      %c0_61 = arith.constant 0 : index
      %190 = vector.load %arg9[%c0_60, %c0_61] : memref<1x256xf32, #tpu.memory_space<vmem>>, vector<1x256xf32>
      tpu.vector_store %arg9[%c0_60, %c0_61], %189 {strides = array<i32>} : memref<1x256xf32, #tpu.memory_space<vmem>>, vector<1x256xf32>,
    } else {
    }
    return
  }
  func.func @transform_0(%arg0: i32, %arg1: i32) -> (i32, i32) {
    %c0_i32 = arith.constant 0 : i32
    %c0_i32_0 = arith.constant 0 : i32
    return %arg1, %c0_i32 : i32, i32
  }
  func.func @transform_1(%arg0: i32, %arg1: i32) -> (i32, i32) {
    %c0_i32 = arith.constant 0 : i32
    %c0_i32_0 = arith.constant 0 : i32
    return %c0_i32, %arg1 : i32, i32
  }
  func.func @transform_2(%arg0: i32, %arg1: i32) -> (i32, i32) {
    %c0_i32 = arith.constant 0 : i32
    %c0_i32_0 = arith.constant 0 : i32
    %c0_i32_1 = arith.constant 0 : i32
    return %c0_i32, %c0_i32_0 : i32, i32
  }
  func.func @transform_3(%arg0: i32, %arg1: i32) -> i32 {
    %c0_i32 = arith.constant 0 : i32
    %c0_i32_0 = arith.constant 0 : i32
    return %c0_i32 : i32
  }
  func.func @transform_4(%arg0: i32, %arg1: i32) -> i32 {
    %c0_i32 = arith.constant 0 : i32
    %c0_i32_0 = arith.constant 0 : i32
    return %c0_i32 : i32
  }
  func.func @transform_5(%arg0: i32, %arg1: i32) -> i32 {
    %c0_i32 = arith.constant 0 : i32
    %c0_i32_0 = arith.constant 0 : i32
    return %c0_i32 : i32
  }
  func.func @transform_6(%arg0: i32, %arg1: i32) -> (i32, i32) {
    %c0_i32 = arith.constant 0 : i32
    %c0_i32_0 = arith.constant 0 : i32
    return %c0_i32, %arg0 : i32, i32
  }
  func.func @transform_7(%arg0: i32, %arg1: i32) -> (i32, i32) {
    %c0_i32 = arith.constant 0 : i32
    %c0_i32_0 = arith.constant 0 : i32
    return %c0_i32, %arg0 : i32, i32
  }
  func.func @transform_8(%arg0: i32, %arg1: i32) -> (i32, i32) {
    %c0_i32 = arith.constant 0 : i32
    %c0_i32_0 = arith.constant 0 : i32
    return %c0_i32, %arg0 : i32, i32
  }
}

</mosaic_0001>

<llo_original>
// kernel: tpu_custom_call.1
$region0: #{tpu_custom_call.1}
  #allocation0 [shape = 'u32[]', space=smem, size = 0x4, offset = 0x4, fixed_abs, tag = 'smem constant byte address 0x4 - core index']
  #allocation1 [shape = 'u32[72,128]{1,0:T(1,128)}', space=vmem, size = 0x9000, scoped, tag = 'internal scratch']
  %s0 = inlined_call_operand.vmem [shape: f32[128,4], index: 0, kind: input, shape index: {}]
  %s1 = inlined_call_operand.vmem [shape: f32[8,128], index: 1, kind: input, shape index: {}]
  %s2 = inlined_call_operand.vmem [shape: f32[8,1], index: 2, kind: input, shape index: {}]
  %s3 = inlined_call_operand.vmem [shape: f32[16], index: 3, kind: input, shape index: {}]
  %s4 = inlined_call_operand.vmem [shape: f32[9], index: 4, kind: input, shape index: {}]
  %s5 = inlined_call_operand.vmem [shape: f32[2], index: 5, kind: input, shape index: {}]
  %s6 = inlined_call_operand.hbm [shape: f32[8,256], index: 6, kind: output, shape index: {0}]
  %s7 = inlined_call_operand.hbm [shape: f32[1,256], index: 7, kind: output, shape index: {1}]
  %s8 = inlined_call_operand.hbm [shape: s32[1,256], index: 8, kind: output, shape index: {2}]
  %9 = xla_tuple %s6, %s7, %s8
  %s10 = sld [smem:[#allocation0]]
  $region70: #{tpu_custom_call.1} parent=0
    _
  %s12 = ssub.s32 1, %s10
  %s13 = scalar_select 0, %s12, %s10
  $region1: #{tpu_custom_call.1} parent=0
    #allocation2 [shape = 'u8[512]{0}', space=smem, size = 0x200, scoped, tag = 'input window, operand 3, single buffered']
    #allocation3 [shape = 's32[1]{0}', space=sflag, size = 0x4, scoped, tag = 'scoped memory for tpu_custom_call.1']
    #allocation4 [shape = 's32[1]{0}', space=sflag, size = 0x4, scoped, tag = 'scoped memory for tpu_custom_call.1']
    #allocation5 [shape = 'u8[512]{0}', space=smem, size = 0x200, scoped, tag = 'input window, operand 4, single buffered']
    #allocation6 [shape = 's32[1]{0}', space=sflag, size = 0x4, scoped, tag = 'scoped memory for tpu_custom_call.1']
    #allocation7 [shape = 'u8[512]{0}', space=smem, size = 0x200, scoped, tag = 'input window, operand 5, single buffered']
    #allocation8 [shape = 'u8[8192]{0}', space=vmem, size = 0x2000, scoped, tag = 'output window, operand 0, single buffered']
    #allocation9 [shape = 'u8[1024]{0}', space=vmem, size = 0x400, scoped, tag = 'output window, operand 1, single buffered']
    #allocation10 [shape = 's32[1]{0}', space=sflag, size = 0x4, scoped, tag = 'scoped memory for tpu_custom_call.1']
    #allocation11 [shape = 'u8[1024]{0}', space=vmem, size = 0x400, scoped, tag = 'output window, operand 2, single buffered']
    %14 = vsyncpa [#allocation4], 0
    %15 = vsyncpa [#allocation6], 0
    %16 = vsyncpa [#allocation3], 0
    %17 = vsyncpa [#allocation10], 0
    // Predicated region
    $region2: #{tpu_custom_call.1} parent=1 // pred_check
      _
    $region3: #{tpu_custom_call.1} parent=1 // pred_check_branch
      %19 = sbr.rel (0) target = $region5
    $region4: #{tpu_custom_call.1} parent=1 // pred_region
      _
    $region5: #{tpu_custom_call.1} parent=1 // pred_fallthru
      _
    // Predicated region
    $region6: #{tpu_custom_call.1} parent=1 // pred_check
      _
    $region7: #{tpu_custom_call.1} parent=1 // pred_check_branch
      %21 = sbr.rel (0) target = $region9
    $region8: #{tpu_custom_call.1} parent=1 // pred_region
      _
    $region9: #{tpu_custom_call.1} parent=1 // pred_fallthru
      _
    // Predicated region
    $region10: #{tpu_custom_call.1} parent=1 // pred_check
      _
    $region11: #{tpu_custom_call.1} parent=1 // pred_check_branch
      %23 = sbr.rel (0) target = $region13
    $region12: #{tpu_custom_call.1} parent=1 // pred_region
      _
    $region13: #{tpu_custom_call.1} parent=1 // pred_fallthru
      _
    // Predicated region
    $region14: #{tpu_custom_call.1} parent=1 // pred_check
      _
    $region15: #{tpu_custom_call.1} parent=1 // pred_check_branch
      %25 = sbr.rel (0) target = $region17
    $region16: #{tpu_custom_call.1} parent=1 // pred_region
      %27 = vsyncadd [#allocation4], 0
      %s29 = sshll.u32 %s3, 4
      %s30 = int_to_ptr.vmem [resolvable:$true] %s29
      %32 = dma.vmem_to_smem %s30, 16, [#allocation2], [#allocation4]
    $region17: #{tpu_custom_call.1} parent=1 // pred_fallthru
      _
    // Predicated region
    $region18: #{tpu_custom_call.1} parent=1 // pred_check
      _
    $region19: #{tpu_custom_call.1} parent=1 // pred_check_branch
      %34 = sbr.rel (0) target = $region21
    $region20: #{tpu_custom_call.1} parent=1 // pred_region
      %36 = vsyncadd [#allocation6], 0
      %s38 = sshll.u32 %s4, 4
      %s39 = int_to_ptr.vmem [resolvable:$true] %s38
      %41 = dma.vmem_to_smem %s39, 16, [#allocation5], [#allocation6]
    $region21: #{tpu_custom_call.1} parent=1 // pred_fallthru
      _
    // Predicated region
    $region22: #{tpu_custom_call.1} parent=1 // pred_check
      _
    $region23: #{tpu_custom_call.1} parent=1 // pred_check_branch
      %43 = sbr.rel (0) target = $region25
    $region24: #{tpu_custom_call.1} parent=1 // pred_region
      %45 = vsyncadd [#allocation6], 0
      %s47 = sshll.u32 %s5, 4
      %s48 = int_to_ptr.vmem [resolvable:$true] %s47
      %50 = dma.vmem_to_smem %s48, 16, [#allocation7], [#allocation6]
    $region25: #{tpu_custom_call.1} parent=1 // pred_fallthru
      _
    // Predicated region
    $region26: #{tpu_custom_call.1} parent=1 // pred_check
      _
    $region27: #{tpu_custom_call.1} parent=1 // pred_check_branch
      %52 = sbr.rel (0) target = $region29
    $region28: #{tpu_custom_call.1} parent=1 // pred_region
      %54 = dma.done [#allocation4], 16
    $region29: #{tpu_custom_call.1} parent=1 // pred_fallthru
      _
    // Predicated region
    $region30: #{tpu_custom_call.1} parent=1 // pred_check
      _
    $region31: #{tpu_custom_call.1} parent=1 // pred_check_branch
      %56 = sbr.rel (0) target = $region33
    $region32: #{tpu_custom_call.1} parent=1 // pred_region
      %58 = dma.done [#allocation6], 16
    $region33: #{tpu_custom_call.1} parent=1 // pred_fallthru
      _
    // Predicated region
    $region34: #{tpu_custom_call.1} parent=1 // pred_check
      _
    $region35: #{tpu_custom_call.1} parent=1 // pred_check_branch
      %60 = sbr.rel (0) target = $region37
    $region36: #{tpu_custom_call.1} parent=1 // pred_region
      %62 = dma.done [#allocation6], 16
    $region37: #{tpu_custom_call.1} parent=1 // pred_fallthru
      _
    %63 = sfence
    %p64 = scmp.eq.s32.totalorder 0, 0
    // Predicated region
    $region38: #{tpu_custom_call.1} parent=1 // pred_check
      %p65 = pneg %p64
    $region39: #{tpu_custom_call.1} parent=1 // pred_check_branch
      %67 = sbr.rel (%p65) target = $region41
    $region40: #{tpu_custom_call.1} parent=1 // pred_region
      %v68 = vlaneseq
      %vm69 = vcmp.ge.s32.totalorder %v68, 0
      %vm70 = vcmp.lt.s32.totalorder %v68, 256
      %vm71 = vmand %vm69, %vm70
      %72 = vst.msk [vmem:[#allocation9] sm:$0x3] %vm71, 1e+30
      %73 = vst.msk [vmem:[#allocation11] sm:$0x3] %vm71, 4294967295
      %74 = vst [vmem:[#allocation8] sm:$0xff] 0.0
      %75 = vst [vmem:[#allocation8 + $0x8] sm:$0xff] 0.0
    $region41: #{tpu_custom_call.1} parent=1 // pred_fallthru
      _
    %v76 = vld [vmem:[%s0] sm:$0xff]
    %v77 = vld [vmem:[%s0 + $0x8] sm:$0xff]
    %v78 = vld [vmem:[%s0 + $0x10] sm:$0xff]
    %v79 = vld [vmem:[%s0 + $0x18] sm:$0xff]
    %v80 = vld [vmem:[%s0 + $0x20] sm:$0xff]
    %v81 = vld [vmem:[%s0 + $0x28] sm:$0xff]
    %v82 = vld [vmem:[%s0 + $0x30] sm:$0xff]
    %v83 = vld [vmem:[%s0 + $0x38] sm:$0xff]
    %v84 = vld [vmem:[%s0 + $0x40] sm:$0xff]
    %v85 = vld [vmem:[%s0 + $0x48] sm:$0xff]
    %v86 = vld [vmem:[%s0 + $0x50] sm:$0xff]
    %v87 = vld [vmem:[%s0 + $0x58] sm:$0xff]
    %v88 = vld [vmem:[%s0 + $0x60] sm:$0xff]
    %v89 = vld [vmem:[%s0 + $0x68] sm:$0xff]
    %v90 = vld [vmem:[%s0 + $0x70] sm:$0xff]
    %v91 = vld [vmem:[%s0 + $0x78] sm:$0xff]
    %vm92 = vcmp.gt.f32.partialorder %v76, 0.5
    %vm93 = vcmp.gt.f32.partialorder %v77, 0.5
    %vm94 = vcmp.gt.f32.partialorder %v78, 0.5
    %vm95 = vcmp.gt.f32.partialorder %v79, 0.5
    %vm96 = vcmp.gt.f32.partialorder %v80, 0.5
    %vm97 = vcmp.gt.f32.partialorder %v81, 0.5
    %vm98 = vcmp.gt.f32.partialorder %v82, 0.5
    %vm99 = vcmp.gt.f32.partialorder %v83, 0.5
    %vm100 = vcmp.gt.f32.partialorder %v84, 0.5
    %vm101 = vcmp.gt.f32.partialorder %v85, 0.5
    %vm102 = vcmp.gt.f32.partialorder %v86, 0.5
    %vm103 = vcmp.gt.f32.partialorder %v87, 0.5
    %vm104 = vcmp.gt.f32.partialorder %v88, 0.5
    %vm105 = vcmp.gt.f32.partialorder %v89, 0.5
    %vm106 = vcmp.gt.f32.partialorder %v90, 0.5
    %vm107 = vcmp.gt.f32.partialorder %v91, 0.5
    %s108 = sld [smem:[#allocation2]]
    %v109 = vstv %s108
    %v110 = vmul.f32 %v109, %v76
    %v111 = vmul.f32 %v109, %v77
    %v112 = vmul.f32 %v109, %v78
    %v113 = vmul.f32 %v109, %v79
    %v114 = vmul.f32 %v109, %v80
    %v115 = vmul.f32 %v109, %v81
    %v116 = vmul.f32 %v109, %v82
    %v117 = vmul.f32 %v109, %v83
    %v118 = vmul.f32 %v109, %v84
    %v119 = vmul.f32 %v109, %v85
    %v120 = vmul.f32 %v109, %v86
    %v121 = vmul.f32 %v109, %v87
    %v122 = vmul.f32 %v109, %v88
    %v123 = vmul.f32 %v109, %v89
    %v124 = vmul.f32 %v109, %v90
    %v125 = vmul.f32 %v109, %v91
    %s126 = sld [smem:[#allocation2 + $0x1]]
    %v127 = vstv %s126
    %v128 = vmul.f32 %v127, %v76
    %v129 = vmul.f32 %v127, %v77
    %v130 = vmul.f32 %v127, %v78
    %v131 = vmul.f32 %v127, %v79
    %v132 = vmul.f32 %v127, %v80
    %v133 = vmul.f32 %v127, %v81
    %v134 = vmul.f32 %v127, %v82
    %v135 = vmul.f32 %v127, %v83
    %v136 = vmul.f32 %v127, %v84
    %v137 = vmul.f32 %v127, %v85
    %v138 = vmul.f32 %v127, %v86
    %v139 = vmul.f32 %v127, %v87
    %v140 = vmul.f32 %v127, %v88
    %v141 = vmul.f32 %v127, %v89
    %v142 = vmul.f32 %v127, %v90
    %v143 = vmul.f32 %v127, %v91
    %160 = vrot.lane.b32.xlu0 %v128, 127
    %v161 = vpop.permute.xlu0 %160
    %162 = vrot.lane.b32.xlu0 %v129, 127
    %v163 = vpop.permute.xlu0 %162
    %164 = vrot.lane.b32.xlu0 %v130, 127
    %v165 = vpop.permute.xlu0 %164
    %166 = vrot.lane.b32.xlu0 %v131, 127
    %v167 = vpop.permute.xlu0 %166
    %168 = vrot.lane.b32.xlu0 %v132, 127
    %v169 = vpop.permute.xlu0 %168
    %170 = vrot.lane.b32.xlu0 %v133, 127
    %v171 = vpop.permute.xlu0 %170
    %172 = vrot.lane.b32.xlu0 %v134, 127
    %v173 = vpop.permute.xlu0 %172
    %174 = vrot.lane.b32.xlu0 %v135, 127
    %v175 = vpop.permute.xlu0 %174
    %176 = vrot.lane.b32.xlu0 %v136, 127
    %v177 = vpop.permute.xlu0 %176
    %178 = vrot.lane.b32.xlu0 %v137, 127
    %v179 = vpop.permute.xlu0 %178
    %180 = vrot.lane.b32.xlu0 %v138, 127
    %v181 = vpop.permute.xlu0 %180
    %182 = vrot.lane.b32.xlu0 %v139, 127
    %v183 = vpop.permute.xlu0 %182
    %184 = vrot.lane.b32.xlu0 %v140, 127
    %v185 = vpop.permute.xlu0 %184
    %186 = vrot.lane.b32.xlu0 %v141, 127
    %v187 = vpop.permute.xlu0 %186
    %188 = vrot.lane.b32.xlu0 %v142, 127
    %v189 = vpop.permute.xlu0 %188
    %190 = vrot.lane.b32.xlu0 %v143, 127
    %v191 = vpop.permute.xlu0 %190
    %v208 = vadd.f32 %v110, %v161
    %v209 = vadd.f32 %v111, %v163
    %v210 = vadd.f32 %v112, %v165
    %v211 = vadd.f32 %v113, %v167
    %v212 = vadd.f32 %v114, %v169
    %v213 = vadd.f32 %v115, %v171
    %v214 = vadd.f32 %v116, %v173
    %v215 = vadd.f32 %v117, %v175
    %v216 = vadd.f32 %v118, %v177
    %v217 = vadd.f32 %v119, %v179
    %v218 = vadd.f32 %v120, %v181
    %v219 = vadd.f32 %v121, %v183
    %v220 = vadd.f32 %v122, %v185
    %v221 = vadd.f32 %v123, %v187
    %v222 = vadd.f32 %v124, %v189
    %v223 = vadd.f32 %v125, %v191
    %s224 = sld [smem:[#allocation2 + $0x2]]
    %v225 = vstv %s224
    %v226 = vmul.f32 %v225, %v76
    %v227 = vmul.f32 %v225, %v77
    %v228 = vmul.f32 %v225, %v78
    %v229 = vmul.f32 %v225, %v79
    %v230 = vmul.f32 %v225, %v80
    %v231 = vmul.f32 %v225, %v81
    %v232 = vmul.f32 %v225, %v82
    %v233 = vmul.f32 %v225, %v83
    %v234 = vmul.f32 %v225, %v84
    %v235 = vmul.f32 %v225, %v85
    %v236 = vmul.f32 %v225, %v86
    %v237 = vmul.f32 %v225, %v87
    %v238 = vmul.f32 %v225, %v88
    %v239 = vmul.f32 %v225, %v89
    %v240 = vmul.f32 %v225, %v90
    %v241 = vmul.f32 %v225, %v91
    %258 = vrot.lane.b32.xlu0 %v226, 126
    %v259 = vpop.permute.xlu0 %258
    %260 = vrot.lane.b32.xlu0 %v227, 126
    %v261 = vpop.permute.xlu0 %260
    %262 = vrot.lane.b32.xlu0 %v228, 126
    %v263 = vpop.permute.xlu0 %262
    %264 = vrot.lane.b32.xlu0 %v229, 126
    %v265 = vpop.permute.xlu0 %264
    %266 = vrot.lane.b32.xlu0 %v230, 126
    %v267 = vpop.permute.xlu0 %266
    %268 = vrot.lane.b32.xlu0 %v231, 126
    %v269 = vpop.permute.xlu0 %268
    %270 = vrot.lane.b32.xlu0 %v232, 126
    %v271 = vpop.permute.xlu0 %270
    %272 = vrot.lane.b32.xlu0 %v233, 126
    %v273 = vpop.permute.xlu0 %272
    %274 = vrot.lane.b32.xlu0 %v234, 126
    %v275 = vpop.permute.xlu0 %274
    %276 = vrot.lane.b32.xlu0 %v235, 126
    %v277 = vpop.permute.xlu0 %276
    %278 = vrot.lane.b32.xlu0 %v236, 126
    %v279 = vpop.permute.xlu0 %278
    %280 = vrot.lane.b32.xlu0 %v237, 126
    %v281 = vpop.permute.xlu0 %280
    %282 = vrot.lane.b32.xlu0 %v238, 126
    %v283 = vpop.permute.xlu0 %282
    %284 = vrot.lane.b32.xlu0 %v239, 126
    %v285 = vpop.permute.xlu0 %284
    %286 = vrot.lane.b32.xlu0 %v240, 126
    %v287 = vpop.permute.xlu0 %286
    %288 = vrot.lane.b32.xlu0 %v241, 126
    %v289 = vpop.permute.xlu0 %288
    %v306 = vadd.f32 %v208, %v259
    %v307 = vadd.f32 %v209, %v261
    %v308 = vadd.f32 %v210, %v263
    %v309 = vadd.f32 %v211, %v265
    %v310 = vadd.f32 %v212, %v267
    %v311 = vadd.f32 %v213, %v269
    %v312 = vadd.f32 %v214, %v271
    %v313 = vadd.f32 %v215, %v273
    %v314 = vadd.f32 %v216, %v275
    %v315 = vadd.f32 %v217, %v277
    %v316 = vadd.f32 %v218, %v279
    %v317 = vadd.f32 %v219, %v281
    %v318 = vadd.f32 %v220, %v283
    %v319 = vadd.f32 %v221, %v285
    %v320 = vadd.f32 %v222, %v287
    %v321 = vadd.f32 %v223, %v289
    %s322 = sld [smem:[#allocation2 + $0x3]]
    %v323 = vstv %s322
    %v324 = vadd.f32 %v306, %v323
    %v325 = vadd.f32 %v307, %v323
    %v326 = vadd.f32 %v308, %v323
    %v327 = vadd.f32 %v309, %v323
    %v328 = vadd.f32 %v310, %v323
    %v329 = vadd.f32 %v311, %v323
    %v330 = vadd.f32 %v312, %v323
    %v331 = vadd.f32 %v313, %v323
    %v332 = vadd.f32 %v314, %v323
    %v333 = vadd.f32 %v315, %v323
    %v334 = vadd.f32 %v316, %v323
    %v335 = vadd.f32 %v317, %v323
    %v336 = vadd.f32 %v318, %v323
    %v337 = vadd.f32 %v319, %v323
    %v338 = vadd.f32 %v320, %v323
    %v339 = vadd.f32 %v321, %v323
    %s340 = sld [smem:[#allocation2 + $0x4]]
    %v341 = vstv %s340
    %v342 = vmul.f32 %v341, %v76
    %v343 = vmul.f32 %v341, %v77
    %v344 = vmul.f32 %v341, %v78
    %v345 = vmul.f32 %v341, %v79
    %v346 = vmul.f32 %v341, %v80
    %v347 = vmul.f32 %v341, %v81
    %v348 = vmul.f32 %v341, %v82
    %v349 = vmul.f32 %v341, %v83
    %v350 = vmul.f32 %v341, %v84
    %v351 = vmul.f32 %v341, %v85
    %v352 = vmul.f32 %v341, %v86
    %v353 = vmul.f32 %v341, %v87
    %v354 = vmul.f32 %v341, %v88
    %v355 = vmul.f32 %v341, %v89
    %v356 = vmul.f32 %v341, %v90
    %v357 = vmul.f32 %v341, %v91
    %s358 = sld [smem:[#allocation2 + $0x5]]
    %v359 = vstv %s358
    %v360 = vmul.f32 %v359, %v76
    %v361 = vmul.f32 %v359, %v77
    %v362 = vmul.f32 %v359, %v78
    %v363 = vmul.f32 %v359, %v79
    %v364 = vmul.f32 %v359, %v80
    %v365 = vmul.f32 %v359, %v81
    %v366 = vmul.f32 %v359, %v82
    %v367 = vmul.f32 %v359, %v83
    %v368 = vmul.f32 %v359, %v84
    %v369 = vmul.f32 %v359, %v85
    %v370 = vmul.f32 %v359, %v86
    %v371 = vmul.f32 %v359, %v87
    %v372 = vmul.f32 %v359, %v88
    %v373 = vmul.f32 %v359, %v89
    %v374 = vmul.f32 %v359, %v90
    %v375 = vmul.f32 %v359, %v91
    %392 = vrot.lane.b32.xlu0 %v360, 127
    %v393 = vpop.permute.xlu0 %392
    %394 = vrot.lane.b32.xlu0 %v361, 127
    %v395 = vpop.permute.xlu0 %394
    %396 = vrot.lane.b32.xlu0 %v362, 127
    %v397 = vpop.permute.xlu0 %396
    %398 = vrot.lane.b32.xlu0 %v363, 127
    %v399 = vpop.permute.xlu0 %398
    %400 = vrot.lane.b32.xlu0 %v364, 127
    %v401 = vpop.permute.xlu0 %400
    %402 = vrot.lane.b32.xlu0 %v365, 127
    %v403 = vpop.permute.xlu0 %402
    %404 = vrot.lane.b32.xlu0 %v366, 127
    %v405 = vpop.permute.xlu0 %404
    %406 = vrot.lane.b32.xlu0 %v367, 127
    %v407 = vpop.permute.xlu0 %406
    %408 = vrot.lane.b32.xlu0 %v368, 127
    %v409 = vpop.permute.xlu0 %408
    %410 = vrot.lane.b32.xlu0 %v369, 127
    %v411 = vpop.permute.xlu0 %410
    %412 = vrot.lane.b32.xlu0 %v370, 127
    %v413 = vpop.permute.xlu0 %412
    %414 = vrot.lane.b32.xlu0 %v371, 127
    %v415 = vpop.permute.xlu0 %414
    %416 = vrot.lane.b32.xlu0 %v372, 127
    %v417 = vpop.permute.xlu0 %416
    %418 = vrot.lane.b32.xlu0 %v373, 127
    %v419 = vpop.permute.xlu0 %418
    %420 = vrot.lane.b32.xlu0 %v374, 127
    %v421 = vpop.permute.xlu0 %420
    %422 = vrot.lane.b32.xlu0 %v375, 127
    %v423 = vpop.permute.xlu0 %422
    %v440 = vadd.f32 %v342, %v393
    %v441 = vadd.f32 %v343, %v395
    %v442 = vadd.f32 %v344, %v397
    %v443 = vadd.f32 %v345, %v399
    %v444 = vadd.f32 %v346, %v401
    %v445 = vadd.f32 %v347, %v403
    %v446 = vadd.f32 %v348, %v405
    %v447 = vadd.f32 %v349, %v407
    %v448 = vadd.f32 %v350, %v409
    %v449 = vadd.f32 %v351, %v411
    %v450 = vadd.f32 %v352, %v413
    %v451 = vadd.f32 %v353, %v415
    %v452 = vadd.f32 %v354, %v417
    %v453 = vadd.f32 %v355, %v419
    %v454 = vadd.f32 %v356, %v421
    %v455 = vadd.f32 %v357, %v423
    %s456 = sld [smem:[#allocation2 + $0x6]]
    %v457 = vstv %s456
    %v458 = vmul.f32 %v457, %v76
    %v459 = vmul.f32 %v457, %v77
    %v460 = vmul.f32 %v457, %v78
    %v461 = vmul.f32 %v457, %v79
    %v462 = vmul.f32 %v457, %v80
    %v463 = vmul.f32 %v457, %v81
    %v464 = vmul.f32 %v457, %v82
    %v465 = vmul.f32 %v457, %v83
    %v466 = vmul.f32 %v457, %v84
    %v467 = vmul.f32 %v457, %v85
    %v468 = vmul.f32 %v457, %v86
    %v469 = vmul.f32 %v457, %v87
    %v470 = vmul.f32 %v457, %v88
    %v471 = vmul.f32 %v457, %v89
    %v472 = vmul.f32 %v457, %v90
    %v473 = vmul.f32 %v457, %v91
    %490 = vrot.lane.b32.xlu0 %v458, 126
    %v491 = vpop.permute.xlu0 %490
    %492 = vrot.lane.b32.xlu0 %v459, 126
    %v493 = vpop.permute.xlu0 %492
    %494 = vrot.lane.b32.xlu0 %v460, 126
    %v495 = vpop.permute.xlu0 %494
    %496 = vrot.lane.b32.xlu0 %v461, 126
    %v497 = vpop.permute.xlu0 %496
    %498 = vrot.lane.b32.xlu0 %v462, 126
    %v499 = vpop.permute.xlu0 %498
    %500 = vrot.lane.b32.xlu0 %v463, 126
    %v501 = vpop.permute.xlu0 %500
    %502 = vrot.lane.b32.xlu0 %v464, 126
    %v503 = vpop.permute.xlu0 %502
    %504 = vrot.lane.b32.xlu0 %v465, 126
    %v505 = vpop.permute.xlu0 %504
    %506 = vrot.lane.b32.xlu0 %v466, 126
    %v507 = vpop.permute.xlu0 %506
    %508 = vrot.lane.b32.xlu0 %v467, 126
    %v509 = vpop.permute.xlu0 %508
    %510 = vrot.lane.b32.xlu0 %v468, 126
    %v511 = vpop.permute.xlu0 %510
    %512 = vrot.lane.b32.xlu0 %v469, 126
    %v513 = vpop.permute.xlu0 %512
    %514 = vrot.lane.b32.xlu0 %v470, 126
    %v515 = vpop.permute.xlu0 %514
    %516 = vrot.lane.b32.xlu0 %v471, 126
    %v517 = vpop.permute.xlu0 %516
    %518 = vrot.lane.b32.xlu0 %v472, 126
    %v519 = vpop.permute.xlu0 %518
    %520 = vrot.lane.b32.xlu0 %v473, 126
    %v521 = vpop.permute.xlu0 %520
    %v538 = vadd.f32 %v440, %v491
    %v539 = vadd.f32 %v441, %v493
    %v540 = vadd.f32 %v442, %v495
    %v541 = vadd.f32 %v443, %v497
    %v542 = vadd.f32 %v444, %v499
    %v543 = vadd.f32 %v445, %v501
    %v544 = vadd.f32 %v446, %v503
    %v545 = vadd.f32 %v447, %v505
    %v546 = vadd.f32 %v448, %v507
    %v547 = vadd.f32 %v449, %v509
    %v548 = vadd.f32 %v450, %v511
    %v549 = vadd.f32 %v451, %v513
    %v550 = vadd.f32 %v452, %v515
    %v551 = vadd.f32 %v453, %v517
    %v552 = vadd.f32 %v454, %v519
    %v553 = vadd.f32 %v455, %v521
    %s554 = sld [smem:[#allocation2 + $0x7]]
    %v555 = vstv %s554
    %v556 = vadd.f32 %v538, %v555
    %v557 = vadd.f32 %v539, %v555
    %v558 = vadd.f32 %v540, %v555
    %v559 = vadd.f32 %v541, %v555
    %v560 = vadd.f32 %v542, %v555
    %v561 = vadd.f32 %v543, %v555
    %v562 = vadd.f32 %v544, %v555
    %v563 = vadd.f32 %v545, %v555
    %v564 = vadd.f32 %v546, %v555
    %v565 = vadd.f32 %v547, %v555
    %v566 = vadd.f32 %v548, %v555
    %v567 = vadd.f32 %v549, %v555
    %v568 = vadd.f32 %v550, %v555
    %v569 = vadd.f32 %v551, %v555
    %v570 = vadd.f32 %v552, %v555
    %v571 = vadd.f32 %v553, %v555
    %s572 = sld [smem:[#allocation2 + $0x8]]
    %v573 = vstv %s572
    %v574 = vmul.f32 %v573, %v76
    %v575 = vmul.f32 %v573, %v77
    %v576 = vmul.f32 %v573, %v78
    %v577 = vmul.f32 %v573, %v79
    %v578 = vmul.f32 %v573, %v80
    %v579 = vmul.f32 %v573, %v81
    %v580 = vmul.f32 %v573, %v82
    %v581 = vmul.f32 %v573, %v83
    %v582 = vmul.f32 %v573, %v84
    %v583 = vmul.f32 %v573, %v85
    %v584 = vmul.f32 %v573, %v86
    %v585 = vmul.f32 %v573, %v87
    %v586 = vmul.f32 %v573, %v88
    %v587 = vmul.f32 %v573, %v89
    %v588 = vmul.f32 %v573, %v90
    %v589 = vmul.f32 %v573, %v91
    %s590 = sld [smem:[#allocation2 + $0x9]]
    %v591 = vstv %s590
    %v592 = vmul.f32 %v591, %v76
    %v593 = vmul.f32 %v591, %v77
    %v594 = vmul.f32 %v591, %v78
    %v595 = vmul.f32 %v591, %v79
    %v596 = vmul.f32 %v591, %v80
    %v597 = vmul.f32 %v591, %v81
    %v598 = vmul.f32 %v591, %v82
    %v599 = vmul.f32 %v591, %v83
    %v600 = vmul.f32 %v591, %v84
    %v601 = vmul.f32 %v591, %v85
    %v602 = vmul.f32 %v591, %v86
    %v603 = vmul.f32 %v591, %v87
    %v604 = vmul.f32 %v591, %v88
    %v605 = vmul.f32 %v591, %v89
    %v606 = vmul.f32 %v591, %v90
    %v607 = vmul.f32 %v591, %v91
    %624 = vrot.lane.b32.xlu0 %v592, 127
    %v625 = vpop.permute.xlu0 %624
    %626 = vrot.lane.b32.xlu0 %v593, 127
    %v627 = vpop.permute.xlu0 %626
    %628 = vrot.lane.b32.xlu0 %v594, 127
    %v629 = vpop.permute.xlu0 %628
    %630 = vrot.lane.b32.xlu0 %v595, 127
    %v631 = vpop.permute.xlu0 %630
    %632 = vrot.lane.b32.xlu0 %v596, 127
    %v633 = vpop.permute.xlu0 %632
    %634 = vrot.lane.b32.xlu0 %v597, 127
    %v635 = vpop.permute.xlu0 %634
    %636 = vrot.lane.b32.xlu0 %v598, 127
    %v637 = vpop.permute.xlu0 %636
    %638 = vrot.lane.b32.xlu0 %v599, 127
    %v639 = vpop.permute.xlu0 %638
    %640 = vrot.lane.b32.xlu0 %v600, 127
    %v641 = vpop.permute.xlu0 %640
    %642 = vrot.lane.b32.xlu0 %v601, 127
    %v643 = vpop.permute.xlu0 %642
    %644 = vrot.lane.b32.xlu0 %v602, 127
    %v645 = vpop.permute.xlu0 %644
    %646 = vrot.lane.b32.xlu0 %v603, 127
    %v647 = vpop.permute.xlu0 %646
    %648 = vrot.lane.b32.xlu0 %v604, 127
    %v649 = vpop.permute.xlu0 %648
    %650 = vrot.lane.b32.xlu0 %v605, 127
    %v651 = vpop.permute.xlu0 %650
    %652 = vrot.lane.b32.xlu0 %v606, 127
    %v653 = vpop.permute.xlu0 %652
    %654 = vrot.lane.b32.xlu0 %v607, 127
    %v655 = vpop.permute.xlu0 %654
    %v672 = vadd.f32 %v574, %v625
    %v673 = vadd.f32 %v575, %v627
    %v674 = vadd.f32 %v576, %v629
    %v675 = vadd.f32 %v577, %v631
    %v676 = vadd.f32 %v578, %v633
    %v677 = vadd.f32 %v579, %v635
    %v678 = vadd.f32 %v580, %v637
    %v679 = vadd.f32 %v581, %v639
    %v680 = vadd.f32 %v582, %v641
    %v681 = vadd.f32 %v583, %v643
    %v682 = vadd.f32 %v584, %v645
    %v683 = vadd.f32 %v585, %v647
    %v684 = vadd.f32 %v586, %v649
    %v685 = vadd.f32 %v587, %v651
    %v686 = vadd.f32 %v588, %v653
    %v687 = vadd.f32 %v589, %v655
    %s688 = sld [smem:[#allocation2 + $0xa]]
    %v689 = vstv %s688
    %v690 = vmul.f32 %v689, %v76
    %v691 = vmul.f32 %v689, %v77
    %v692 = vmul.f32 %v689, %v78
    %v693 = vmul.f32 %v689, %v79
    %v694 = vmul.f32 %v689, %v80
    %v695 = vmul.f32 %v689, %v81
    %v696 = vmul.f32 %v689, %v82
    %v697 = vmul.f32 %v689, %v83
    %v698 = vmul.f32 %v689, %v84
    %v699 = vmul.f32 %v689, %v85
    %v700 = vmul.f32 %v689, %v86
    %v701 = vmul.f32 %v689, %v87
    %v702 = vmul.f32 %v689, %v88
    %v703 = vmul.f32 %v689, %v89
    %v704 = vmul.f32 %v689, %v90
    %v705 = vmul.f32 %v689, %v91
    %722 = vrot.lane.b32.xlu0 %v690, 126
    %v723 = vpop.permute.xlu0 %722
    %724 = vrot.lane.b32.xlu0 %v691, 126
    %v725 = vpop.permute.xlu0 %724
    %726 = vrot.lane.b32.xlu0 %v692, 126
    %v727 = vpop.permute.xlu0 %726
    %728 = vrot.lane.b32.xlu0 %v693, 126
    %v729 = vpop.permute.xlu0 %728
    %730 = vrot.lane.b32.xlu0 %v694, 126
    %v731 = vpop.permute.xlu0 %730
    %732 = vrot.lane.b32.xlu0 %v695, 126
    %v733 = vpop.permute.xlu0 %732
    %734 = vrot.lane.b32.xlu0 %v696, 126
    %v735 = vpop.permute.xlu0 %734
    %736 = vrot.lane.b32.xlu0 %v697, 126
    %v737 = vpop.permute.xlu0 %736
    %738 = vrot.lane.b32.xlu0 %v698, 126
    %v739 = vpop.permute.xlu0 %738
    %740 = vrot.lane.b32.xlu0 %v699, 126
    %v741 = vpop.permute.xlu0 %740
    %742 = vrot.lane.b32.xlu0 %v700, 126
    %v743 = vpop.permute.xlu0 %742
    %744 = vrot.lane.b32.xlu0 %v701, 126
    %v745 = vpop.permute.xlu0 %744
    %746 = vrot.lane.b32.xlu0 %v702, 126
    %v747 = vpop.permute.xlu0 %746
    %748 = vrot.lane.b32.xlu0 %v703, 126
    %v749 = vpop.permute.xlu0 %748
    %750 = vrot.lane.b32.xlu0 %v704, 126
    %v751 = vpop.permute.xlu0 %750
    %752 = vrot.lane.b32.xlu0 %v705, 126
    %v753 = vpop.permute.xlu0 %752
    %v770 = vadd.f32 %v672, %v723
    %v771 = vadd.f32 %v673, %v725
    %v772 = vadd.f32 %v674, %v727
    %v773 = vadd.f32 %v675, %v729
    %v774 = vadd.f32 %v676, %v731
    %v775 = vadd.f32 %v677, %v733
    %v776 = vadd.f32 %v678, %v735
    %v777 = vadd.f32 %v679, %v737
    %v778 = vadd.f32 %v680, %v739
    %v779 = vadd.f32 %v681, %v741
    %v780 = vadd.f32 %v682, %v743
    %v781 = vadd.f32 %v683, %v745
    %v782 = vadd.f32 %v684, %v747
    %v783 = vadd.f32 %v685, %v749
    %v784 = vadd.f32 %v686, %v751
    %v785 = vadd.f32 %v687, %v753
    %s786 = sld [smem:[#allocation2 + $0xb]]
    %v787 = vstv %s786
    %v788 = vadd.f32 %v770, %v787
    %v789 = vadd.f32 %v771, %v787
    %v790 = vadd.f32 %v772, %v787
    %v791 = vadd.f32 %v773, %v787
    %v792 = vadd.f32 %v774, %v787
    %v793 = vadd.f32 %v775, %v787
    %v794 = vadd.f32 %v776, %v787
    %v795 = vadd.f32 %v777, %v787
    %v796 = vadd.f32 %v778, %v787
    %v797 = vadd.f32 %v779, %v787
    %v798 = vadd.f32 %v780, %v787
    %v799 = vadd.f32 %v781, %v787
    %v800 = vadd.f32 %v782, %v787
    %v801 = vadd.f32 %v783, %v787
    %v802 = vadd.f32 %v784, %v787
    %v803 = vadd.f32 %v785, %v787
    %s804 = sld [smem:[#allocation5]]
    %v805 = vstv %s804
    %v806 = vmul.f32 %v805, %v324
    %v807 = vmul.f32 %v805, %v325
    %v808 = vmul.f32 %v805, %v326
    %v809 = vmul.f32 %v805, %v327
    %v810 = vmul.f32 %v805, %v328
    %v811 = vmul.f32 %v805, %v329
    %v812 = vmul.f32 %v805, %v330
    %v813 = vmul.f32 %v805, %v331
    %v814 = vmul.f32 %v805, %v332
    %v815 = vmul.f32 %v805, %v333
    %v816 = vmul.f32 %v805, %v334
    %v817 = vmul.f32 %v805, %v335
    %v818 = vmul.f32 %v805, %v336
    %v819 = vmul.f32 %v805, %v337
    %v820 = vmul.f32 %v805, %v338
    %v821 = vmul.f32 %v805, %v339
    %s822 = sld [smem:[#allocation5 + $0x1]]
    %v823 = vstv %s822
    %v824 = vmul.f32 %v823, %v556
    %v825 = vmul.f32 %v823, %v557
    %v826 = vmul.f32 %v823, %v558
    %v827 = vmul.f32 %v823, %v559
    %v828 = vmul.f32 %v823, %v560
    %v829 = vmul.f32 %v823, %v561
    %v830 = vmul.f32 %v823, %v562
    %v831 = vmul.f32 %v823, %v563
    %v832 = vmul.f32 %v823, %v564
    %v833 = vmul.f32 %v823, %v565
    %v834 = vmul.f32 %v823, %v566
    %v835 = vmul.f32 %v823, %v567
    %v836 = vmul.f32 %v823, %v568
    %v837 = vmul.f32 %v823, %v569
    %v838 = vmul.f32 %v823, %v570
    %v839 = vmul.f32 %v823, %v571
    %v840 = vadd.f32 %v806, %v824
    %v841 = vadd.f32 %v807, %v825
    %v842 = vadd.f32 %v808, %v826
    %v843 = vadd.f32 %v809, %v827
    %v844 = vadd.f32 %v810, %v828
    %v845 = vadd.f32 %v811, %v829
    %v846 = vadd.f32 %v812, %v830
    %v847 = vadd.f32 %v813, %v831
    %v848 = vadd.f32 %v814, %v832
    %v849 = vadd.f32 %v815, %v833
    %v850 = vadd.f32 %v816, %v834
    %v851 = vadd.f32 %v817, %v835
    %v852 = vadd.f32 %v818, %v836
    %v853 = vadd.f32 %v819, %v837
    %v854 = vadd.f32 %v820, %v838
    %v855 = vadd.f32 %v821, %v839
    %s856 = sld [smem:[#allocation5 + $0x2]]
    %v857 = vstv %s856
    %v858 = vmul.f32 %v857, %v788
    %v859 = vmul.f32 %v857, %v789
    %v860 = vmul.f32 %v857, %v790
    %v861 = vmul.f32 %v857, %v791
    %v862 = vmul.f32 %v857, %v792
    %v863 = vmul.f32 %v857, %v793
    %v864 = vmul.f32 %v857, %v794
    %v865 = vmul.f32 %v857, %v795
    %v866 = vmul.f32 %v857, %v796
    %v867 = vmul.f32 %v857, %v797
    %v868 = vmul.f32 %v857, %v798
    %v869 = vmul.f32 %v857, %v799
    %v870 = vmul.f32 %v857, %v800
    %v871 = vmul.f32 %v857, %v801
    %v872 = vmul.f32 %v857, %v802
    %v873 = vmul.f32 %v857, %v803
    %v874 = vadd.f32 %v840, %v858
    %v875 = vadd.f32 %v841, %v859
    %v876 = vadd.f32 %v842, %v860
    %v877 = vadd.f32 %v843, %v861
    %v878 = vadd.f32 %v844, %v862
    %v879 = vadd.f32 %v845, %v863
    %v880 = vadd.f32 %v846, %v864
    %v881 = vadd.f32 %v847, %v865
    %v882 = vadd.f32 %v848, %v866
    %v883 = vadd.f32 %v849, %v867
    %v884 = vadd.f32 %v850, %v868
    %v885 = vadd.f32 %v851, %v869
    %v886 = vadd.f32 %v852, %v870
    %v887 = vadd.f32 %v853, %v871
    %v888 = vadd.f32 %v854, %v872
    %v889 = vadd.f32 %v855, %v873
    %s890 = sld [smem:[#allocation5 + $0x3]]
    %v891 = vstv %s890
    %v892 = vmul.f32 %v891, %v324
    %v893 = vmul.f32 %v891, %v325
    %v894 = vmul.f32 %v891, %v326
    %v895 = vmul.f32 %v891, %v327
    %v896 = vmul.f32 %v891, %v328
    %v897 = vmul.f32 %v891, %v329
    %v898 = vmul.f32 %v891, %v330
    %v899 = vmul.f32 %v891, %v331
    %v900 = vmul.f32 %v891, %v332
    %v901 = vmul.f32 %v891, %v333
    %v902 = vmul.f32 %v891, %v334
    %v903 = vmul.f32 %v891, %v335
    %v904 = vmul.f32 %v891, %v336
    %v905 = vmul.f32 %v891, %v337
    %v906 = vmul.f32 %v891, %v338
    %v907 = vmul.f32 %v891, %v339
    %s908 = sld [smem:[#allocation5 + $0x4]]
    %v909 = vstv %s908
    %v910 = vmul.f32 %v909, %v556
    %v911 = vmul.f32 %v909, %v557
    %v912 = vmul.f32 %v909, %v558
    %v913 = vmul.f32 %v909, %v559
    %v914 = vmul.f32 %v909, %v560
    %v915 = vmul.f32 %v909, %v561
    %v916 = vmul.f32 %v909, %v562
    %v917 = vmul.f32 %v909, %v563
    %v918 = vmul.f32 %v909, %v564
    %v919 = vmul.f32 %v909, %v565
    %v920 = vmul.f32 %v909, %v566
    %v921 = vmul.f32 %v909, %v567
    %v922 = vmul.f32 %v909, %v568
    %v923 = vmul.f32 %v909, %v569
    %v924 = vmul.f32 %v909, %v570
    %v925 = vmul.f32 %v909, %v571
    %v926 = vadd.f32 %v892, %v910
    %v927 = vadd.f32 %v893, %v911
    %v928 = vadd.f32 %v894, %v912
    %v929 = vadd.f32 %v895, %v913
    %v930 = vadd.f32 %v896, %v914
    %v931 = vadd.f32 %v897, %v915
    %v932 = vadd.f32 %v898, %v916
    %v933 = vadd.f32 %v899, %v917
    %v934 = vadd.f32 %v900, %v918
    %v935 = vadd.f32 %v901, %v919
    %v936 = vadd.f32 %v902, %v920
    %v937 = vadd.f32 %v903, %v921
    %v938 = vadd.f32 %v904, %v922
    %v939 = vadd.f32 %v905, %v923
    %v940 = vadd.f32 %v906, %v924
    %v941 = vadd.f32 %v907, %v925
    %s942 = sld [smem:[#allocation5 + $0x5]]
    %v943 = vstv %s942
    %v944 = vmul.f32 %v943, %v788
    %v945 = vmul.f32 %v943, %v789
    %v946 = vmul.f32 %v943, %v790
    %v947 = vmul.f32 %v943, %v791
    %v948 = vmul.f32 %v943, %v792
    %v949 = vmul.f32 %v943, %v793
    %v950 = vmul.f32 %v943, %v794
    %v951 = vmul.f32 %v943, %v795
    %v952 = vmul.f32 %v943, %v796
    %v953 = vmul.f32 %v943, %v797
    %v954 = vmul.f32 %v943, %v798
    %v955 = vmul.f32 %v943, %v799
    %v956 = vmul.f32 %v943, %v800
    %v957 = vmul.f32 %v943, %v801
    %v958 = vmul.f32 %v943, %v802
    %v959 = vmul.f32 %v943, %v803
    %v960 = vadd.f32 %v926, %v944
    %v961 = vadd.f32 %v927, %v945
    %v962 = vadd.f32 %v928, %v946
    %v963 = vadd.f32 %v929, %v947
    %v964 = vadd.f32 %v930, %v948
    %v965 = vadd.f32 %v931, %v949
    %v966 = vadd.f32 %v932, %v950
    %v967 = vadd.f32 %v933, %v951
    %v968 = vadd.f32 %v934, %v952
    %v969 = vadd.f32 %v935, %v953
    %v970 = vadd.f32 %v936, %v954
    %v971 = vadd.f32 %v937, %v955
    %v972 = vadd.f32 %v938, %v956
    %v973 = vadd.f32 %v939, %v957
    %v974 = vadd.f32 %v940, %v958
    %v975 = vadd.f32 %v941, %v959
    %s976 = sld [smem:[#allocation5 + $0x6]]
    %v977 = vstv %s976
    %v978 = vmul.f32 %v977, %v324
    %v979 = vmul.f32 %v977, %v325
    %v980 = vmul.f32 %v977, %v326
    %v981 = vmul.f32 %v977, %v327
    %v982 = vmul.f32 %v977, %v328
    %v983 = vmul.f32 %v977, %v329
    %v984 = vmul.f32 %v977, %v330
    %v985 = vmul.f32 %v977, %v331
    %v986 = vmul.f32 %v977, %v332
    %v987 = vmul.f32 %v977, %v333
    %v988 = vmul.f32 %v977, %v334
    %v989 = vmul.f32 %v977, %v335
    %v990 = vmul.f32 %v977, %v336
    %v991 = vmul.f32 %v977, %v337
    %v992 = vmul.f32 %v977, %v338
    %v993 = vmul.f32 %v977, %v339
    %s994 = sld [smem:[#allocation5 + $0x7]]
    %v995 = vstv %s994
    %v996 = vmul.f32 %v995, %v556
    %v997 = vmul.f32 %v995, %v557
    %v998 = vmul.f32 %v995, %v558
    %v999 = vmul.f32 %v995, %v559
    %v1000 = vmul.f32 %v995, %v560
    %v1001 = vmul.f32 %v995, %v561
    %v1002 = vmul.f32 %v995, %v562
    %v1003 = vmul.f32 %v995, %v563
    %v1004 = vmul.f32 %v995, %v564
    %v1005 = vmul.f32 %v995, %v565
    %v1006 = vmul.f32 %v995, %v566
    %v1007 = vmul.f32 %v995, %v567
    %v1008 = vmul.f32 %v995, %v568
    %v1009 = vmul.f32 %v995, %v569
    %v1010 = vmul.f32 %v995, %v570
    %v1011 = vmul.f32 %v995, %v571
    %v1012 = vadd.f32 %v978, %v996
    %v1013 = vadd.f32 %v979, %v997
    %v1014 = vadd.f32 %v980, %v998
    %v1015 = vadd.f32 %v981, %v999
    %v1016 = vadd.f32 %v982, %v1000
    %v1017 = vadd.f32 %v983, %v1001
    %v1018 = vadd.f32 %v984, %v1002
    %v1019 = vadd.f32 %v985, %v1003
    %v1020 = vadd.f32 %v986, %v1004
    %v1021 = vadd.f32 %v987, %v1005
    %v1022 = vadd.f32 %v988, %v1006
    %v1023 = vadd.f32 %v989, %v1007
    %v1024 = vadd.f32 %v990, %v1008
    %v1025 = vadd.f32 %v991, %v1009
    %v1026 = vadd.f32 %v992, %v1010
    %v1027 = vadd.f32 %v993, %v1011
    %s1028 = sld [smem:[#allocation5 + $0x8]]
    %v1029 = vstv %s1028
    %v1030 = vmul.f32 %v1029, %v788
    %v1031 = vmul.f32 %v1029, %v789
    %v1032 = vmul.f32 %v1029, %v790
    %v1033 = vmul.f32 %v1029, %v791
    %v1034 = vmul.f32 %v1029, %v792
    %v1035 = vmul.f32 %v1029, %v793
    %v1036 = vmul.f32 %v1029, %v794
    %v1037 = vmul.f32 %v1029, %v795
    %v1038 = vmul.f32 %v1029, %v796
    %v1039 = vmul.f32 %v1029, %v797
    %v1040 = vmul.f32 %v1029, %v798
    %v1041 = vmul.f32 %v1029, %v799
    %v1042 = vmul.f32 %v1029, %v800
    %v1043 = vmul.f32 %v1029, %v801
    %v1044 = vmul.f32 %v1029, %v802
    %v1045 = vmul.f32 %v1029, %v803
    %v1046 = vadd.f32 %v1012, %v1030
    %v1047 = vadd.f32 %v1013, %v1031
    %v1048 = vadd.f32 %v1014, %v1032
    %v1049 = vadd.f32 %v1015, %v1033
    %v1050 = vadd.f32 %v1016, %v1034
    %v1051 = vadd.f32 %v1017, %v1035
    %v1052 = vadd.f32 %v1018, %v1036
    %v1053 = vadd.f32 %v1019, %v1037
    %v1054 = vadd.f32 %v1020, %v1038
    %v1055 = vadd.f32 %v1021, %v1039
    %v1056 = vadd.f32 %v1022, %v1040
    %v1057 = vadd.f32 %v1023, %v1041
    %v1058 = vadd.f32 %v1024, %v1042
    %v1059 = vadd.f32 %v1025, %v1043
    %v1060 = vadd.f32 %v1026, %v1044
    %v1061 = vadd.f32 %v1027, %v1045
    %s1062 = sld [smem:[#allocation7]]
    %s1063 = sld [smem:[#allocation7 + $0x1]]
    %vm1064 = vcmp.gt.f32.partialorder %v1046, 1e-08
    %vm1065 = vcmp.gt.f32.partialorder %v1047, 1e-08
    %vm1066 = vcmp.gt.f32.partialorder %v1048, 1e-08
    %vm1067 = vcmp.gt.f32.partialorder %v1049, 1e-08
    %vm1068 = vcmp.gt.f32.partialorder %v1050, 1e-08
    %vm1069 = vcmp.gt.f32.partialorder %v1051, 1e-08
    %vm1070 = vcmp.gt.f32.partialorder %v1052, 1e-08
    %vm1071 = vcmp.gt.f32.partialorder %v1053, 1e-08
    %vm1072 = vcmp.gt.f32.partialorder %v1054, 1e-08
    %vm1073 = vcmp.gt.f32.partialorder %v1055, 1e-08
    %vm1074 = vcmp.gt.f32.partialorder %v1056, 1e-08
    %vm1075 = vcmp.gt.f32.partialorder %v1057, 1e-08
    %vm1076 = vcmp.gt.f32.partialorder %v1058, 1e-08
    %vm1077 = vcmp.gt.f32.partialorder %v1059, 1e-08
    %vm1078 = vcmp.gt.f32.partialorder %v1060, 1e-08
    %vm1079 = vcmp.gt.f32.partialorder %v1061, 1e-08
    %v1080 = vsel %vm1064, %v1046, 1.0
    %v1081 = vsel %vm1065, %v1047, 1.0
    %v1082 = vsel %vm1066, %v1048, 1.0
    %v1083 = vsel %vm1067, %v1049, 1.0
    %v1084 = vsel %vm1068, %v1050, 1.0
    %v1085 = vsel %vm1069, %v1051, 1.0
    %v1086 = vsel %vm1070, %v1052, 1.0
    %v1087 = vsel %vm1071, %v1053, 1.0
    %v1088 = vsel %vm1072, %v1054, 1.0
    %v1089 = vsel %vm1073, %v1055, 1.0
    %v1090 = vsel %vm1074, %v1056, 1.0
    %v1091 = vsel %vm1075, %v1057, 1.0
    %v1092 = vsel %vm1076, %v1058, 1.0
    %v1093 = vsel %vm1077, %v1059, 1.0
    %v1094 = vsel %vm1078, %v1060, 1.0
    %v1095 = vsel %vm1079, %v1061, 1.0
    %v1096 = vrcp.pop %v1080
    %v1097 = vmul.f32 %v1080, %v1096
    %v1098 = vsub.f32 1.0, %v1097
    %v1099 = vmul.f32 %v1096, %v1098
    %v1100 = vadd.f32 %v1096, %v1099
    %vm1101 = vweird.f32 %v1080
    %vm1102 = vweird.f32 %v1096
    %vm1103 = vmor %vm1101, %vm1102
    %v1104 = vsel %vm1103, %v1096, %v1100
    %v1105 = vand.u32 2147483647, %v1080
    %vm1106 = vcmp.eq.f32.partialorder %v1105, 8.507059e+37
    %v1107 = vand.u32 %v1080, 2147483648
    %v1108 = vor.u32 1.1754944e-38, %v1107
    %v1109 = vsel %vm1106, %v1108, %v1104
    %v1110 = vmul.f32 1.0, %v1109
    %v1111 = vrcp.pop %v1081
    %v1112 = vmul.f32 %v1081, %v1111
    %v1113 = vsub.f32 1.0, %v1112
    %v1114 = vmul.f32 %v1111, %v1113
    %v1115 = vadd.f32 %v1111, %v1114
    %vm1116 = vweird.f32 %v1081
    %vm1117 = vweird.f32 %v1111
    %vm1118 = vmor %vm1116, %vm1117
    %v1119 = vsel %vm1118, %v1111, %v1115
    %v1120 = vand.u32 2147483647, %v1081
    %vm1121 = vcmp.eq.f32.partialorder %v1120, 8.507059e+37
    %v1122 = vand.u32 %v1081, 2147483648
    %v1123 = vor.u32 1.1754944e-38, %v1122
    %v1124 = vsel %vm1121, %v1123, %v1119
    %v1125 = vmul.f32 1.0, %v1124
    %v1126 = vrcp.pop %v1082
    %v1127 = vmul.f32 %v1082, %v1126
    %v1128 = vsub.f32 1.0, %v1127
    %v1129 = vmul.f32 %v1126, %v1128
    %v1130 = vadd.f32 %v1126, %v1129
    %vm1131 = vweird.f32 %v1082
    %vm1132 = vweird.f32 %v1126
    %vm1133 = vmor %vm1131, %vm1132
    %v1134 = vsel %vm1133, %v1126, %v1130
    %v1135 = vand.u32 2147483647, %v1082
    %vm1136 = vcmp.eq.f32.partialorder %v1135, 8.507059e+37
    %v1137 = vand.u32 %v1082, 2147483648
    %v1138 = vor.u32 1.1754944e-38, %v1137
    %v1139 = vsel %vm1136, %v1138, %v1134
    %v1140 = vmul.f32 1.0, %v1139
    %v1141 = vrcp.pop %v1083
    %v1142 = vmul.f32 %v1083, %v1141
    %v1143 = vsub.f32 1.0, %v1142
    %v1144 = vmul.f32 %v1141, %v1143
    %v1145 = vadd.f32 %v1141, %v1144
    %vm1146 = vweird.f32 %v1083
    %vm1147 = vweird.f32 %v1141
    %vm1148 = vmor %vm1146, %vm1147
    %v1149 = vsel %vm1148, %v1141, %v1145
    %v1150 = vand.u32 2147483647, %v1083
    %vm1151 = vcmp.eq.f32.partialorder %v1150, 8.507059e+37
    %v1152 = vand.u32 %v1083, 2147483648
    %v1153 = vor.u32 1.1754944e-38, %v1152
    %v1154 = vsel %vm1151, %v1153, %v1149
    %v1155 = vmul.f32 1.0, %v1154
    %v1156 = vrcp.pop %v1084
    %v1157 = vmul.f32 %v1084, %v1156
    %v1158 = vsub.f32 1.0, %v1157
    %v1159 = vmul.f32 %v1156, %v1158
    %v1160 = vadd.f32 %v1156, %v1159
    %vm1161 = vweird.f32 %v1084
    %vm1162 = vweird.f32 %v1156
    %vm1163 = vmor %vm1161, %vm1162
    %v1164 = vsel %vm1163, %v1156, %v1160
    %v1165 = vand.u32 2147483647, %v1084
    %vm1166 = vcmp.eq.f32.partialorder %v1165, 8.507059e+37
    %v1167 = vand.u32 %v1084, 2147483648
    %v1168 = vor.u32 1.1754944e-38, %v1167
    %v1169 = vsel %vm1166, %v1168, %v1164
    %v1170 = vmul.f32 1.0, %v1169
    %v1171 = vrcp.pop %v1085
    %v1172 = vmul.f32 %v1085, %v1171
    %v1173 = vsub.f32 1.0, %v1172
    %v1174 = vmul.f32 %v1171, %v1173
    %v1175 = vadd.f32 %v1171, %v1174
    %vm1176 = vweird.f32 %v1085
    %vm1177 = vweird.f32 %v1171
    %vm1178 = vmor %vm1176, %vm1177
    %v1179 = vsel %vm1178, %v1171, %v1175
    %v1180 = vand.u32 2147483647, %v1085
    %vm1181 = vcmp.eq.f32.partialorder %v1180, 8.507059e+37
    %v1182 = vand.u32 %v1085, 2147483648
    %v1183 = vor.u32 1.1754944e-38, %v1182
    %v1184 = vsel %vm1181, %v1183, %v1179
    %v1185 = vmul.f32 1.0, %v1184
    %v1186 = vrcp.pop %v1086
    %v1187 = vmul.f32 %v1086, %v1186
    %v1188 = vsub.f32 1.0, %v1187
    %v1189 = vmul.f32 %v1186, %v1188
    %v1190 = vadd.f32 %v1186, %v1189
    %vm1191 = vweird.f32 %v1086
    %vm1192 = vweird.f32 %v1186
    %vm1193 = vmor %vm1191, %vm1192
    %v1194 = vsel %vm1193, %v1186, %v1190
    %v1195 = vand.u32 2147483647, %v1086
    %vm1196 = vcmp.eq.f32.partialorder %v1195, 8.507059e+37
    %v1197 = vand.u32 %v1086, 2147483648
    %v1198 = vor.u32 1.1754944e-38, %v1197
    %v1199 = vsel %vm1196, %v1198, %v1194
    %v1200 = vmul.f32 1.0, %v1199
    %v1201 = vrcp.pop %v1087
    %v1202 = vmul.f32 %v1087, %v1201
    %v1203 = vsub.f32 1.0, %v1202
    %v1204 = vmul.f32 %v1201, %v1203
    %v1205 = vadd.f32 %v1201, %v1204
    %vm1206 = vweird.f32 %v1087
    %vm1207 = vweird.f32 %v1201
    %vm1208 = vmor %vm1206, %vm1207
    %v1209 = vsel %vm1208, %v1201, %v1205
    %v1210 = vand.u32 2147483647, %v1087
    %vm1211 = vcmp.eq.f32.partialorder %v1210, 8.507059e+37
    %v1212 = vand.u32 %v1087, 2147483648
    %v1213 = vor.u32 1.1754944e-38, %v1212
    %v1214 = vsel %vm1211, %v1213, %v1209
    %v1215 = vmul.f32 1.0, %v1214
    %v1216 = vrcp.pop %v1088
    %v1217 = vmul.f32 %v1088, %v1216
    %v1218 = vsub.f32 1.0, %v1217
    %v1219 = vmul.f32 %v1216, %v1218
    %v1220 = vadd.f32 %v1216, %v1219
    %vm1221 = vweird.f32 %v1088
    %vm1222 = vweird.f32 %v1216
    %vm1223 = vmor %vm1221, %vm1222
    %v1224 = vsel %vm1223, %v1216, %v1220
    %v1225 = vand.u32 2147483647, %v1088
    %vm1226 = vcmp.eq.f32.partialorder %v1225, 8.507059e+37
    %v1227 = vand.u32 %v1088, 2147483648
    %v1228 = vor.u32 1.1754944e-38, %v1227
    %v1229 = vsel %vm1226, %v1228, %v1224
    %v1230 = vmul.f32 1.0, %v1229
    %v1231 = vrcp.pop %v1089
    %v1232 = vmul.f32 %v1089, %v1231
    %v1233 = vsub.f32 1.0, %v1232
    %v1234 = vmul.f32 %v1231, %v1233
    %v1235 = vadd.f32 %v1231, %v1234
    %vm1236 = vweird.f32 %v1089
    %vm1237 = vweird.f32 %v1231
    %vm1238 = vmor %vm1236, %vm1237
    %v1239 = vsel %vm1238, %v1231, %v1235
    %v1240 = vand.u32 2147483647, %v1089
    %vm1241 = vcmp.eq.f32.partialorder %v1240, 8.507059e+37
    %v1242 = vand.u32 %v1089, 2147483648
    %v1243 = vor.u32 1.1754944e-38, %v1242
    %v1244 = vsel %vm1241, %v1243, %v1239
    %v1245 = vmul.f32 1.0, %v1244
    %v1246 = vrcp.pop %v1090
    %v1247 = vmul.f32 %v1090, %v1246
    %v1248 = vsub.f32 1.0, %v1247
    %v1249 = vmul.f32 %v1246, %v1248
    %v1250 = vadd.f32 %v1246, %v1249
    %vm1251 = vweird.f32 %v1090
    %vm1252 = vweird.f32 %v1246
    %vm1253 = vmor %vm1251, %vm1252
    %v1254 = vsel %vm1253, %v1246, %v1250
    %v1255 = vand.u32 2147483647, %v1090
    %vm1256 = vcmp.eq.f32.partialorder %v1255, 8.507059e+37
    %v1257 = vand.u32 %v1090, 2147483648
    %v1258 = vor.u32 1.1754944e-38, %v1257
    %v1259 = vsel %vm1256, %v1258, %v1254
    %v1260 = vmul.f32 1.0, %v1259
    %v1261 = vrcp.pop %v1091
    %v1262 = vmul.f32 %v1091, %v1261
    %v1263 = vsub.f32 1.0, %v1262
    %v1264 = vmul.f32 %v1261, %v1263
    %v1265 = vadd.f32 %v1261, %v1264
    %vm1266 = vweird.f32 %v1091
    %vm1267 = vweird.f32 %v1261
    %vm1268 = vmor %vm1266, %vm1267
    %v1269 = vsel %vm1268, %v1261, %v1265
    %v1270 = vand.u32 2147483647, %v1091
    %vm1271 = vcmp.eq.f32.partialorder %v1270, 8.507059e+37
    %v1272 = vand.u32 %v1091, 2147483648
    %v1273 = vor.u32 1.1754944e-38, %v1272
    %v1274 = vsel %vm1271, %v1273, %v1269
    %v1275 = vmul.f32 1.0, %v1274
    %v1276 = vrcp.pop %v1092
    %v1277 = vmul.f32 %v1092, %v1276
    %v1278 = vsub.f32 1.0, %v1277
    %v1279 = vmul.f32 %v1276, %v1278
    %v1280 = vadd.f32 %v1276, %v1279
    %vm1281 = vweird.f32 %v1092
    %vm1282 = vweird.f32 %v1276
    %vm1283 = vmor %vm1281, %vm1282
    %v1284 = vsel %vm1283, %v1276, %v1280
    %v1285 = vand.u32 2147483647, %v1092
    %vm1286 = vcmp.eq.f32.partialorder %v1285, 8.507059e+37
    %v1287 = vand.u32 %v1092, 2147483648
    %v1288 = vor.u32 1.1754944e-38, %v1287
    %v1289 = vsel %vm1286, %v1288, %v1284
    %v1290 = vmul.f32 1.0, %v1289
    %v1291 = vrcp.pop %v1093
    %v1292 = vmul.f32 %v1093, %v1291
    %v1293 = vsub.f32 1.0, %v1292
    %v1294 = vmul.f32 %v1291, %v1293
    %v1295 = vadd.f32 %v1291, %v1294
    %vm1296 = vweird.f32 %v1093
    %vm1297 = vweird.f32 %v1291
    %vm1298 = vmor %vm1296, %vm1297
    %v1299 = vsel %vm1298, %v1291, %v1295
    %v1300 = vand.u32 2147483647, %v1093
    %vm1301 = vcmp.eq.f32.partialorder %v1300, 8.507059e+37
    %v1302 = vand.u32 %v1093, 2147483648
    %v1303 = vor.u32 1.1754944e-38, %v1302
    %v1304 = vsel %vm1301, %v1303, %v1299
    %v1305 = vmul.f32 1.0, %v1304
    %v1306 = vrcp.pop %v1094
    %v1307 = vmul.f32 %v1094, %v1306
    %v1308 = vsub.f32 1.0, %v1307
    %v1309 = vmul.f32 %v1306, %v1308
    %v1310 = vadd.f32 %v1306, %v1309
    %vm1311 = vweird.f32 %v1094
    %vm1312 = vweird.f32 %v1306
    %vm1313 = vmor %vm1311, %vm1312
    %v1314 = vsel %vm1313, %v1306, %v1310
    %v1315 = vand.u32 2147483647, %v1094
    %vm1316 = vcmp.eq.f32.partialorder %v1315, 8.507059e+37
    %v1317 = vand.u32 %v1094, 2147483648
    %v1318 = vor.u32 1.1754944e-38, %v1317
    %v1319 = vsel %vm1316, %v1318, %v1314
    %v1320 = vmul.f32 1.0, %v1319
    %v1321 = vrcp.pop %v1095
    %v1322 = vmul.f32 %v1095, %v1321
    %v1323 = vsub.f32 1.0, %v1322
    %v1324 = vmul.f32 %v1321, %v1323
    %v1325 = vadd.f32 %v1321, %v1324
    %vm1326 = vweird.f32 %v1095
    %vm1327 = vweird.f32 %v1321
    %vm1328 = vmor %vm1326, %vm1327
    %v1329 = vsel %vm1328, %v1321, %v1325
    %v1330 = vand.u32 2147483647, %v1095
    %vm1331 = vcmp.eq.f32.partialorder %v1330, 8.507059e+37
    %v1332 = vand.u32 %v1095, 2147483648
    %v1333 = vor.u32 1.1754944e-38, %v1332
    %v1334 = vsel %vm1331, %v1333, %v1329
    %v1335 = vmul.f32 1.0, %v1334
    %v1336 = vmul.f32 %v874, %v1110
    %v1337 = vmul.f32 %v875, %v1125
    %v1338 = vmul.f32 %v876, %v1140
    %v1339 = vmul.f32 %v877, %v1155
    %v1340 = vmul.f32 %v878, %v1170
    %v1341 = vmul.f32 %v879, %v1185
    %v1342 = vmul.f32 %v880, %v1200
    %v1343 = vmul.f32 %v881, %v1215
    %v1344 = vmul.f32 %v882, %v1230
    %v1345 = vmul.f32 %v883, %v1245
    %v1346 = vmul.f32 %v884, %v1260
    %v1347 = vmul.f32 %v885, %v1275
    %v1348 = vmul.f32 %v886, %v1290
    %v1349 = vmul.f32 %v887, %v1305
    %v1350 = vmul.f32 %v888, %v1320
    %v1351 = vmul.f32 %v889, %v1335
    %v1352 = vmax.f32 %v1336, -30000.0
    %v1353 = vmax.f32 %v1337, -30000.0
    %v1354 = vmax.f32 %v1338, -30000.0
    %v1355 = vmax.f32 %v1339, -30000.0
    %v1356 = vmax.f32 %v1340, -30000.0
    %v1357 = vmax.f32 %v1341, -30000.0
    %v1358 = vmax.f32 %v1342, -30000.0
    %v1359 = vmax.f32 %v1343, -30000.0
    %v1360 = vmax.f32 %v1344, -30000.0
    %v1361 = vmax.f32 %v1345, -30000.0
    %v1362 = vmax.f32 %v1346, -30000.0
    %v1363 = vmax.f32 %v1347, -30000.0
    %v1364 = vmax.f32 %v1348, -30000.0
    %v1365 = vmax.f32 %v1349, -30000.0
    %v1366 = vmax.f32 %v1350, -30000.0
    %v1367 = vmax.f32 %v1351, -30000.0
    %v1368 = vmin.f32 %v1352, 30000.0
    %v1369 = vmin.f32 %v1353, 30000.0
    %v1370 = vmin.f32 %v1354, 30000.0
    %v1371 = vmin.f32 %v1355, 30000.0
    %v1372 = vmin.f32 %v1356, 30000.0
    %v1373 = vmin.f32 %v1357, 30000.0
    %v1374 = vmin.f32 %v1358, 30000.0
    %v1375 = vmin.f32 %v1359, 30000.0
    %v1376 = vmin.f32 %v1360, 30000.0
    %v1377 = vmin.f32 %v1361, 30000.0
    %v1378 = vmin.f32 %v1362, 30000.0
    %v1379 = vmin.f32 %v1363, 30000.0
    %v1380 = vmin.f32 %v1364, 30000.0
    %v1381 = vmin.f32 %v1365, 30000.0
    %v1382 = vmin.f32 %v1366, 30000.0
    %v1383 = vmin.f32 %v1367, 30000.0
    %v1384 = vmul.f32 %v960, %v1110
    %v1385 = vmul.f32 %v961, %v1125
    %v1386 = vmul.f32 %v962, %v1140
    %v1387 = vmul.f32 %v963, %v1155
    %v1388 = vmul.f32 %v964, %v1170
    %v1389 = vmul.f32 %v965, %v1185
    %v1390 = vmul.f32 %v966, %v1200
    %v1391 = vmul.f32 %v967, %v1215
    %v1392 = vmul.f32 %v968, %v1230
    %v1393 = vmul.f32 %v969, %v1245
    %v1394 = vmul.f32 %v970, %v1260
    %v1395 = vmul.f32 %v971, %v1275
    %v1396 = vmul.f32 %v972, %v1290
    %v1397 = vmul.f32 %v973, %v1305
    %v1398 = vmul.f32 %v974, %v1320
    %v1399 = vmul.f32 %v975, %v1335
    %v1400 = vmax.f32 %v1384, -30000.0
    %v1401 = vmax.f32 %v1385, -30000.0
    %v1402 = vmax.f32 %v1386, -30000.0
    %v1403 = vmax.f32 %v1387, -30000.0
    %v1404 = vmax.f32 %v1388, -30000.0
    %v1405 = vmax.f32 %v1389, -30000.0
    %v1406 = vmax.f32 %v1390, -30000.0
    %v1407 = vmax.f32 %v1391, -30000.0
    %v1408 = vmax.f32 %v1392, -30000.0
    %v1409 = vmax.f32 %v1393, -30000.0
    %v1410 = vmax.f32 %v1394, -30000.0
    %v1411 = vmax.f32 %v1395, -30000.0
    %v1412 = vmax.f32 %v1396, -30000.0
    %v1413 = vmax.f32 %v1397, -30000.0
    %v1414 = vmax.f32 %v1398, -30000.0
    %v1415 = vmax.f32 %v1399, -30000.0
    %v1416 = vmin.f32 %v1400, 30000.0
    %v1417 = vmin.f32 %v1401, 30000.0
    %v1418 = vmin.f32 %v1402, 30000.0
    %v1419 = vmin.f32 %v1403, 30000.0
    %v1420 = vmin.f32 %v1404, 30000.0
    %v1421 = vmin.f32 %v1405, 30000.0
    %v1422 = vmin.f32 %v1406, 30000.0
    %v1423 = vmin.f32 %v1407, 30000.0
    %v1424 = vmin.f32 %v1408, 30000.0
    %v1425 = vmin.f32 %v1409, 30000.0
    %v1426 = vmin.f32 %v1410, 30000.0
    %v1427 = vmin.f32 %v1411, 30000.0
    %v1428 = vmin.f32 %v1412, 30000.0
    %v1429 = vmin.f32 %v1413, 30000.0
    %v1430 = vmin.f32 %v1414, 30000.0
    %v1431 = vmin.f32 %v1415, 30000.0
    %v1432 = vfloor.f32 %v1368
    %v1433 = vfloor.f32 %v1369
    %v1434 = vfloor.f32 %v1370
    %v1435 = vfloor.f32 %v1371
    %v1436 = vfloor.f32 %v1372
    %v1437 = vfloor.f32 %v1373
    %v1438 = vfloor.f32 %v1374
    %v1439 = vfloor.f32 %v1375
    %v1440 = vfloor.f32 %v1376
    %v1441 = vfloor.f32 %v1377
    %v1442 = vfloor.f32 %v1378
    %v1443 = vfloor.f32 %v1379
    %v1444 = vfloor.f32 %v1380
    %v1445 = vfloor.f32 %v1381
    %v1446 = vfloor.f32 %v1382
    %v1447 = vfloor.f32 %v1383
    %v1448 = vcvt.f32.s32.to.zero.pseudo %v1432
    %v1449 = vcvt.f32.s32.to.zero.pseudo %v1433
    %v1450 = vcvt.f32.s32.to.zero.pseudo %v1434
    %v1451 = vcvt.f32.s32.to.zero.pseudo %v1435
    %v1452 = vcvt.f32.s32.to.zero.pseudo %v1436
    %v1453 = vcvt.f32.s32.to.zero.pseudo %v1437
    %v1454 = vcvt.f32.s32.to.zero.pseudo %v1438
    %v1455 = vcvt.f32.s32.to.zero.pseudo %v1439
    %v1456 = vcvt.f32.s32.to.zero.pseudo %v1440
    %v1457 = vcvt.f32.s32.to.zero.pseudo %v1441
    %v1458 = vcvt.f32.s32.to.zero.pseudo %v1442
    %v1459 = vcvt.f32.s32.to.zero.pseudo %v1443
    %v1460 = vcvt.f32.s32.to.zero.pseudo %v1444
    %v1461 = vcvt.f32.s32.to.zero.pseudo %v1445
    %v1462 = vcvt.f32.s32.to.zero.pseudo %v1446
    %v1463 = vcvt.f32.s32.to.zero.pseudo %v1447
    %v1464 = vfloor.f32 %v1416
    %v1465 = vfloor.f32 %v1417
    %v1466 = vfloor.f32 %v1418
    %v1467 = vfloor.f32 %v1419
    %v1468 = vfloor.f32 %v1420
    %v1469 = vfloor.f32 %v1421
    %v1470 = vfloor.f32 %v1422
    %v1471 = vfloor.f32 %v1423
    %v1472 = vfloor.f32 %v1424
    %v1473 = vfloor.f32 %v1425
    %v1474 = vfloor.f32 %v1426
    %v1475 = vfloor.f32 %v1427
    %v1476 = vfloor.f32 %v1428
    %v1477 = vfloor.f32 %v1429
    %v1478 = vfloor.f32 %v1430
    %v1479 = vfloor.f32 %v1431
    %v1480 = vcvt.f32.s32.to.zero.pseudo %v1464
    %v1481 = vcvt.f32.s32.to.zero.pseudo %v1465
    %v1482 = vcvt.f32.s32.to.zero.pseudo %v1466
    %v1483 = vcvt.f32.s32.to.zero.pseudo %v1467
    %v1484 = vcvt.f32.s32.to.zero.pseudo %v1468
    %v1485 = vcvt.f32.s32.to.zero.pseudo %v1469
    %v1486 = vcvt.f32.s32.to.zero.pseudo %v1470
    %v1487 = vcvt.f32.s32.to.zero.pseudo %v1471
    %v1488 = vcvt.f32.s32.to.zero.pseudo %v1472
    %v1489 = vcvt.f32.s32.to.zero.pseudo %v1473
    %v1490 = vcvt.f32.s32.to.zero.pseudo %v1474
    %v1491 = vcvt.f32.s32.to.zero.pseudo %v1475
    %v1492 = vcvt.f32.s32.to.zero.pseudo %v1476
    %v1493 = vcvt.f32.s32.to.zero.pseudo %v1477
    %v1494 = vcvt.f32.s32.to.zero.pseudo %v1478
    %v1495 = vcvt.f32.s32.to.zero.pseudo %v1479
    %v1496 = vmul.u32 %v1480, 16
    %v1497 = vmul.u32 %v1481, 16
    %v1498 = vmul.u32 %v1482, 16
    %v1499 = vmul.u32 %v1483, 16
    %v1500 = vmul.u32 %v1484, 16
    %v1501 = vmul.u32 %v1485, 16
    %v1502 = vmul.u32 %v1486, 16
    %v1503 = vmul.u32 %v1487, 16
    %v1504 = vmul.u32 %v1488, 16
    %v1505 = vmul.u32 %v1489, 16
    %v1506 = vmul.u32 %v1490, 16
    %v1507 = vmul.u32 %v1491, 16
    %v1508 = vmul.u32 %v1492, 16
    %v1509 = vmul.u32 %v1493, 16
    %v1510 = vmul.u32 %v1494, 16
    %v1511 = vmul.u32 %v1495, 16
    %v1512 = vadd.s32 %v1496, %v1448
    %v1513 = vadd.s32 %v1497, %v1449
    %v1514 = vadd.s32 %v1498, %v1450
    %v1515 = vadd.s32 %v1499, %v1451
    %v1516 = vadd.s32 %v1500, %v1452
    %v1517 = vadd.s32 %v1501, %v1453
    %v1518 = vadd.s32 %v1502, %v1454
    %v1519 = vadd.s32 %v1503, %v1455
    %v1520 = vadd.s32 %v1504, %v1456
    %v1521 = vadd.s32 %v1505, %v1457
    %v1522 = vadd.s32 %v1506, %v1458
    %v1523 = vadd.s32 %v1507, %v1459
    %v1524 = vadd.s32 %v1508, %v1460
    %v1525 = vadd.s32 %v1509, %v1461
    %v1526 = vadd.s32 %v1510, %v1462
    %v1527 = vadd.s32 %v1511, %v1463
    %v1528 = vsel %vm1064, 1, 0
    %v1529 = vsel %vm1065, 1, 0
    %v1530 = vsel %vm1066, 1, 0
    %v1531 = vsel %vm1067, 1, 0
    %v1532 = vsel %vm1068, 1, 0
    %v1533 = vsel %vm1069, 1, 0
    %v1534 = vsel %vm1070, 1, 0
    %v1535 = vsel %vm1071, 1, 0
    %v1536 = vsel %vm1072, 1, 0
    %v1537 = vsel %vm1073, 1, 0
    %v1538 = vsel %vm1074, 1, 0
    %v1539 = vsel %vm1075, 1, 0
    %v1540 = vsel %vm1076, 1, 0
    %v1541 = vsel %vm1077, 1, 0
    %v1542 = vsel %vm1078, 1, 0
    %v1543 = vsel %vm1079, 1, 0
    %1544 = vrot.lane.b32.xlu0 %v1528, 3
    %v1545 = vpop.permute.xlu0 %1544
    %1546 = vrot.lane.b32.xlu0 %v1529, 3
    %v1547 = vpop.permute.xlu0 %1546
    %1548 = vrot.lane.b32.xlu0 %v1530, 3
    %v1549 = vpop.permute.xlu0 %1548
    %1550 = vrot.lane.b32.xlu0 %v1531, 3
    %v1551 = vpop.permute.xlu0 %1550
    %1552 = vrot.lane.b32.xlu0 %v1532, 3
    %v1553 = vpop.permute.xlu0 %1552
    %1554 = vrot.lane.b32.xlu0 %v1533, 3
    %v1555 = vpop.permute.xlu0 %1554
    %1556 = vrot.lane.b32.xlu0 %v1534, 3
    %v1557 = vpop.permute.xlu0 %1556
    %1558 = vrot.lane.b32.xlu0 %v1535, 3
    %v1559 = vpop.permute.xlu0 %1558
    %1560 = vrot.lane.b32.xlu0 %v1536, 3
    %v1561 = vpop.permute.xlu0 %1560
    %1562 = vrot.lane.b32.xlu0 %v1537, 3
    %v1563 = vpop.permute.xlu0 %1562
    %1564 = vrot.lane.b32.xlu0 %v1538, 3
    %v1565 = vpop.permute.xlu0 %1564
    %1566 = vrot.lane.b32.xlu0 %v1539, 3
    %v1567 = vpop.permute.xlu0 %1566
    %1568 = vrot.lane.b32.xlu0 %v1540, 3
    %v1569 = vpop.permute.xlu0 %1568
    %1570 = vrot.lane.b32.xlu0 %v1541, 3
    %v1571 = vpop.permute.xlu0 %1570
    %1572 = vrot.lane.b32.xlu0 %v1542, 3
    %v1573 = vpop.permute.xlu0 %1572
    %1574 = vrot.lane.b32.xlu0 %v1543, 3
    %v1575 = vpop.permute.xlu0 %1574
    %vm1576 = vcmp.ne.s32.totalorder %v1545, 0
    %vm1577 = vcmp.ne.s32.totalorder %v1547, 0
    %vm1578 = vcmp.ne.s32.totalorder %v1549, 0
    %vm1579 = vcmp.ne.s32.totalorder %v1551, 0
    %vm1580 = vcmp.ne.s32.totalorder %v1553, 0
    %vm1581 = vcmp.ne.s32.totalorder %v1555, 0
    %vm1582 = vcmp.ne.s32.totalorder %v1557, 0
    %vm1583 = vcmp.ne.s32.totalorder %v1559, 0
    %vm1584 = vcmp.ne.s32.totalorder %v1561, 0
    %vm1585 = vcmp.ne.s32.totalorder %v1563, 0
    %vm1586 = vcmp.ne.s32.totalorder %v1565, 0
    %vm1587 = vcmp.ne.s32.totalorder %v1567, 0
    %vm1588 = vcmp.ne.s32.totalorder %v1569, 0
    %vm1589 = vcmp.ne.s32.totalorder %v1571, 0
    %vm1590 = vcmp.ne.s32.totalorder %v1573, 0
    %vm1591 = vcmp.ne.s32.totalorder %v1575, 0
    %vm1592 = vmand %vm92, %vm1576
    %vm1593 = vmand %vm93, %vm1577
    %vm1594 = vmand %vm94, %vm1578
    %vm1595 = vmand %vm95, %vm1579
    %vm1596 = vmand %vm96, %vm1580
    %vm1597 = vmand %vm97, %vm1581
    %vm1598 = vmand %vm98, %vm1582
    %vm1599 = vmand %vm99, %vm1583
    %vm1600 = vmand %vm100, %vm1584
    %vm1601 = vmand %vm101, %vm1585
    %vm1602 = vmand %vm102, %vm1586
    %vm1603 = vmand %vm103, %vm1587
    %vm1604 = vmand %vm104, %vm1588
    %vm1605 = vmand %vm105, %vm1589
    %vm1606 = vmand %vm106, %vm1590
    %vm1607 = vmand %vm107, %vm1591
    %v1608 = vstv %s1062
    %vm1609 = vcmp.gt.f32.partialorder %v1046, %v1608
    %vm1610 = vcmp.gt.f32.partialorder %v1047, %v1608
    %vm1611 = vcmp.gt.f32.partialorder %v1048, %v1608
    %vm1612 = vcmp.gt.f32.partialorder %v1049, %v1608
    %vm1613 = vcmp.gt.f32.partialorder %v1050, %v1608
    %vm1614 = vcmp.gt.f32.partialorder %v1051, %v1608
    %vm1615 = vcmp.gt.f32.partialorder %v1052, %v1608
    %vm1616 = vcmp.gt.f32.partialorder %v1053, %v1608
    %vm1617 = vcmp.gt.f32.partialorder %v1054, %v1608
    %vm1618 = vcmp.gt.f32.partialorder %v1055, %v1608
    %vm1619 = vcmp.gt.f32.partialorder %v1056, %v1608
    %vm1620 = vcmp.gt.f32.partialorder %v1057, %v1608
    %vm1621 = vcmp.gt.f32.partialorder %v1058, %v1608
    %vm1622 = vcmp.gt.f32.partialorder %v1059, %v1608
    %vm1623 = vcmp.gt.f32.partialorder %v1060, %v1608
    %vm1624 = vcmp.gt.f32.partialorder %v1061, %v1608
    %v1625 = vsel %vm1609, 1, 0
    %v1626 = vsel %vm1610, 1, 0
    %v1627 = vsel %vm1611, 1, 0
    %v1628 = vsel %vm1612, 1, 0
    %v1629 = vsel %vm1613, 1, 0
    %v1630 = vsel %vm1614, 1, 0
    %v1631 = vsel %vm1615, 1, 0
    %v1632 = vsel %vm1616, 1, 0
    %v1633 = vsel %vm1617, 1, 0
    %v1634 = vsel %vm1618, 1, 0
    %v1635 = vsel %vm1619, 1, 0
    %v1636 = vsel %vm1620, 1, 0
    %v1637 = vsel %vm1621, 1, 0
    %v1638 = vsel %vm1622, 1, 0
    %v1639 = vsel %vm1623, 1, 0
    %v1640 = vsel %vm1624, 1, 0
    %1641 = vrot.lane.b32.xlu0 %v1625, 3
    %v1642 = vpop.permute.xlu0 %1641
    %1643 = vrot.lane.b32.xlu0 %v1626, 3
    %v1644 = vpop.permute.xlu0 %1643
    %1645 = vrot.lane.b32.xlu0 %v1627, 3
    %v1646 = vpop.permute.xlu0 %1645
    %1647 = vrot.lane.b32.xlu0 %v1628, 3
    %v1648 = vpop.permute.xlu0 %1647
    %1649 = vrot.lane.b32.xlu0 %v1629, 3
    %v1650 = vpop.permute.xlu0 %1649
    %1651 = vrot.lane.b32.xlu0 %v1630, 3
    %v1652 = vpop.permute.xlu0 %1651
    %1653 = vrot.lane.b32.xlu0 %v1631, 3
    %v1654 = vpop.permute.xlu0 %1653
    %1655 = vrot.lane.b32.xlu0 %v1632, 3
    %v1656 = vpop.permute.xlu0 %1655
    %1657 = vrot.lane.b32.xlu0 %v1633, 3
    %v1658 = vpop.permute.xlu0 %1657
    %1659 = vrot.lane.b32.xlu0 %v1634, 3
    %v1660 = vpop.permute.xlu0 %1659
    %1661 = vrot.lane.b32.xlu0 %v1635, 3
    %v1662 = vpop.permute.xlu0 %1661
    %1663 = vrot.lane.b32.xlu0 %v1636, 3
    %v1664 = vpop.permute.xlu0 %1663
    %1665 = vrot.lane.b32.xlu0 %v1637, 3
    %v1666 = vpop.permute.xlu0 %1665
    %1667 = vrot.lane.b32.xlu0 %v1638, 3
    %v1668 = vpop.permute.xlu0 %1667
    %1669 = vrot.lane.b32.xlu0 %v1639, 3
    %v1670 = vpop.permute.xlu0 %1669
    %1671 = vrot.lane.b32.xlu0 %v1640, 3
    %v1672 = vpop.permute.xlu0 %1671
    %vm1673 = vcmp.ne.s32.totalorder %v1642, 0
    %vm1674 = vcmp.ne.s32.totalorder %v1644, 0
    %vm1675 = vcmp.ne.s32.totalorder %v1646, 0
    %vm1676 = vcmp.ne.s32.totalorder %v1648, 0
    %vm1677 = vcmp.ne.s32.totalorder %v1650, 0
    %vm1678 = vcmp.ne.s32.totalorder %v1652, 0
    %vm1679 = vcmp.ne.s32.totalorder %v1654, 0
    %vm1680 = vcmp.ne.s32.totalorder %v1656, 0
    %vm1681 = vcmp.ne.s32.totalorder %v1658, 0
    %vm1682 = vcmp.ne.s32.totalorder %v1660, 0
    %vm1683 = vcmp.ne.s32.totalorder %v1662, 0
    %vm1684 = vcmp.ne.s32.totalorder %v1664, 0
    %vm1685 = vcmp.ne.s32.totalorder %v1666, 0
    %vm1686 = vcmp.ne.s32.totalorder %v1668, 0
    %vm1687 = vcmp.ne.s32.totalorder %v1670, 0
    %vm1688 = vcmp.ne.s32.totalorder %v1672, 0
    %vm1689 = vmand %vm1592, %vm1673
    %vm1690 = vmand %vm1593, %vm1674
    %vm1691 = vmand %vm1594, %vm1675
    %vm1692 = vmand %vm1595, %vm1676
    %vm1693 = vmand %vm1596, %vm1677
    %vm1694 = vmand %vm1597, %vm1678
    %vm1695 = vmand %vm1598, %vm1679
    %vm1696 = vmand %vm1599, %vm1680
    %vm1697 = vmand %vm1600, %vm1681
    %vm1698 = vmand %vm1601, %vm1682
    %vm1699 = vmand %vm1602, %vm1683
    %vm1700 = vmand %vm1603, %vm1684
    %vm1701 = vmand %vm1604, %vm1685
    %vm1702 = vmand %vm1605, %vm1686
    %vm1703 = vmand %vm1606, %vm1687
    %vm1704 = vmand %vm1607, %vm1688
    %v1705 = vstv %s1063
    %vm1706 = vcmp.lt.f32.partialorder %v1046, %v1705
    %vm1707 = vcmp.lt.f32.partialorder %v1047, %v1705
    %vm1708 = vcmp.lt.f32.partialorder %v1048, %v1705
    %vm1709 = vcmp.lt.f32.partialorder %v1049, %v1705
    %vm1710 = vcmp.lt.f32.partialorder %v1050, %v1705
    %vm1711 = vcmp.lt.f32.partialorder %v1051, %v1705
    %vm1712 = vcmp.lt.f32.partialorder %v1052, %v1705
    %vm1713 = vcmp.lt.f32.partialorder %v1053, %v1705
    %vm1714 = vcmp.lt.f32.partialorder %v1054, %v1705
    %vm1715 = vcmp.lt.f32.partialorder %v1055, %v1705
    %vm1716 = vcmp.lt.f32.partialorder %v1056, %v1705
    %vm1717 = vcmp.lt.f32.partialorder %v1057, %v1705
    %vm1718 = vcmp.lt.f32.partialorder %v1058, %v1705
    %vm1719 = vcmp.lt.f32.partialorder %v1059, %v1705
    %vm1720 = vcmp.lt.f32.partialorder %v1060, %v1705
    %vm1721 = vcmp.lt.f32.partialorder %v1061, %v1705
    %v1722 = vsel %vm1706, 1, 0
    %v1723 = vsel %vm1707, 1, 0
    %v1724 = vsel %vm1708, 1, 0
    %v1725 = vsel %vm1709, 1, 0
    %v1726 = vsel %vm1710, 1, 0
    %v1727 = vsel %vm1711, 1, 0
    %v1728 = vsel %vm1712, 1, 0
    %v1729 = vsel %vm1713, 1, 0
    %v1730 = vsel %vm1714, 1, 0
    %v1731 = vsel %vm1715, 1, 0
    %v1732 = vsel %vm1716, 1, 0
    %v1733 = vsel %vm1717, 1, 0
    %v1734 = vsel %vm1718, 1, 0
    %v1735 = vsel %vm1719, 1, 0
    %v1736 = vsel %vm1720, 1, 0
    %v1737 = vsel %vm1721, 1, 0
    %1738 = vrot.lane.b32.xlu0 %v1722, 3
    %v1739 = vpop.permute.xlu0 %1738
    %1740 = vrot.lane.b32.xlu0 %v1723, 3
    %v1741 = vpop.permute.xlu0 %1740
    %1742 = vrot.lane.b32.xlu0 %v1724, 3
    %v1743 = vpop.permute.xlu0 %1742
    %1744 = vrot.lane.b32.xlu0 %v1725, 3
    %v1745 = vpop.permute.xlu0 %1744
    %1746 = vrot.lane.b32.xlu0 %v1726, 3
    %v1747 = vpop.permute.xlu0 %1746
    %1748 = vrot.lane.b32.xlu0 %v1727, 3
    %v1749 = vpop.permute.xlu0 %1748
    %1750 = vrot.lane.b32.xlu0 %v1728, 3
    %v1751 = vpop.permute.xlu0 %1750
    %1752 = vrot.lane.b32.xlu0 %v1729, 3
    %v1753 = vpop.permute.xlu0 %1752
    %1754 = vrot.lane.b32.xlu0 %v1730, 3
    %v1755 = vpop.permute.xlu0 %1754
    %1756 = vrot.lane.b32.xlu0 %v1731, 3
    %v1757 = vpop.permute.xlu0 %1756
    %1758 = vrot.lane.b32.xlu0 %v1732, 3
    %v1759 = vpop.permute.xlu0 %1758
    %1760 = vrot.lane.b32.xlu0 %v1733, 3
    %v1761 = vpop.permute.xlu0 %1760
    %1762 = vrot.lane.b32.xlu0 %v1734, 3
    %v1763 = vpop.permute.xlu0 %1762
    %1764 = vrot.lane.b32.xlu0 %v1735, 3
    %v1765 = vpop.permute.xlu0 %1764
    %1766 = vrot.lane.b32.xlu0 %v1736, 3
    %v1767 = vpop.permute.xlu0 %1766
    %1768 = vrot.lane.b32.xlu0 %v1737, 3
    %v1769 = vpop.permute.xlu0 %1768
    %vm1770 = vcmp.ne.s32.totalorder %v1739, 0
    %vm1771 = vcmp.ne.s32.totalorder %v1741, 0
    %vm1772 = vcmp.ne.s32.totalorder %v1743, 0
    %vm1773 = vcmp.ne.s32.totalorder %v1745, 0
    %vm1774 = vcmp.ne.s32.totalorder %v1747, 0
    %vm1775 = vcmp.ne.s32.totalorder %v1749, 0
    %vm1776 = vcmp.ne.s32.totalorder %v1751, 0
    %vm1777 = vcmp.ne.s32.totalorder %v1753, 0
    %vm1778 = vcmp.ne.s32.totalorder %v1755, 0
    %vm1779 = vcmp.ne.s32.totalorder %v1757, 0
    %vm1780 = vcmp.ne.s32.totalorder %v1759, 0
    %vm1781 = vcmp.ne.s32.totalorder %v1761, 0
    %vm1782 = vcmp.ne.s32.totalorder %v1763, 0
    %vm1783 = vcmp.ne.s32.totalorder %v1765, 0
    %vm1784 = vcmp.ne.s32.totalorder %v1767, 0
    %vm1785 = vcmp.ne.s32.totalorder %v1769, 0
    %vm1786 = vmand %vm1689, %vm1770
    %vm1787 = vmand %vm1690, %vm1771
    %vm1788 = vmand %vm1691, %vm1772
    %vm1789 = vmand %vm1692, %vm1773
    %vm1790 = vmand %vm1693, %vm1774
    %vm1791 = vmand %vm1694, %vm1775
    %vm1792 = vmand %vm1695, %vm1776
    %vm1793 = vmand %vm1696, %vm1777
    %vm1794 = vmand %vm1697, %vm1778
    %vm1795 = vmand %vm1698, %vm1779
    %vm1796 = vmand %vm1699, %vm1780
    %vm1797 = vmand %vm1700, %vm1781
    %vm1798 = vmand %vm1701, %vm1782
    %vm1799 = vmand %vm1702, %vm1783
    %vm1800 = vmand %vm1703, %vm1784
    %vm1801 = vmand %vm1704, %vm1785
    %vm1802 = vcmp.ge.s32.totalorder %v1448, 0
    %vm1803 = vcmp.ge.s32.totalorder %v1449, 0
    %vm1804 = vcmp.ge.s32.totalorder %v1450, 0
    %vm1805 = vcmp.ge.s32.totalorder %v1451, 0
    %vm1806 = vcmp.ge.s32.totalorder %v1452, 0
    %vm1807 = vcmp.ge.s32.totalorder %v1453, 0
    %vm1808 = vcmp.ge.s32.totalorder %v1454, 0
    %vm1809 = vcmp.ge.s32.totalorder %v1455, 0
    %vm1810 = vcmp.ge.s32.totalorder %v1456, 0
    %vm1811 = vcmp.ge.s32.totalorder %v1457, 0
    %vm1812 = vcmp.ge.s32.totalorder %v1458, 0
    %vm1813 = vcmp.ge.s32.totalorder %v1459, 0
    %vm1814 = vcmp.ge.s32.totalorder %v1460, 0
    %vm1815 = vcmp.ge.s32.totalorder %v1461, 0
    %vm1816 = vcmp.ge.s32.totalorder %v1462, 0
    %vm1817 = vcmp.ge.s32.totalorder %v1463, 0
    %v1818 = vsel %vm1802, 1, 0
    %v1819 = vsel %vm1803, 1, 0
    %v1820 = vsel %vm1804, 1, 0
    %v1821 = vsel %vm1805, 1, 0
    %v1822 = vsel %vm1806, 1, 0
    %v1823 = vsel %vm1807, 1, 0
    %v1824 = vsel %vm1808, 1, 0
    %v1825 = vsel %vm1809, 1, 0
    %v1826 = vsel %vm1810, 1, 0
    %v1827 = vsel %vm1811, 1, 0
    %v1828 = vsel %vm1812, 1, 0
    %v1829 = vsel %vm1813, 1, 0
    %v1830 = vsel %vm1814, 1, 0
    %v1831 = vsel %vm1815, 1, 0
    %v1832 = vsel %vm1816, 1, 0
    %v1833 = vsel %vm1817, 1, 0
    %1834 = vrot.lane.b32.xlu0 %v1818, 3
    %v1835 = vpop.permute.xlu0 %1834
    %1836 = vrot.lane.b32.xlu0 %v1819, 3
    %v1837 = vpop.permute.xlu0 %1836
    %1838 = vrot.lane.b32.xlu0 %v1820, 3
    %v1839 = vpop.permute.xlu0 %1838
    %1840 = vrot.lane.b32.xlu0 %v1821, 3
    %v1841 = vpop.permute.xlu0 %1840
    %1842 = vrot.lane.b32.xlu0 %v1822, 3
    %v1843 = vpop.permute.xlu0 %1842
    %1844 = vrot.lane.b32.xlu0 %v1823, 3
    %v1845 = vpop.permute.xlu0 %1844
    %1846 = vrot.lane.b32.xlu0 %v1824, 3
    %v1847 = vpop.permute.xlu0 %1846
    %1848 = vrot.lane.b32.xlu0 %v1825, 3
    %v1849 = vpop.permute.xlu0 %1848
    %1850 = vrot.lane.b32.xlu0 %v1826, 3
    %v1851 = vpop.permute.xlu0 %1850
    %1852 = vrot.lane.b32.xlu0 %v1827, 3
    %v1853 = vpop.permute.xlu0 %1852
    %1854 = vrot.lane.b32.xlu0 %v1828, 3
    %v1855 = vpop.permute.xlu0 %1854
    %1856 = vrot.lane.b32.xlu0 %v1829, 3
    %v1857 = vpop.permute.xlu0 %1856
    %1858 = vrot.lane.b32.xlu0 %v1830, 3
    %v1859 = vpop.permute.xlu0 %1858
    %1860 = vrot.lane.b32.xlu0 %v1831, 3
    %v1861 = vpop.permute.xlu0 %1860
    %1862 = vrot.lane.b32.xlu0 %v1832, 3
    %v1863 = vpop.permute.xlu0 %1862
    %1864 = vrot.lane.b32.xlu0 %v1833, 3
    %v1865 = vpop.permute.xlu0 %1864
    %vm1866 = vcmp.ne.s32.totalorder %v1835, 0
    %vm1867 = vcmp.ne.s32.totalorder %v1837, 0
    %vm1868 = vcmp.ne.s32.totalorder %v1839, 0
    %vm1869 = vcmp.ne.s32.totalorder %v1841, 0
    %vm1870 = vcmp.ne.s32.totalorder %v1843, 0
    %vm1871 = vcmp.ne.s32.totalorder %v1845, 0
    %vm1872 = vcmp.ne.s32.totalorder %v1847, 0
    %vm1873 = vcmp.ne.s32.totalorder %v1849, 0
    %vm1874 = vcmp.ne.s32.totalorder %v1851, 0
    %vm1875 = vcmp.ne.s32.totalorder %v1853, 0
    %vm1876 = vcmp.ne.s32.totalorder %v1855, 0
    %vm1877 = vcmp.ne.s32.totalorder %v1857, 0
    %vm1878 = vcmp.ne.s32.totalorder %v1859, 0
    %vm1879 = vcmp.ne.s32.totalorder %v1861, 0
    %vm1880 = vcmp.ne.s32.totalorder %v1863, 0
    %vm1881 = vcmp.ne.s32.totalorder %v1865, 0
    %vm1882 = vmand %vm1786, %vm1866
    %vm1883 = vmand %vm1787, %vm1867
    %vm1884 = vmand %vm1788, %vm1868
    %vm1885 = vmand %vm1789, %vm1869
    %vm1886 = vmand %vm1790, %vm1870
    %vm1887 = vmand %vm1791, %vm1871
    %vm1888 = vmand %vm1792, %vm1872
    %vm1889 = vmand %vm1793, %vm1873
    %vm1890 = vmand %vm1794, %vm1874
    %vm1891 = vmand %vm1795, %vm1875
    %vm1892 = vmand %vm1796, %vm1876
    %vm1893 = vmand %vm1797, %vm1877
    %vm1894 = vmand %vm1798, %vm1878
    %vm1895 = vmand %vm1799, %vm1879
    %vm1896 = vmand %vm1800, %vm1880
    %vm1897 = vmand %vm1801, %vm1881
    %vm1898 = vcmp.lt.s32.totalorder %v1448, 16
    %vm1899 = vcmp.lt.s32.totalorder %v1449, 16
    %vm1900 = vcmp.lt.s32.totalorder %v1450, 16
    %vm1901 = vcmp.lt.s32.totalorder %v1451, 16
    %vm1902 = vcmp.lt.s32.totalorder %v1452, 16
    %vm1903 = vcmp.lt.s32.totalorder %v1453, 16
    %vm1904 = vcmp.lt.s32.totalorder %v1454, 16
    %vm1905 = vcmp.lt.s32.totalorder %v1455, 16
    %vm1906 = vcmp.lt.s32.totalorder %v1456, 16
    %vm1907 = vcmp.lt.s32.totalorder %v1457, 16
    %vm1908 = vcmp.lt.s32.totalorder %v1458, 16
    %vm1909 = vcmp.lt.s32.totalorder %v1459, 16
    %vm1910 = vcmp.lt.s32.totalorder %v1460, 16
    %vm1911 = vcmp.lt.s32.totalorder %v1461, 16
    %vm1912 = vcmp.lt.s32.totalorder %v1462, 16
    %vm1913 = vcmp.lt.s32.totalorder %v1463, 16
    %v1914 = vsel %vm1898, 1, 0
    %v1915 = vsel %vm1899, 1, 0
    %v1916 = vsel %vm1900, 1, 0
    %v1917 = vsel %vm1901, 1, 0
    %v1918 = vsel %vm1902, 1, 0
    %v1919 = vsel %vm1903, 1, 0
    %v1920 = vsel %vm1904, 1, 0
    %v1921 = vsel %vm1905, 1, 0
    %v1922 = vsel %vm1906, 1, 0
    %v1923 = vsel %vm1907, 1, 0
    %v1924 = vsel %vm1908, 1, 0
    %v1925 = vsel %vm1909, 1, 0
    %v1926 = vsel %vm1910, 1, 0
    %v1927 = vsel %vm1911, 1, 0
    %v1928 = vsel %vm1912, 1, 0
    %v1929 = vsel %vm1913, 1, 0
    %1930 = vrot.lane.b32.xlu0 %v1914, 3
    %v1931 = vpop.permute.xlu0 %1930
    %1932 = vrot.lane.b32.xlu0 %v1915, 3
    %v1933 = vpop.permute.xlu0 %1932
    %1934 = vrot.lane.b32.xlu0 %v1916, 3
    %v1935 = vpop.permute.xlu0 %1934
    %1936 = vrot.lane.b32.xlu0 %v1917, 3
    %v1937 = vpop.permute.xlu0 %1936
    %1938 = vrot.lane.b32.xlu0 %v1918, 3
    %v1939 = vpop.permute.xlu0 %1938
    %1940 = vrot.lane.b32.xlu0 %v1919, 3
    %v1941 = vpop.permute.xlu0 %1940
    %1942 = vrot.lane.b32.xlu0 %v1920, 3
    %v1943 = vpop.permute.xlu0 %1942
    %1944 = vrot.lane.b32.xlu0 %v1921, 3
    %v1945 = vpop.permute.xlu0 %1944
    %1946 = vrot.lane.b32.xlu0 %v1922, 3
    %v1947 = vpop.permute.xlu0 %1946
    %1948 = vrot.lane.b32.xlu0 %v1923, 3
    %v1949 = vpop.permute.xlu0 %1948
    %1950 = vrot.lane.b32.xlu0 %v1924, 3
    %v1951 = vpop.permute.xlu0 %1950
    %1952 = vrot.lane.b32.xlu0 %v1925, 3
    %v1953 = vpop.permute.xlu0 %1952
    %1954 = vrot.lane.b32.xlu0 %v1926, 3
    %v1955 = vpop.permute.xlu0 %1954
    %1956 = vrot.lane.b32.xlu0 %v1927, 3
    %v1957 = vpop.permute.xlu0 %1956
    %1958 = vrot.lane.b32.xlu0 %v1928, 3
    %v1959 = vpop.permute.xlu0 %1958
    %1960 = vrot.lane.b32.xlu0 %v1929, 3
    %v1961 = vpop.permute.xlu0 %1960
    %vm1962 = vcmp.ne.s32.totalorder %v1931, 0
    %vm1963 = vcmp.ne.s32.totalorder %v1933, 0
    %vm1964 = vcmp.ne.s32.totalorder %v1935, 0
    %vm1965 = vcmp.ne.s32.totalorder %v1937, 0
    %vm1966 = vcmp.ne.s32.totalorder %v1939, 0
    %vm1967 = vcmp.ne.s32.totalorder %v1941, 0
    %vm1968 = vcmp.ne.s32.totalorder %v1943, 0
    %vm1969 = vcmp.ne.s32.totalorder %v1945, 0
    %vm1970 = vcmp.ne.s32.totalorder %v1947, 0
    %vm1971 = vcmp.ne.s32.totalorder %v1949, 0
    %vm1972 = vcmp.ne.s32.totalorder %v1951, 0
    %vm1973 = vcmp.ne.s32.totalorder %v1953, 0
    %vm1974 = vcmp.ne.s32.totalorder %v1955, 0
    %vm1975 = vcmp.ne.s32.totalorder %v1957, 0
    %vm1976 = vcmp.ne.s32.totalorder %v1959, 0
    %vm1977 = vcmp.ne.s32.totalorder %v1961, 0
    %vm1978 = vmand %vm1882, %vm1962
    %vm1979 = vmand %vm1883, %vm1963
    %vm1980 = vmand %vm1884, %vm1964
    %vm1981 = vmand %vm1885, %vm1965
    %vm1982 = vmand %vm1886, %vm1966
    %vm1983 = vmand %vm1887, %vm1967
    %vm1984 = vmand %vm1888, %vm1968
    %vm1985 = vmand %vm1889, %vm1969
    %vm1986 = vmand %vm1890, %vm1970
    %vm1987 = vmand %vm1891, %vm1971
    %vm1988 = vmand %vm1892, %vm1972
    %vm1989 = vmand %vm1893, %vm1973
    %vm1990 = vmand %vm1894, %vm1974
    %vm1991 = vmand %vm1895, %vm1975
    %vm1992 = vmand %vm1896, %vm1976
    %vm1993 = vmand %vm1897, %vm1977
    %vm1994 = vcmp.ge.s32.totalorder %v1480, 0
    %vm1995 = vcmp.ge.s32.totalorder %v1481, 0
    %vm1996 = vcmp.ge.s32.totalorder %v1482, 0
    %vm1997 = vcmp.ge.s32.totalorder %v1483, 0
    %vm1998 = vcmp.ge.s32.totalorder %v1484, 0
    %vm1999 = vcmp.ge.s32.totalorder %v1485, 0
    %vm2000 = vcmp.ge.s32.totalorder %v1486, 0
    %vm2001 = vcmp.ge.s32.totalorder %v1487, 0
    %vm2002 = vcmp.ge.s32.totalorder %v1488, 0
    %vm2003 = vcmp.ge.s32.totalorder %v1489, 0
    %vm2004 = vcmp.ge.s32.totalorder %v1490, 0
    %vm2005 = vcmp.ge.s32.totalorder %v1491, 0
    %vm2006 = vcmp.ge.s32.totalorder %v1492, 0
    %vm2007 = vcmp.ge.s32.totalorder %v1493, 0
    %vm2008 = vcmp.ge.s32.totalorder %v1494, 0
    %vm2009 = vcmp.ge.s32.totalorder %v1495, 0
    %v2010 = vsel %vm1994, 1, 0
    %v2011 = vsel %vm1995, 1, 0
    %v2012 = vsel %vm1996, 1, 0
    %v2013 = vsel %vm1997, 1, 0
    %v2014 = vsel %vm1998, 1, 0
    %v2015 = vsel %vm1999, 1, 0
    %v2016 = vsel %vm2000, 1, 0
    %v2017 = vsel %vm2001, 1, 0
    %v2018 = vsel %vm2002, 1, 0
    %v2019 = vsel %vm2003, 1, 0
    %v2020 = vsel %vm2004, 1, 0
    %v2021 = vsel %vm2005, 1, 0
    %v2022 = vsel %vm2006, 1, 0
    %v2023 = vsel %vm2007, 1, 0
    %v2024 = vsel %vm2008, 1, 0
    %v2025 = vsel %vm2009, 1, 0
    %2026 = vrot.lane.b32.xlu0 %v2010, 3
    %v2027 = vpop.permute.xlu0 %2026
    %2028 = vrot.lane.b32.xlu0 %v2011, 3
    %v2029 = vpop.permute.xlu0 %2028
    %2030 = vrot.lane.b32.xlu0 %v2012, 3
    %v2031 = vpop.permute.xlu0 %2030
    %2032 = vrot.lane.b32.xlu0 %v2013, 3
    %v2033 = vpop.permute.xlu0 %2032
    %2034 = vrot.lane.b32.xlu0 %v2014, 3
    %v2035 = vpop.permute.xlu0 %2034
    %2036 = vrot.lane.b32.xlu0 %v2015, 3
    %v2037 = vpop.permute.xlu0 %2036
    %2038 = vrot.lane.b32.xlu0 %v2016, 3
    %v2039 = vpop.permute.xlu0 %2038
    %2040 = vrot.lane.b32.xlu0 %v2017, 3
    %v2041 = vpop.permute.xlu0 %2040
    %2042 = vrot.lane.b32.xlu0 %v2018, 3
    %v2043 = vpop.permute.xlu0 %2042
    %2044 = vrot.lane.b32.xlu0 %v2019, 3
    %v2045 = vpop.permute.xlu0 %2044
    %2046 = vrot.lane.b32.xlu0 %v2020, 3
    %v2047 = vpop.permute.xlu0 %2046
    %2048 = vrot.lane.b32.xlu0 %v2021, 3
    %v2049 = vpop.permute.xlu0 %2048
    %2050 = vrot.lane.b32.xlu0 %v2022, 3
    %v2051 = vpop.permute.xlu0 %2050
    %2052 = vrot.lane.b32.xlu0 %v2023, 3
    %v2053 = vpop.permute.xlu0 %2052
    %2054 = vrot.lane.b32.xlu0 %v2024, 3
    %v2055 = vpop.permute.xlu0 %2054
    %2056 = vrot.lane.b32.xlu0 %v2025, 3
    %v2057 = vpop.permute.xlu0 %2056
    %vm2058 = vcmp.ne.s32.totalorder %v2027, 0
    %vm2059 = vcmp.ne.s32.totalorder %v2029, 0
    %vm2060 = vcmp.ne.s32.totalorder %v2031, 0
    %vm2061 = vcmp.ne.s32.totalorder %v2033, 0
    %vm2062 = vcmp.ne.s32.totalorder %v2035, 0
    %vm2063 = vcmp.ne.s32.totalorder %v2037, 0
    %vm2064 = vcmp.ne.s32.totalorder %v2039, 0
    %vm2065 = vcmp.ne.s32.totalorder %v2041, 0
    %vm2066 = vcmp.ne.s32.totalorder %v2043, 0
    %vm2067 = vcmp.ne.s32.totalorder %v2045, 0
    %vm2068 = vcmp.ne.s32.totalorder %v2047, 0
    %vm2069 = vcmp.ne.s32.totalorder %v2049, 0
    %vm2070 = vcmp.ne.s32.totalorder %v2051, 0
    %vm2071 = vcmp.ne.s32.totalorder %v2053, 0
    %vm2072 = vcmp.ne.s32.totalorder %v2055, 0
    %vm2073 = vcmp.ne.s32.totalorder %v2057, 0
    %vm2074 = vmand %vm1978, %vm2058
    %vm2075 = vmand %vm1979, %vm2059
    %vm2076 = vmand %vm1980, %vm2060
    %vm2077 = vmand %vm1981, %vm2061
    %vm2078 = vmand %vm1982, %vm2062
    %vm2079 = vmand %vm1983, %vm2063
    %vm2080 = vmand %vm1984, %vm2064
    %vm2081 = vmand %vm1985, %vm2065
    %vm2082 = vmand %vm1986, %vm2066
    %vm2083 = vmand %vm1987, %vm2067
    %vm2084 = vmand %vm1988, %vm2068
    %vm2085 = vmand %vm1989, %vm2069
    %vm2086 = vmand %vm1990, %vm2070
    %vm2087 = vmand %vm1991, %vm2071
    %vm2088 = vmand %vm1992, %vm2072
    %vm2089 = vmand %vm1993, %vm2073
    %vm2090 = vcmp.lt.s32.totalorder %v1480, 16
    %vm2091 = vcmp.lt.s32.totalorder %v1481, 16
    %vm2092 = vcmp.lt.s32.totalorder %v1482, 16
    %vm2093 = vcmp.lt.s32.totalorder %v1483, 16
    %vm2094 = vcmp.lt.s32.totalorder %v1484, 16
    %vm2095 = vcmp.lt.s32.totalorder %v1485, 16
    %vm2096 = vcmp.lt.s32.totalorder %v1486, 16
    %vm2097 = vcmp.lt.s32.totalorder %v1487, 16
    %vm2098 = vcmp.lt.s32.totalorder %v1488, 16
    %vm2099 = vcmp.lt.s32.totalorder %v1489, 16
    %vm2100 = vcmp.lt.s32.totalorder %v1490, 16
    %vm2101 = vcmp.lt.s32.totalorder %v1491, 16
    %vm2102 = vcmp.lt.s32.totalorder %v1492, 16
    %vm2103 = vcmp.lt.s32.totalorder %v1493, 16
    %vm2104 = vcmp.lt.s32.totalorder %v1494, 16
    %vm2105 = vcmp.lt.s32.totalorder %v1495, 16
    %v2106 = vsel %vm2090, 1, 0
    %v2107 = vsel %vm2091, 1, 0
    %v2108 = vsel %vm2092, 1, 0
    %v2109 = vsel %vm2093, 1, 0
    %v2110 = vsel %vm2094, 1, 0
    %v2111 = vsel %vm2095, 1, 0
    %v2112 = vsel %vm2096, 1, 0
    %v2113 = vsel %vm2097, 1, 0
    %v2114 = vsel %vm2098, 1, 0
    %v2115 = vsel %vm2099, 1, 0
    %v2116 = vsel %vm2100, 1, 0
    %v2117 = vsel %vm2101, 1, 0
    %v2118 = vsel %vm2102, 1, 0
    %v2119 = vsel %vm2103, 1, 0
    %v2120 = vsel %vm2104, 1, 0
    %v2121 = vsel %vm2105, 1, 0
    %2122 = vrot.lane.b32.xlu0 %v2106, 3
    %v2123 = vpop.permute.xlu0 %2122
    %2124 = vrot.lane.b32.xlu0 %v2107, 3
    %v2125 = vpop.permute.xlu0 %2124
    %2126 = vrot.lane.b32.xlu0 %v2108, 3
    %v2127 = vpop.permute.xlu0 %2126
    %2128 = vrot.lane.b32.xlu0 %v2109, 3
    %v2129 = vpop.permute.xlu0 %2128
    %2130 = vrot.lane.b32.xlu0 %v2110, 3
    %v2131 = vpop.permute.xlu0 %2130
    %2132 = vrot.lane.b32.xlu0 %v2111, 3
    %v2133 = vpop.permute.xlu0 %2132
    %2134 = vrot.lane.b32.xlu0 %v2112, 3
    %v2135 = vpop.permute.xlu0 %2134
    %2136 = vrot.lane.b32.xlu0 %v2113, 3
    %v2137 = vpop.permute.xlu0 %2136
    %2138 = vrot.lane.b32.xlu0 %v2114, 3
    %v2139 = vpop.permute.xlu0 %2138
    %2140 = vrot.lane.b32.xlu0 %v2115, 3
    %v2141 = vpop.permute.xlu0 %2140
    %2142 = vrot.lane.b32.xlu0 %v2116, 3
    %v2143 = vpop.permute.xlu0 %2142
    %2144 = vrot.lane.b32.xlu0 %v2117, 3
    %v2145 = vpop.permute.xlu0 %2144
    %2146 = vrot.lane.b32.xlu0 %v2118, 3
    %v2147 = vpop.permute.xlu0 %2146
    %2148 = vrot.lane.b32.xlu0 %v2119, 3
    %v2149 = vpop.permute.xlu0 %2148
    %2150 = vrot.lane.b32.xlu0 %v2120, 3
    %v2151 = vpop.permute.xlu0 %2150
    %2152 = vrot.lane.b32.xlu0 %v2121, 3
    %v2153 = vpop.permute.xlu0 %2152
    %vm2154 = vcmp.ne.s32.totalorder %v2123, 0
    %vm2155 = vcmp.ne.s32.totalorder %v2125, 0
    %vm2156 = vcmp.ne.s32.totalorder %v2127, 0
    %vm2157 = vcmp.ne.s32.totalorder %v2129, 0
    %vm2158 = vcmp.ne.s32.totalorder %v2131, 0
    %vm2159 = vcmp.ne.s32.totalorder %v2133, 0
    %vm2160 = vcmp.ne.s32.totalorder %v2135, 0
    %vm2161 = vcmp.ne.s32.totalorder %v2137, 0
    %vm2162 = vcmp.ne.s32.totalorder %v2139, 0
    %vm2163 = vcmp.ne.s32.totalorder %v2141, 0
    %vm2164 = vcmp.ne.s32.totalorder %v2143, 0
    %vm2165 = vcmp.ne.s32.totalorder %v2145, 0
    %vm2166 = vcmp.ne.s32.totalorder %v2147, 0
    %vm2167 = vcmp.ne.s32.totalorder %v2149, 0
    %vm2168 = vcmp.ne.s32.totalorder %v2151, 0
    %vm2169 = vcmp.ne.s32.totalorder %v2153, 0
    %vm2170 = vmand %vm2074, %vm2154
    %vm2171 = vmand %vm2075, %vm2155
    %vm2172 = vmand %vm2076, %vm2156
    %vm2173 = vmand %vm2077, %vm2157
    %vm2174 = vmand %vm2078, %vm2158
    %vm2175 = vmand %vm2079, %vm2159
    %vm2176 = vmand %vm2080, %vm2160
    %vm2177 = vmand %vm2081, %vm2161
    %vm2178 = vmand %vm2082, %vm2162
    %vm2179 = vmand %vm2083, %vm2163
    %vm2180 = vmand %vm2084, %vm2164
    %vm2181 = vmand %vm2085, %vm2165
    %vm2182 = vmand %vm2086, %vm2166
    %vm2183 = vmand %vm2087, %vm2167
    %vm2184 = vmand %vm2088, %vm2168
    %vm2185 = vmand %vm2089, %vm2169
    %s2186 = smul.u32 0, 256
    %v2187 = vlaneseq
    %v2188 = vand.u32 %v2187, 127
    %v2189 = vadd.s32 %v2188, 128
    %v2190 = vstv %s2186
    %v2191 = vadd.s32 %v2188, %v2190
    %v2192 = vadd.s32 %v2189, %v2190
    %2193 = vset.pattern.permute.xlu0 0
    %2194 = vperm.xlu0 %2193, %v1512
    %v2195 = vpop.permute.xlu0 %2194
    %2196 = vset.pattern.permute.xlu0 0
    %2197 = vperm.xlu0 %2196, %v1513
    %v2198 = vpop.permute.xlu0 %2197
    %2199 = vset.pattern.permute.xlu0 0
    %2200 = vperm.xlu0 %2199, %v1514
    %v2201 = vpop.permute.xlu0 %2200
    %2202 = vset.pattern.permute.xlu0 0
    %2203 = vperm.xlu0 %2202, %v1515
    %v2204 = vpop.permute.xlu0 %2203
    %2205 = vset.pattern.permute.xlu0 0
    %2206 = vperm.xlu0 %2205, %v1516
    %v2207 = vpop.permute.xlu0 %2206
    %2208 = vset.pattern.permute.xlu0 0
    %2209 = vperm.xlu0 %2208, %v1517
    %v2210 = vpop.permute.xlu0 %2209
    %2211 = vset.pattern.permute.xlu0 0
    %2212 = vperm.xlu0 %2211, %v1518
    %v2213 = vpop.permute.xlu0 %2212
    %2214 = vset.pattern.permute.xlu0 0
    %2215 = vperm.xlu0 %2214, %v1519
    %v2216 = vpop.permute.xlu0 %2215
    %2217 = vset.pattern.permute.xlu0 0
    %2218 = vperm.xlu0 %2217, %v1520
    %v2219 = vpop.permute.xlu0 %2218
    %2220 = vset.pattern.permute.xlu0 0
    %2221 = vperm.xlu0 %2220, %v1521
    %v2222 = vpop.permute.xlu0 %2221
    %2223 = vset.pattern.permute.xlu0 0
    %2224 = vperm.xlu0 %2223, %v1522
    %v2225 = vpop.permute.xlu0 %2224
    %2226 = vset.pattern.permute.xlu0 0
    %2227 = vperm.xlu0 %2226, %v1523
    %v2228 = vpop.permute.xlu0 %2227
    %2229 = vset.pattern.permute.xlu0 0
    %2230 = vperm.xlu0 %2229, %v1524
    %v2231 = vpop.permute.xlu0 %2230
    %2232 = vset.pattern.permute.xlu0 0
    %2233 = vperm.xlu0 %2232, %v1525
    %v2234 = vpop.permute.xlu0 %2233
    %2235 = vset.pattern.permute.xlu0 0
    %2236 = vperm.xlu0 %2235, %v1526
    %v2237 = vpop.permute.xlu0 %2236
    %2238 = vset.pattern.permute.xlu0 0
    %2239 = vperm.xlu0 %2238, %v1527
    %v2240 = vpop.permute.xlu0 %2239
    %vm2241 = vcmp.eq.s32.totalorder %v2191, %v2195
    %vm2242 = vcmp.eq.s32.totalorder %v2192, %v2195
    %vm2243 = vcmp.eq.s32.totalorder %v2191, %v2198
    %vm2244 = vcmp.eq.s32.totalorder %v2192, %v2198
    %vm2245 = vcmp.eq.s32.totalorder %v2191, %v2201
    %vm2246 = vcmp.eq.s32.totalorder %v2192, %v2201
    %vm2247 = vcmp.eq.s32.totalorder %v2191, %v2204
    %vm2248 = vcmp.eq.s32.totalorder %v2192, %v2204
    %vm2249 = vcmp.eq.s32.totalorder %v2191, %v2207
    %vm2250 = vcmp.eq.s32.totalorder %v2192, %v2207
    %vm2251 = vcmp.eq.s32.totalorder %v2191, %v2210
    %vm2252 = vcmp.eq.s32.totalorder %v2192, %v2210
    %vm2253 = vcmp.eq.s32.totalorder %v2191, %v2213
    %vm2254 = vcmp.eq.s32.totalorder %v2192, %v2213
    %vm2255 = vcmp.eq.s32.totalorder %v2191, %v2216
    %vm2256 = vcmp.eq.s32.totalorder %v2192, %v2216
    %vm2257 = vcmp.eq.s32.totalorder %v2191, %v2219
    %vm2258 = vcmp.eq.s32.totalorder %v2192, %v2219
    %vm2259 = vcmp.eq.s32.totalorder %v2191, %v2222
    %vm2260 = vcmp.eq.s32.totalorder %v2192, %v2222
    %vm2261 = vcmp.eq.s32.totalorder %v2191, %v2225
    %vm2262 = vcmp.eq.s32.totalorder %v2192, %v2225
    %vm2263 = vcmp.eq.s32.totalorder %v2191, %v2228
    %vm2264 = vcmp.eq.s32.totalorder %v2192, %v2228
    %vm2265 = vcmp.eq.s32.totalorder %v2191, %v2231
    %vm2266 = vcmp.eq.s32.totalorder %v2192, %v2231
    %vm2267 = vcmp.eq.s32.totalorder %v2191, %v2234
    %vm2268 = vcmp.eq.s32.totalorder %v2192, %v2234
    %vm2269 = vcmp.eq.s32.totalorder %v2191, %v2237
    %vm2270 = vcmp.eq.s32.totalorder %v2192, %v2237
    %vm2271 = vcmp.eq.s32.totalorder %v2191, %v2240
    %vm2272 = vcmp.eq.s32.totalorder %v2192, %v2240
    %v2273 = vsel %vm2170, 1, 0
    %v2274 = vsel %vm2171, 1, 0
    %v2275 = vsel %vm2172, 1, 0
    %v2276 = vsel %vm2173, 1, 0
    %v2277 = vsel %vm2174, 1, 0
    %v2278 = vsel %vm2175, 1, 0
    %v2279 = vsel %vm2176, 1, 0
    %v2280 = vsel %vm2177, 1, 0
    %v2281 = vsel %vm2178, 1, 0
    %v2282 = vsel %vm2179, 1, 0
    %v2283 = vsel %vm2180, 1, 0
    %v2284 = vsel %vm2181, 1, 0
    %v2285 = vsel %vm2182, 1, 0
    %v2286 = vsel %vm2183, 1, 0
    %v2287 = vsel %vm2184, 1, 0
    %v2288 = vsel %vm2185, 1, 0
    %2289 = vset.pattern.permute.xlu0 3
    %2290 = vperm.xlu0 %2289, %v2273
    %v2291 = vpop.permute.xlu0 %2290
    %2292 = vset.pattern.permute.xlu0 3
    %2293 = vperm.xlu0 %2292, %v2274
    %v2294 = vpop.permute.xlu0 %2293
    %2295 = vset.pattern.permute.xlu0 3
    %2296 = vperm.xlu0 %2295, %v2275
    %v2297 = vpop.permute.xlu0 %2296
    %2298 = vset.pattern.permute.xlu0 3
    %2299 = vperm.xlu0 %2298, %v2276
    %v2300 = vpop.permute.xlu0 %2299
    %2301 = vset.pattern.permute.xlu0 3
    %2302 = vperm.xlu0 %2301, %v2277
    %v2303 = vpop.permute.xlu0 %2302
    %2304 = vset.pattern.permute.xlu0 3
    %2305 = vperm.xlu0 %2304, %v2278
    %v2306 = vpop.permute.xlu0 %2305
    %2307 = vset.pattern.permute.xlu0 3
    %2308 = vperm.xlu0 %2307, %v2279
    %v2309 = vpop.permute.xlu0 %2308
    %2310 = vset.pattern.permute.xlu0 3
    %2311 = vperm.xlu0 %2310, %v2280
    %v2312 = vpop.permute.xlu0 %2311
    %2313 = vset.pattern.permute.xlu0 3
    %2314 = vperm.xlu0 %2313, %v2281
    %v2315 = vpop.permute.xlu0 %2314
    %2316 = vset.pattern.permute.xlu0 3
    %2317 = vperm.xlu0 %2316, %v2282
    %v2318 = vpop.permute.xlu0 %2317
    %2319 = vset.pattern.permute.xlu0 3
    %2320 = vperm.xlu0 %2319, %v2283
    %v2321 = vpop.permute.xlu0 %2320
    %2322 = vset.pattern.permute.xlu0 3
    %2323 = vperm.xlu0 %2322, %v2284
    %v2324 = vpop.permute.xlu0 %2323
    %2325 = vset.pattern.permute.xlu0 3
    %2326 = vperm.xlu0 %2325, %v2285
    %v2327 = vpop.permute.xlu0 %2326
    %2328 = vset.pattern.permute.xlu0 3
    %2329 = vperm.xlu0 %2328, %v2286
    %v2330 = vpop.permute.xlu0 %2329
    %2331 = vset.pattern.permute.xlu0 3
    %2332 = vperm.xlu0 %2331, %v2287
    %v2333 = vpop.permute.xlu0 %2332
    %2334 = vset.pattern.permute.xlu0 3
    %2335 = vperm.xlu0 %2334, %v2288
    %v2336 = vpop.permute.xlu0 %2335
    %vm2337 = vcmp.eq.s32.totalorder %v2291, 1
    %vm2338 = vcmp.eq.s32.totalorder %v2294, 1
    %vm2339 = vcmp.eq.s32.totalorder %v2297, 1
    %vm2340 = vcmp.eq.s32.totalorder %v2300, 1
    %vm2341 = vcmp.eq.s32.totalorder %v2303, 1
    %vm2342 = vcmp.eq.s32.totalorder %v2306, 1
    %vm2343 = vcmp.eq.s32.totalorder %v2309, 1
    %vm2344 = vcmp.eq.s32.totalorder %v2312, 1
    %vm2345 = vcmp.eq.s32.totalorder %v2315, 1
    %vm2346 = vcmp.eq.s32.totalorder %v2318, 1
    %vm2347 = vcmp.eq.s32.totalorder %v2321, 1
    %vm2348 = vcmp.eq.s32.totalorder %v2324, 1
    %vm2349 = vcmp.eq.s32.totalorder %v2327, 1
    %vm2350 = vcmp.eq.s32.totalorder %v2330, 1
    %vm2351 = vcmp.eq.s32.totalorder %v2333, 1
    %vm2352 = vcmp.eq.s32.totalorder %v2336, 1
    %vm2353 = vmand %vm2241, %vm2337
    %vm2354 = vmand %vm2242, %vm2337
    %vm2355 = vmand %vm2243, %vm2338
    %vm2356 = vmand %vm2244, %vm2338
    %vm2357 = vmand %vm2245, %vm2339
    %vm2358 = vmand %vm2246, %vm2339
    %vm2359 = vmand %vm2247, %vm2340
    %vm2360 = vmand %vm2248, %vm2340
    %vm2361 = vmand %vm2249, %vm2341
    %vm2362 = vmand %vm2250, %vm2341
    %vm2363 = vmand %vm2251, %vm2342
    %vm2364 = vmand %vm2252, %vm2342
    %vm2365 = vmand %vm2253, %vm2343
    %vm2366 = vmand %vm2254, %vm2343
    %vm2367 = vmand %vm2255, %vm2344
    %vm2368 = vmand %vm2256, %vm2344
    %vm2369 = vmand %vm2257, %vm2345
    %vm2370 = vmand %vm2258, %vm2345
    %vm2371 = vmand %vm2259, %vm2346
    %vm2372 = vmand %vm2260, %vm2346
    %vm2373 = vmand %vm2261, %vm2347
    %vm2374 = vmand %vm2262, %vm2347
    %vm2375 = vmand %vm2263, %vm2348
    %vm2376 = vmand %vm2264, %vm2348
    %vm2377 = vmand %vm2265, %vm2349
    %vm2378 = vmand %vm2266, %vm2349
    %vm2379 = vmand %vm2267, %vm2350
    %vm2380 = vmand %vm2268, %vm2350
    %vm2381 = vmand %vm2269, %vm2351
    %vm2382 = vmand %vm2270, %vm2351
    %vm2383 = vmand %vm2271, %vm2352
    %vm2384 = vmand %vm2272, %vm2352
    %2386 = vset.pattern.permute.xlu0 0
    %2387 = vperm.xlu0 %2386, %v1046
    %v2388 = vpop.permute.xlu0 %2387
    %2391 = vset.pattern.permute.xlu0 0
    %2392 = vperm.xlu0 %2391, %v1047
    %v2393 = vpop.permute.xlu0 %2392
    %2396 = vset.pattern.permute.xlu0 0
    %2397 = vperm.xlu0 %2396, %v1048
    %v2398 = vpop.permute.xlu0 %2397
    %2401 = vset.pattern.permute.xlu0 0
    %2402 = vperm.xlu0 %2401, %v1049
    %v2403 = vpop.permute.xlu0 %2402
    %2406 = vset.pattern.permute.xlu0 0
    %2407 = vperm.xlu0 %2406, %v1050
    %v2408 = vpop.permute.xlu0 %2407
    %2411 = vset.pattern.permute.xlu0 0
    %2412 = vperm.xlu0 %2411, %v1051
    %v2413 = vpop.permute.xlu0 %2412
    %2416 = vset.pattern.permute.xlu0 0
    %2417 = vperm.xlu0 %2416, %v1052
    %v2418 = vpop.permute.xlu0 %2417
    %2421 = vset.pattern.permute.xlu0 0
    %2422 = vperm.xlu0 %2421, %v1053
    %v2423 = vpop.permute.xlu0 %2422
    %2426 = vset.pattern.permute.xlu0 0
    %2427 = vperm.xlu0 %2426, %v1054
    %v2428 = vpop.permute.xlu0 %2427
    %2431 = vset.pattern.permute.xlu0 0
    %2432 = vperm.xlu0 %2431, %v1055
    %v2433 = vpop.permute.xlu0 %2432
    %2436 = vset.pattern.permute.xlu0 0
    %2437 = vperm.xlu0 %2436, %v1056
    %v2438 = vpop.permute.xlu0 %2437
    %2441 = vset.pattern.permute.xlu0 0
    %2442 = vperm.xlu0 %2441, %v1057
    %v2443 = vpop.permute.xlu0 %2442
    %2446 = vset.pattern.permute.xlu0 0
    %2447 = vperm.xlu0 %2446, %v1058
    %v2448 = vpop.permute.xlu0 %2447
    %2451 = vset.pattern.permute.xlu0 0
    %2452 = vperm.xlu0 %2451, %v1059
    %v2453 = vpop.permute.xlu0 %2452
    %2456 = vset.pattern.permute.xlu0 0
    %2457 = vperm.xlu0 %2456, %v1060
    %v2458 = vpop.permute.xlu0 %2457
    %2461 = vset.pattern.permute.xlu0 0
    %2462 = vperm.xlu0 %2461, %v1061
    %v2463 = vpop.permute.xlu0 %2462
    %v2465 = vsel %vm2353, %v2388, 1e+30
    %v2466 = vsel %vm2354, %v2388, 1e+30
    %v2467 = vsel %vm2355, %v2393, 1e+30
    %v2468 = vsel %vm2356, %v2393, 1e+30
    %v2469 = vsel %vm2357, %v2398, 1e+30
    %v2470 = vsel %vm2358, %v2398, 1e+30
    %v2471 = vsel %vm2359, %v2403, 1e+30
    %v2472 = vsel %vm2360, %v2403, 1e+30
    %v2473 = vsel %vm2361, %v2408, 1e+30
    %v2474 = vsel %vm2362, %v2408, 1e+30
    %v2475 = vsel %vm2363, %v2413, 1e+30
    %v2476 = vsel %vm2364, %v2413, 1e+30
    %v2477 = vsel %vm2365, %v2418, 1e+30
    %v2478 = vsel %vm2366, %v2418, 1e+30
    %v2479 = vsel %vm2367, %v2423, 1e+30
    %v2480 = vsel %vm2368, %v2423, 1e+30
    %v2481 = vsel %vm2369, %v2428, 1e+30
    %v2482 = vsel %vm2370, %v2428, 1e+30
    %v2483 = vsel %vm2371, %v2433, 1e+30
    %v2484 = vsel %vm2372, %v2433, 1e+30
    %v2485 = vsel %vm2373, %v2438, 1e+30
    %v2486 = vsel %vm2374, %v2438, 1e+30
    %v2487 = vsel %vm2375, %v2443, 1e+30
    %v2488 = vsel %vm2376, %v2443, 1e+30
    %v2489 = vsel %vm2377, %v2448, 1e+30
    %v2490 = vsel %vm2378, %v2448, 1e+30
    %v2491 = vsel %vm2379, %v2453, 1e+30
    %v2492 = vsel %vm2380, %v2453, 1e+30
    %v2493 = vsel %vm2381, %v2458, 1e+30
    %v2494 = vsel %vm2382, %v2458, 1e+30
    %v2495 = vsel %vm2383, %v2463, 1e+30
    %v2496 = vsel %vm2384, %v2463, 1e+30
    %v2497 = vmin.f32 %v2465, %v2469
    %v2498 = vmin.f32 %v2467, %v2471
    %v2499 = vmin.f32 %v2497, %v2473
    %v2500 = vmin.f32 %v2498, %v2475
    %v2501 = vmin.f32 %v2499, %v2477
    %v2502 = vmin.f32 %v2500, %v2479
    %v2503 = vmin.f32 %v2501, %v2481
    %v2504 = vmin.f32 %v2502, %v2483
    %v2505 = vmin.f32 %v2503, %v2485
    %v2506 = vmin.f32 %v2504, %v2487
    %v2507 = vmin.f32 %v2505, %v2489
    %v2508 = vmin.f32 %v2506, %v2491
    %v2509 = vmin.f32 %v2507, %v2493
    %v2510 = vmin.f32 %v2508, %v2495
    %v2511 = vmin.f32 %v2509, %v2510
    %v2512 = vrot.slane %v2511, 4
    %v2513 = vmin.f32 %v2511, %v2512
    %v2514 = vrot.slane %v2513, 2
    %v2515 = vmin.f32 %v2513, %v2514
    %v2516 = vrot.slane %v2515, 1
    %v2517 = vmin.f32 %v2515, %v2516
    %v2518 = vmin.f32 %v2466, %v2470
    %v2519 = vmin.f32 %v2468, %v2472
    %v2520 = vmin.f32 %v2518, %v2474
    %v2521 = vmin.f32 %v2519, %v2476
    %v2522 = vmin.f32 %v2520, %v2478
    %v2523 = vmin.f32 %v2521, %v2480
    %v2524 = vmin.f32 %v2522, %v2482
    %v2525 = vmin.f32 %v2523, %v2484
    %v2526 = vmin.f32 %v2524, %v2486
    %v2527 = vmin.f32 %v2525, %v2488
    %v2528 = vmin.f32 %v2526, %v2490
    %v2529 = vmin.f32 %v2527, %v2492
    %v2530 = vmin.f32 %v2528, %v2494
    %v2531 = vmin.f32 %v2529, %v2496
    %v2532 = vmin.f32 %v2530, %v2531
    %v2533 = vrot.slane %v2532, 4
    %v2534 = vmin.f32 %v2532, %v2533
    %v2535 = vrot.slane %v2534, 2
    %v2536 = vmin.f32 %v2534, %v2535
    %v2537 = vrot.slane %v2536, 1
    %v2538 = vmin.f32 %v2536, %v2537
    %v2539 = vlaneseq
    %v2540 = vshrl.u32 %v2539, 7
    %v2541 = vadd.s32 %v2540, 8
    %v2542 = vadd.s32 %v2540, 16
    %v2543 = vadd.s32 %v2540, 24
    %v2544 = vadd.s32 %v2540, 32
    %v2545 = vadd.s32 %v2540, 40
    %v2546 = vadd.s32 %v2540, 48
    %v2547 = vadd.s32 %v2540, 56
    %v2548 = vadd.s32 %v2540, 64
    %v2549 = vadd.s32 %v2540, 72
    %v2550 = vadd.s32 %v2540, 80
    %v2551 = vadd.s32 %v2540, 88
    %v2552 = vadd.s32 %v2540, 96
    %v2553 = vadd.s32 %v2540, 104
    %v2554 = vadd.s32 %v2540, 112
    %v2555 = vadd.s32 %v2540, 120
    %vm2556 = vcmp.le.f32.partialorder %v2465, %v2517
    %vm2557 = vcmp.le.f32.partialorder %v2466, %v2538
    %vm2558 = vcmp.le.f32.partialorder %v2467, %v2517
    %vm2559 = vcmp.le.f32.partialorder %v2468, %v2538
    %vm2560 = vcmp.le.f32.partialorder %v2469, %v2517
    %vm2561 = vcmp.le.f32.partialorder %v2470, %v2538
    %vm2562 = vcmp.le.f32.partialorder %v2471, %v2517
    %vm2563 = vcmp.le.f32.partialorder %v2472, %v2538
    %vm2564 = vcmp.le.f32.partialorder %v2473, %v2517
    %vm2565 = vcmp.le.f32.partialorder %v2474, %v2538
    %vm2566 = vcmp.le.f32.partialorder %v2475, %v2517
    %vm2567 = vcmp.le.f32.partialorder %v2476, %v2538
    %vm2568 = vcmp.le.f32.partialorder %v2477, %v2517
    %vm2569 = vcmp.le.f32.partialorder %v2478, %v2538
    %vm2570 = vcmp.le.f32.partialorder %v2479, %v2517
    %vm2571 = vcmp.le.f32.partialorder %v2480, %v2538
    %vm2572 = vcmp.le.f32.partialorder %v2481, %v2517
    %vm2573 = vcmp.le.f32.partialorder %v2482, %v2538
    %vm2574 = vcmp.le.f32.partialorder %v2483, %v2517
    %vm2575 = vcmp.le.f32.partialorder %v2484, %v2538
    %vm2576 = vcmp.le.f32.partialorder %v2485, %v2517
    %vm2577 = vcmp.le.f32.partialorder %v2486, %v2538
    %vm2578 = vcmp.le.f32.partialorder %v2487, %v2517
    %vm2579 = vcmp.le.f32.partialorder %v2488, %v2538
    %vm2580 = vcmp.le.f32.partialorder %v2489, %v2517
    %vm2581 = vcmp.le.f32.partialorder %v2490, %v2538
    %vm2582 = vcmp.le.f32.partialorder %v2491, %v2517
    %vm2583 = vcmp.le.f32.partialorder %v2492, %v2538
    %vm2584 = vcmp.le.f32.partialorder %v2493, %v2517
    %vm2585 = vcmp.le.f32.partialorder %v2494, %v2538
    %vm2586 = vcmp.le.f32.partialorder %v2495, %v2517
    %vm2587 = vcmp.le.f32.partialorder %v2496, %v2538
    %vm2588 = vmand %vm2353, %vm2556
    %vm2589 = vmand %vm2354, %vm2557
    %vm2590 = vmand %vm2355, %vm2558
    %vm2591 = vmand %vm2356, %vm2559
    %vm2592 = vmand %vm2357, %vm2560
    %vm2593 = vmand %vm2358, %vm2561
    %vm2594 = vmand %vm2359, %vm2562
    %vm2595 = vmand %vm2360, %vm2563
    %vm2596 = vmand %vm2361, %vm2564
    %vm2597 = vmand %vm2362, %vm2565
    %vm2598 = vmand %vm2363, %vm2566
    %vm2599 = vmand %vm2364, %vm2567
    %vm2600 = vmand %vm2365, %vm2568
    %vm2601 = vmand %vm2366, %vm2569
    %vm2602 = vmand %vm2367, %vm2570
    %vm2603 = vmand %vm2368, %vm2571
    %vm2604 = vmand %vm2369, %vm2572
    %vm2605 = vmand %vm2370, %vm2573
    %vm2606 = vmand %vm2371, %vm2574
    %vm2607 = vmand %vm2372, %vm2575
    %vm2608 = vmand %vm2373, %vm2576
    %vm2609 = vmand %vm2374, %vm2577
    %vm2610 = vmand %vm2375, %vm2578
    %vm2611 = vmand %vm2376, %vm2579
    %vm2612 = vmand %vm2377, %vm2580
    %vm2613 = vmand %vm2378, %vm2581
    %vm2614 = vmand %vm2379, %vm2582
    %vm2615 = vmand %vm2380, %vm2583
    %vm2616 = vmand %vm2381, %vm2584
    %vm2617 = vmand %vm2382, %vm2585
    %vm2618 = vmand %vm2383, %vm2586
    %vm2619 = vmand %vm2384, %vm2587
    %v2620 = vsel %vm2588, %v2540, 128
    %v2621 = vsel %vm2589, %v2540, 128
    %v2622 = vsel %vm2590, %v2541, 128
    %v2623 = vsel %vm2591, %v2541, 128
    %v2624 = vsel %vm2592, %v2542, 128
    %v2625 = vsel %vm2593, %v2542, 128
    %v2626 = vsel %vm2594, %v2543, 128
    %v2627 = vsel %vm2595, %v2543, 128
    %v2628 = vsel %vm2596, %v2544, 128
    %v2629 = vsel %vm2597, %v2544, 128
    %v2630 = vsel %vm2598, %v2545, 128
    %v2631 = vsel %vm2599, %v2545, 128
    %v2632 = vsel %vm2600, %v2546, 128
    %v2633 = vsel %vm2601, %v2546, 128
    %v2634 = vsel %vm2602, %v2547, 128
    %v2635 = vsel %vm2603, %v2547, 128
    %v2636 = vsel %vm2604, %v2548, 128
    %v2637 = vsel %vm2605, %v2548, 128
    %v2638 = vsel %vm2606, %v2549, 128
    %v2639 = vsel %vm2607, %v2549, 128
    %v2640 = vsel %vm2608, %v2550, 128
    %v2641 = vsel %vm2609, %v2550, 128
    %v2642 = vsel %vm2610, %v2551, 128
    %v2643 = vsel %vm2611, %v2551, 128
    %v2644 = vsel %vm2612, %v2552, 128
    %v2645 = vsel %vm2613, %v2552, 128
    %v2646 = vsel %vm2614, %v2553, 128
    %v2647 = vsel %vm2615, %v2553, 128
    %v2648 = vsel %vm2616, %v2554, 128
    %v2649 = vsel %vm2617, %v2554, 128
    %v2650 = vsel %vm2618, %v2555, 128
    %v2651 = vsel %vm2619, %v2555, 128
    %vm2652 = vcmp.lt.s32.totalorder %v2620, %v2624
    %v2653 = vsel %vm2652, %v2620, %v2624
    %vm2654 = vcmp.lt.s32.totalorder %v2622, %v2626
    %v2655 = vsel %vm2654, %v2622, %v2626
    %vm2656 = vcmp.lt.s32.totalorder %v2653, %v2628
    %v2657 = vsel %vm2656, %v2653, %v2628
    %vm2658 = vcmp.lt.s32.totalorder %v2655, %v2630
    %v2659 = vsel %vm2658, %v2655, %v2630
    %vm2660 = vcmp.lt.s32.totalorder %v2657, %v2632
    %v2661 = vsel %vm2660, %v2657, %v2632
    %vm2662 = vcmp.lt.s32.totalorder %v2659, %v2634
    %v2663 = vsel %vm2662, %v2659, %v2634
    %vm2664 = vcmp.lt.s32.totalorder %v2661, %v2636
    %v2665 = vsel %vm2664, %v2661, %v2636
    %vm2666 = vcmp.lt.s32.totalorder %v2663, %v2638
    %v2667 = vsel %vm2666, %v2663, %v2638
    %vm2668 = vcmp.lt.s32.totalorder %v2665, %v2640
    %v2669 = vsel %vm2668, %v2665, %v2640
    %vm2670 = vcmp.lt.s32.totalorder %v2667, %v2642
    %v2671 = vsel %vm2670, %v2667, %v2642
    %vm2672 = vcmp.lt.s32.totalorder %v2669, %v2644
    %v2673 = vsel %vm2672, %v2669, %v2644
    %vm2674 = vcmp.lt.s32.totalorder %v2671, %v2646
    %v2675 = vsel %vm2674, %v2671, %v2646
    %vm2676 = vcmp.lt.s32.totalorder %v2673, %v2648
    %v2677 = vsel %vm2676, %v2673, %v2648
    %vm2678 = vcmp.lt.s32.totalorder %v2675, %v2650
    %v2679 = vsel %vm2678, %v2675, %v2650
    %vm2680 = vcmp.lt.s32.totalorder %v2677, %v2679
    %v2681 = vsel %vm2680, %v2677, %v2679
    %v2682 = vrot.slane %v2681, 4
    %vm2683 = vcmp.lt.s32.totalorder %v2681, %v2682
    %v2684 = vsel %vm2683, %v2681, %v2682
    %v2685 = vrot.slane %v2684, 2
    %vm2686 = vcmp.lt.s32.totalorder %v2684, %v2685
    %v2687 = vsel %vm2686, %v2684, %v2685
    %v2688 = vrot.slane %v2687, 1
    %vm2689 = vcmp.lt.s32.totalorder %v2687, %v2688
    %v2690 = vsel %vm2689, %v2687, %v2688
    %vm2691 = vcmp.lt.s32.totalorder %v2621, %v2625
    %v2692 = vsel %vm2691, %v2621, %v2625
    %vm2693 = vcmp.lt.s32.totalorder %v2623, %v2627
    %v2694 = vsel %vm2693, %v2623, %v2627
    %vm2695 = vcmp.lt.s32.totalorder %v2692, %v2629
    %v2696 = vsel %vm2695, %v2692, %v2629
    %vm2697 = vcmp.lt.s32.totalorder %v2694, %v2631
    %v2698 = vsel %vm2697, %v2694, %v2631
    %vm2699 = vcmp.lt.s32.totalorder %v2696, %v2633
    %v2700 = vsel %vm2699, %v2696, %v2633
    %vm2701 = vcmp.lt.s32.totalorder %v2698, %v2635
    %v2702 = vsel %vm2701, %v2698, %v2635
    %vm2703 = vcmp.lt.s32.totalorder %v2700, %v2637
    %v2704 = vsel %vm2703, %v2700, %v2637
    %vm2705 = vcmp.lt.s32.totalorder %v2702, %v2639
    %v2706 = vsel %vm2705, %v2702, %v2639
    %vm2707 = vcmp.lt.s32.totalorder %v2704, %v2641
    %v2708 = vsel %vm2707, %v2704, %v2641
    %vm2709 = vcmp.lt.s32.totalorder %v2706, %v2643
    %v2710 = vsel %vm2709, %v2706, %v2643
    %vm2711 = vcmp.lt.s32.totalorder %v2708, %v2645
    %v2712 = vsel %vm2711, %v2708, %v2645
    %vm2713 = vcmp.lt.s32.totalorder %v2710, %v2647
    %v2714 = vsel %vm2713, %v2710, %v2647
    %vm2715 = vcmp.lt.s32.totalorder %v2712, %v2649
    %v2716 = vsel %vm2715, %v2712, %v2649
    %vm2717 = vcmp.lt.s32.totalorder %v2714, %v2651
    %v2718 = vsel %vm2717, %v2714, %v2651
    %vm2719 = vcmp.lt.s32.totalorder %v2716, %v2718
    %v2720 = vsel %vm2719, %v2716, %v2718
    %v2721 = vrot.slane %v2720, 4
    %vm2722 = vcmp.lt.s32.totalorder %v2720, %v2721
    %v2723 = vsel %vm2722, %v2720, %v2721
    %v2724 = vrot.slane %v2723, 2
    %vm2725 = vcmp.lt.s32.totalorder %v2723, %v2724
    %v2726 = vsel %vm2725, %v2723, %v2724
    %v2727 = vrot.slane %v2726, 1
    %vm2728 = vcmp.lt.s32.totalorder %v2726, %v2727
    %v2729 = vsel %vm2728, %v2726, %v2727
    %vm2730 = vcmp.eq.s32.totalorder %v2540, %v2690
    %vm2731 = vcmp.eq.s32.totalorder %v2540, %v2729
    %vm2732 = vcmp.eq.s32.totalorder %v2541, %v2690
    %vm2733 = vcmp.eq.s32.totalorder %v2541, %v2729
    %vm2734 = vcmp.eq.s32.totalorder %v2542, %v2690
    %vm2735 = vcmp.eq.s32.totalorder %v2542, %v2729
    %vm2736 = vcmp.eq.s32.totalorder %v2543, %v2690
    %vm2737 = vcmp.eq.s32.totalorder %v2543, %v2729
    %vm2738 = vcmp.eq.s32.totalorder %v2544, %v2690
    %vm2739 = vcmp.eq.s32.totalorder %v2544, %v2729
    %vm2740 = vcmp.eq.s32.totalorder %v2545, %v2690
    %vm2741 = vcmp.eq.s32.totalorder %v2545, %v2729
    %vm2742 = vcmp.eq.s32.totalorder %v2546, %v2690
    %vm2743 = vcmp.eq.s32.totalorder %v2546, %v2729
    %vm2744 = vcmp.eq.s32.totalorder %v2547, %v2690
    %vm2745 = vcmp.eq.s32.totalorder %v2547, %v2729
    %vm2746 = vcmp.eq.s32.totalorder %v2548, %v2690
    %vm2747 = vcmp.eq.s32.totalorder %v2548, %v2729
    %vm2748 = vcmp.eq.s32.totalorder %v2549, %v2690
    %vm2749 = vcmp.eq.s32.totalorder %v2549, %v2729
    %vm2750 = vcmp.eq.s32.totalorder %v2550, %v2690
    %vm2751 = vcmp.eq.s32.totalorder %v2550, %v2729
    %vm2752 = vcmp.eq.s32.totalorder %v2551, %v2690
    %vm2753 = vcmp.eq.s32.totalorder %v2551, %v2729
    %vm2754 = vcmp.eq.s32.totalorder %v2552, %v2690
    %vm2755 = vcmp.eq.s32.totalorder %v2552, %v2729
    %vm2756 = vcmp.eq.s32.totalorder %v2553, %v2690
    %vm2757 = vcmp.eq.s32.totalorder %v2553, %v2729
    %vm2758 = vcmp.eq.s32.totalorder %v2554, %v2690
    %vm2759 = vcmp.eq.s32.totalorder %v2554, %v2729
    %vm2760 = vcmp.eq.s32.totalorder %v2555, %v2690
    %vm2761 = vcmp.eq.s32.totalorder %v2555, %v2729
    %v2762 = vsel %vm2730, 1, 0
    %v2763 = vsel %vm2731, 1, 0
    %v2764 = vsel %vm2732, 1, 0
    %v2765 = vsel %vm2733, 1, 0
    %v2766 = vsel %vm2734, 1, 0
    %v2767 = vsel %vm2735, 1, 0
    %v2768 = vsel %vm2736, 1, 0
    %v2769 = vsel %vm2737, 1, 0
    %v2770 = vsel %vm2738, 1, 0
    %v2771 = vsel %vm2739, 1, 0
    %v2772 = vsel %vm2740, 1, 0
    %v2773 = vsel %vm2741, 1, 0
    %v2774 = vsel %vm2742, 1, 0
    %v2775 = vsel %vm2743, 1, 0
    %v2776 = vsel %vm2744, 1, 0
    %v2777 = vsel %vm2745, 1, 0
    %v2778 = vsel %vm2746, 1, 0
    %v2779 = vsel %vm2747, 1, 0
    %v2780 = vsel %vm2748, 1, 0
    %v2781 = vsel %vm2749, 1, 0
    %v2782 = vsel %vm2750, 1, 0
    %v2783 = vsel %vm2751, 1, 0
    %v2784 = vsel %vm2752, 1, 0
    %v2785 = vsel %vm2753, 1, 0
    %v2786 = vsel %vm2754, 1, 0
    %v2787 = vsel %vm2755, 1, 0
    %v2788 = vsel %vm2756, 1, 0
    %v2789 = vsel %vm2757, 1, 0
    %v2790 = vsel %vm2758, 1, 0
    %v2791 = vsel %vm2759, 1, 0
    %v2792 = vsel %vm2760, 1, 0
    %v2793 = vsel %vm2761, 1, 0
    %v2794 = vcvt.s32.f32 %v2762
    %v2795 = vcvt.s32.f32 %v2763
    %v2796 = vcvt.s32.f32 %v2764
    %v2797 = vcvt.s32.f32 %v2765
    %v2798 = vcvt.s32.f32 %v2766
    %v2799 = vcvt.s32.f32 %v2767
    %v2800 = vcvt.s32.f32 %v2768
    %v2801 = vcvt.s32.f32 %v2769
    %v2802 = vcvt.s32.f32 %v2770
    %v2803 = vcvt.s32.f32 %v2771
    %v2804 = vcvt.s32.f32 %v2772
    %v2805 = vcvt.s32.f32 %v2773
    %v2806 = vcvt.s32.f32 %v2774
    %v2807 = vcvt.s32.f32 %v2775
    %v2808 = vcvt.s32.f32 %v2776
    %v2809 = vcvt.s32.f32 %v2777
    %v2810 = vcvt.s32.f32 %v2778
    %v2811 = vcvt.s32.f32 %v2779
    %v2812 = vcvt.s32.f32 %v2780
    %v2813 = vcvt.s32.f32 %v2781
    %v2814 = vcvt.s32.f32 %v2782
    %v2815 = vcvt.s32.f32 %v2783
    %v2816 = vcvt.s32.f32 %v2784
    %v2817 = vcvt.s32.f32 %v2785
    %v2818 = vcvt.s32.f32 %v2786
    %v2819 = vcvt.s32.f32 %v2787
    %v2820 = vcvt.s32.f32 %v2788
    %v2821 = vcvt.s32.f32 %v2789
    %v2822 = vcvt.s32.f32 %v2790
    %v2823 = vcvt.s32.f32 %v2791
    %v2824 = vcvt.s32.f32 %v2792
    %v2825 = vcvt.s32.f32 %v2793
    %v2826 = vld [vmem:[%s1] sm:$0xff]
    %2827 = vmatpush.msra.mxu0 %v2824
    %2828 = vmatpush.msra.mxu0 %v2822
    %2829 = vmatpush.msra.mxu0 %v2820
    %2830 = vmatpush.msra.mxu0 %v2818
    %2831 = vmatpush.msra.mxu0 %v2816
    %2832 = vmatpush.msra.mxu0 %v2814
    %2833 = vmatpush.msra.mxu0 %v2812
    %2834 = vmatpush.msra.mxu0 %v2810
    %2835 = vmatpush.msra.mxu0 %v2808
    %2836 = vmatpush.msra.mxu0 %v2806
    %2837 = vmatpush.msra.mxu0 %v2804
    %2838 = vmatpush.msra.mxu0 %v2802
    %2839 = vmatpush.msra.mxu0 %v2800
    %2840 = vmatpush.msra.mxu0 %v2798
    %2841 = vmatpush.msra.mxu0 %v2796
    %2842 = vmatpush.msra.mxu0 %v2794
    %2843 = vmatmul.f32.gmra.mxu0 %v2826
    %v2844 = vpop.f32.mrf.mxu0
    %v2845 = vadd.f32 0.0, %v2844
    %2846 = vdwg.mxu0
    %2847 = vmatpush.msra.mxu0 %v2825
    %2848 = vmatpush.msra.mxu0 %v2823
    %2849 = vmatpush.msra.mxu0 %v2821
    %2850 = vmatpush.msra.mxu0 %v2819
    %2851 = vmatpush.msra.mxu0 %v2817
    %2852 = vmatpush.msra.mxu0 %v2815
    %2853 = vmatpush.msra.mxu0 %v2813
    %2854 = vmatpush.msra.mxu0 %v2811
    %2855 = vmatpush.msra.mxu0 %v2809
    %2856 = vmatpush.msra.mxu0 %v2807
    %2857 = vmatpush.msra.mxu0 %v2805
    %2858 = vmatpush.msra.mxu0 %v2803
    %2859 = vmatpush.msra.mxu0 %v2801
    %2860 = vmatpush.msra.mxu0 %v2799
    %2861 = vmatpush.msra.mxu0 %v2797
    %2862 = vmatpush.msra.mxu0 %v2795
    %2863 = vmatmul.f32.gmra.mxu0 %v2826
    %v2864 = vpop.f32.mrf.mxu0
    %v2865 = vadd.f32 0.0, %v2864
    %2866 = vdwg.mxu0
    %v2867 = vld [vmem:[#allocation9] sm:$0x3]
    %v2869 = vperm.slane %v2867, 0
    %v2870 = vperm.slane %v2867, 1
    %vm2873 = vcmp.lt.f32.partialorder %v2517, %v2869
    %vm2874 = vcmp.lt.f32.partialorder %v2538, %v2870
    %v2875 = vsel %vm2873, %v2517, %v2869
    %v2876 = vsel %vm2874, %v2538, %v2870
    %v2879 = vrot.slane %v2876, 7
    %vm2880 = vcmask 1040384
    %v2881 = vsel %vm2880, %v2875, %v2879
    %v2883 = vlaneseq
    %vm2884 = vcmp.ge.s32.totalorder %v2883, 0
    %vm2885 = vcmp.lt.s32.totalorder %v2883, 256
    %vm2886 = vmand %vm2884, %vm2885
    %2887 = vst.msk [vmem:[#allocation9] sm:$0x3] %vm2886, %v2881
    %s2888 = smul.u32 0, 128
    %v2889 = vstv %s2888
    %v2890 = vadd.s32 %v2690, %v2889
    %v2891 = vadd.s32 %v2729, %v2889
    %v2892 = vld [vmem:[#allocation11] sm:$0x3]
    %v2893 = vperm.slane %v2892, 0
    %v2894 = vperm.slane %v2892, 1
    %v2895 = vsel %vm2873, %v2890, %v2893
    %v2896 = vsel %vm2874, %v2891, %v2894
    %v2897 = vrot.slane %v2896, 7
    %v2898 = vsel %vm2880, %v2895, %v2897
    %2899 = vst.msk [vmem:[#allocation11] sm:$0x3] %vm2886, %v2898
    %v2900 = vld [vmem:[#allocation8] sm:$0xff]
    %v2901 = vld [vmem:[#allocation8 + $0x8] sm:$0xff]
    %v2902 = vsel %vm2873, 1, 0
    %v2903 = vsel %vm2874, 1, 0
    %v2904 = vperm.slane %v2902, 0
    %v2905 = vperm.slane %v2903, 0
    %vm2906 = vcmp.eq.s32.totalorder %v2904, 1
    %vm2907 = vcmp.eq.s32.totalorder %v2905, 1
    %v2908 = vsel %vm2906, %v2845, %v2900
    %v2909 = vsel %vm2907, %v2865, %v2901
    %2910 = vst [vmem:[#allocation8] sm:$0xff] %v2908
    %2911 = vst [vmem:[#allocation8 + $0x8] sm:$0xff] %v2909
    // Predicated region
    $region42: #{tpu_custom_call.1} parent=1 // pred_check
      %p2912 = pneg %p64
    $region43: #{tpu_custom_call.1} parent=1 // pred_check_branch
      %2914 = sbr.rel (%p2912) target = $region45
    $region44: #{tpu_custom_call.1} parent=1 // pred_region
      %v2915 = vld [vmem:[#allocation9] sm:$0x3]
      %vm2916 = vcmp.lt.f32.partialorder %v2915, 1e+29
      %v2917 = vld [vmem:[#allocation8] sm:$0xff]
      %v2918 = vld [vmem:[#allocation8 + $0x8] sm:$0xff]
      %v2919 = vld [vmem:[%s2] sm:$0xff]
      %v2920 = vsel %vm2916, 1, 0
      %v2921 = vperm.slane %v2920, 0
      %v2922 = vperm.slane %v2920, 1
      %vm2923 = vcmp.eq.s32.totalorder %v2921, 1
      %vm2924 = vcmp.eq.s32.totalorder %v2922, 1
      %2926 = vset.pattern.permute.xlu0 0
      %2927 = vperm.xlu0 %2926, %v2919
      %v2928 = vpop.permute.xlu0 %2927
      %v2930 = vsel %vm2923, %v2917, %v2928
      %v2931 = vsel %vm2924, %v2918, %v2928
      %2932 = vst [vmem:[#allocation8] sm:$0xff] %v2930
      %2933 = vst [vmem:[#allocation8 + $0x8] sm:$0xff] %v2931
      %v2934 = vld [vmem:[#allocation9] sm:$0x3]
      %v2935 = vsel %vm2916, %v2934, 0.0
      %2936 = vst.msk [vmem:[#allocation9] sm:$0x3] %vm2886, %v2935
    $region45: #{tpu_custom_call.1} parent=1 // pred_fallthru
      _
    // Predicated region
    $region46: #{tpu_custom_call.1} parent=1 // pred_check
      _
    $region47: #{tpu_custom_call.1} parent=1 // pred_check_branch
      %2938 = sbr.rel (0) target = $region49
    $region48: #{tpu_custom_call.1} parent=1 // pred_region
      %2940 = vsyncadd [#allocation3], 0
      %s2942 = sshll.u32 [#allocation8], 4
      %s2943 = int_to_ptr.vmem [resolvable:$true] %s2942
      %s2944 = sshll.u32 %s6, 4
      %s2945 = int_to_ptr.hbm [resolvable:$true] %s2944
      %2947 = dma.vmem_to_hbm [thread:$0]  %s2943, 256, %s2945, [#allocation3]
    $region49: #{tpu_custom_call.1} parent=1 // pred_fallthru
      _
    // Predicated region
    $region50: #{tpu_custom_call.1} parent=1 // pred_check
      _
    $region51: #{tpu_custom_call.1} parent=1 // pred_check_branch
      %2949 = sbr.rel (0) target = $region53
    $region52: #{tpu_custom_call.1} parent=1 // pred_region
      %2951 = vsyncadd [#allocation10], 0
      %s2953 = sshll.u32 [#allocation9], 4
      %s2954 = int_to_ptr.vmem [resolvable:$true] %s2953
      %s2955 = sshll.u32 %s7, 4
      %s2956 = int_to_ptr.hbm [resolvable:$true] %s2955
      %2958 = dma.vmem_to_hbm [thread:$0]  %s2954, 32, %s2956, [#allocation10]
    $region53: #{tpu_custom_call.1} parent=1 // pred_fallthru
      _
    // Predicated region
    $region54: #{tpu_custom_call.1} parent=1 // pred_check
      _
    $region55: #{tpu_custom_call.1} parent=1 // pred_check_branch
      %2960 = sbr.rel (0) target = $region57
    $region56: #{tpu_custom_call.1} parent=1 // pred_region
      %2962 = vsyncadd [#allocation10], 0
      %s2964 = sshll.u32 [#allocation11], 4
      %s2965 = int_to_ptr.vmem [resolvable:$true] %s2964
      %s2966 = sshll.u32 %s8, 4
      %s2967 = int_to_ptr.hbm [resolvable:$true] %s2966
      %2969 = dma.vmem_to_hbm [thread:$0]  %s2965, 32, %s2967, [#allocation10]
    $region57: #{tpu_custom_call.1} parent=1 // pred_fallthru
      _
    // Predicated region
    $region58: #{tpu_custom_call.1} parent=1 // pred_check
      _
    $region59: #{tpu_custom_call.1} parent=1 // pred_check_branch
      %2971 = sbr.rel (0) target = $region61
    $region60: #{tpu_custom_call.1} parent=1 // pred_region
      %2973 = dma.done [#allocation3], 256
    $region61: #{tpu_custom_call.1} parent=1 // pred_fallthru
      _
    // Predicated region
    $region62: #{tpu_custom_call.1} parent=1 // pred_check
      _
    $region63: #{tpu_custom_call.1} parent=1 // pred_check_branch
      %2975 = sbr.rel (0) target = $region65
    $region64: #{tpu_custom_call.1} parent=1 // pred_region
      %2977 = dma.done [#allocation10], 32
    $region65: #{tpu_custom_call.1} parent=1 // pred_fallthru
      _
    // Predicated region
    $region66: #{tpu_custom_call.1} parent=1 // pred_check
      _
    $region67: #{tpu_custom_call.1} parent=1 // pred_check_branch
      %2979 = sbr.rel (0) target = $region69
    $region68: #{tpu_custom_call.1} parent=1 // pred_region
      %2981 = dma.done [#allocation10], 32
    $region69: #{tpu_custom_call.1} parent=1 // pred_fallthru
      _
    %2982 = vsyncpa [#allocation3], 1
    %2983 = vsyncpa [#allocation10], 1
    %2984 = vsyncpa [#allocation4], 1
    %2985 = vsyncpa [#allocation6], 1

</llo_original>
